<compile_context>
chip_gen: v5e
topology: v5e:2x2
jax: 0.10.0
libtpu: 0.0.40
codegen_flags: <defaults>
</compile_context>

<pallas_src>
import functools

import jax
import jax.numpy as jnp
from jax.experimental import pallas as pl
from jax.experimental.pallas import tpu as pltpu

EPS = 1e-5
LANE = 128   # output-channel (MXU N / lane) padding -> lane-dense stores
KPAD = 16    # contraction-channel padding (bf16 sublane tile)

_CPARAMS = pltpu.CompilerParams(
    dimension_semantics=("parallel",),          # per-image grid axis
    vmem_limit_bytes=44 * 1024 * 1024,          # raised vs default, fits v7x 64MiB
)


def _round_up(x, m):
    return (x + m - 1) // m * m


# --------------------------------------------------------------------------- #
# Implicit-conv tap source (replaces HBM im2col: ~1x input bytes instead of 9x)
# --------------------------------------------------------------------------- #
def _conv3x3_source(x_nhwc, stride):
    """Build the per-image source plane for an implicit 3x3/pad=1/stride-s conv.

    Returns (src, taps, center, ho, wo): tap t=(dy,dx) of the conv is the plain
    unstrided (ho, wo) window of `src` at static row/col offset taps[t]; the
    1x1-shortcut activation (x sampled at the conv's output grid) is the window
    at `center`.  stride=1: src is the zero-padded input.  stride=2: src is the
    four space-to-depth phase planes stacked along rows.
    """
    n, h, w, c = x_nhwc.shape
    ho = (h + 2 - 3) // stride + 1
    wo = (w + 2 - 3) // stride + 1
    xp = jnp.pad(x_nhwc, ((0, 0), (1, 1), (1, 1), (0, 0)))
    if stride == 1:
        taps = [(dy, dx) for dy in range(3) for dx in range(3)]
        return xp, taps, (1, 1), ho, wo
    assert stride == 2, "ResNet BasicBlock only uses stride 1 or 2"
    hs, ws = ho + 1, wo + 1
    planes = []
    for py in range(2):
        for px in range(2):
            ph = xp[:, py::2, px::2, :][:, :hs, :ws, :]
            ph = jnp.pad(ph, ((0, 0), (0, hs - ph.shape[1]),
                              (0, ws - ph.shape[2]), (0, 0)))
            planes.append(ph)
    src = jnp.concatenate(planes, axis=1)                    # (N, 4*hs, ws, C)
    taps = [((2 * (dy % 2) + (dx % 2)) * hs + dy // 2, dx // 2)
            for dy in range(3) for dx in range(3)]
    center = (3 * hs, 0)                                     # phase (1,1), offset 0
    return src, taps, center, ho, wo


def _fold_w3x3(w_oihw, kp, cp):
    """(Cout, Cin, 3, 3) torch weight -> (9, kp, cp) bf16, tap-major (dy, dx)."""
    cout, cin = w_oihw.shape[0], w_oihw.shape[1]
    w = jnp.transpose(w_oihw, (2, 3, 1, 0)).reshape(9, cin, cout)
    w = jnp.pad(w, ((0, 0), (0, kp - cin), (0, cp - cout)))
    return w.astype(jnp.bfloat16)


def _fold_w1x1(w_oihw, kp, cp):
    """(Cout, Cin, 1, 1) torch weight -> (kp, cp) bf16."""
    cout, cin = w_oihw.shape[0], w_oihw.shape[1]
    w = jnp.pad(w_oihw[:, :, 0, 0].T, ((0, kp - cin), (0, cp - cout)))
    return w.astype(jnp.bfloat16)


# --------------------------------------------------------------------------- #
# Pallas kernels
# --------------------------------------------------------------------------- #
def _make_conv1_kernel(taps, center, ho, wo, cinp, cp, has_ds):
    """Pass A: conv1 implicit GEMM -> y1 (bf16) + BN1 partial stats; optionally
    shortcut-conv partial stats (its output is never materialized)."""
    m = ho * wo

    def kernel(src_ref, w1_ref, *rest):
        if has_ds:
            wd_ref, y1_ref, st1_ref, std_ref = rest
        else:
            y1_ref, st1_ref = rest
        acc = jnp.zeros((m, cp), jnp.float32)
        for t, (r0, c0) in enumerate(taps):
            a = src_ref[0, r0:r0 + ho, c0:c0 + wo, :].reshape(m, cinp)
            acc = acc + jnp.dot(a, w1_ref[t], preferred_element_type=jnp.float32)
        # stats from the f32 accumulator; only the stored copy narrows to bf16
        st1_ref[0, 0:1, :] = jnp.sum(acc, axis=0, keepdims=True)
        st1_ref[0, 1:2, :] = jnp.sum(acc * acc, axis=0, keepdims=True)
        y1_ref[0] = acc.reshape(ho, wo, cp).astype(y1_ref.dtype)
        if has_ds:
            rc, cc = center
            xs = src_ref[0, rc:rc + ho, cc:cc + wo, :].reshape(m, cinp)
            yd = jnp.dot(xs, wd_ref[...], preferred_element_type=jnp.float32)
            std_ref[0, 0:1, :] = jnp.sum(yd, axis=0, keepdims=True)
            std_ref[0, 1:2, :] = jnp.sum(yd * yd, axis=0, keepdims=True)

    return kernel


def _make_conv2_kernel(ho, wo, cp):
    """Pass B: fused BN1+ReLU on the loaded y1 tile (f32 math), zero-padded into
    a VMEM scratch, then conv2 implicit GEMM -> y2 (bf16) + BN2 partial stats."""
    m = ho * wo
    taps = [(dy, dx) for dy in range(3) for dx in range(3)]

    def kernel(y1_ref, bn1_ref, w2_ref, y2_ref, st2_ref, pad_ref):
        @pl.when(pl.program_id(0) == 0)
        def _zero():                      # border stays zero on later steps
            pad_ref[...] = jnp.zeros_like(pad_ref)

        a1 = jnp.maximum(
            y1_ref[0].astype(jnp.float32) * bn1_ref[0:1, :] + bn1_ref[1:2, :],
            0.0)
        pad_ref[1:1 + ho, 1:1 + wo, :] = a1.astype(pad_ref.dtype)

        acc = jnp.zeros((m, cp), jnp.float32)
        for t, (r0, c0) in enumerate(taps):
            a = pad_ref[r0:r0 + ho, c0:c0 + wo, :].reshape(m, cp)
            acc = acc + jnp.dot(a, w2_ref[t], preferred_element_type=jnp.float32)
        st2_ref[0, 0:1, :] = jnp.sum(acc, axis=0, keepdims=True)
        st2_ref[0, 1:2, :] = jnp.sum(acc * acc, axis=0, keepdims=True)
        y2_ref[0] = acc.reshape(ho, wo, cp).astype(y2_ref.dtype)

    return kernel


def _make_final_kernel(center, ho, wo, cinp, cp):
    """Pass C: out = relu(bn2(y2) + shortcut).  The shortcut is recomputed as a
    tiny resident 1x1 GEMM (real downsample weight, or an exact identity weight
    with scale=1/shift=0), so no yd tensor is ever written to HBM."""
    m = ho * wo
    rc, cc = center

    def kernel(y2_ref, src_ref, wd_ref, bn_ref, out_ref):
        res = y2_ref[0].astype(jnp.float32) * bn_ref[0:1, :] + bn_ref[1:2, :]
        xs = src_ref[0, rc:rc + ho, cc:cc + wo, :].reshape(m, cinp)
        sc = jnp.dot(xs, wd_ref[...], preferred_element_type=jnp.float32)
        sc = sc * bn_ref[2:3, :] + bn_ref[3:4, :]
        out = jnp.maximum(res + sc.reshape(ho, wo, cp), 0.0)
        out_ref[0] = out.astype(out_ref.dtype)

    return kernel


# --------------------------------------------------------------------------- #
# pallas_call wrappers
# --------------------------------------------------------------------------- #
def _conv1_pass(src, w1, wd, taps, center, ho, wo, cinp, cp, has_ds):
    n, hsrc, wsrc, _ = src.shape
    kern = _make_conv1_kernel(taps, center, ho, wo, cinp, cp, has_ds)
    in_specs = [pl.BlockSpec((1, hsrc, wsrc, cinp), lambda i: (i, 0, 0, 0)),
                pl.BlockSpec((9, cinp, cp), lambda i: (0, 0, 0))]   # resident
    ops = [src, w1]
    out_shape = [jax.ShapeDtypeStruct((n, ho, wo, cp), jnp.bfloat16),
                 jax.ShapeDtypeStruct((n, 2, cp), jnp.float32)]
    out_specs = [pl.BlockSpec((1, ho, wo, cp), lambda i: (i, 0, 0, 0)),
                 pl.BlockSpec((1, 2, cp), lambda i: (i, 0, 0))]
    if has_ds:
        in_specs.append(pl.BlockSpec((cinp, cp), lambda i: (0, 0)))  # resident
        ops.append(wd)
        out_shape.append(jax.ShapeDtypeStruct((n, 2, cp), jnp.float32))
        out_specs.append(pl.BlockSpec((1, 2, cp), lambda i: (i, 0, 0)))
    return pl.pallas_call(
        kern, grid=(n,), in_specs=in_specs,
        out_specs=tuple(out_specs), out_shape=tuple(out_shape),
        compiler_params=_CPARAMS)(*ops)


def _conv2_pass(y1, bn1, w2, ho, wo, cp):
    n = y1.shape[0]
    kern = _make_conv2_kernel(ho, wo, cp)
    return pl.pallas_call(
        kern, grid=(n,),
        in_specs=[pl.BlockSpec((1, ho, wo, cp), lambda i: (i, 0, 0, 0)),
                  pl.BlockSpec((2, cp), lambda i: (0, 0)),           # resident
                  pl.BlockSpec((9, cp, cp), lambda i: (0, 0, 0))],   # resident
        out_specs=(pl.BlockSpec((1, ho, wo, cp), lambda i: (i, 0, 0, 0)),
                   pl.BlockSpec((1, 2, cp), lambda i: (i, 0, 0))),
        out_shape=(jax.ShapeDtypeStruct((n, ho, wo, cp), jnp.bfloat16),
                   jax.ShapeDtypeStruct((n, 2, cp), jnp.float32)),
        scratch_shapes=[pltpu.VMEM((ho + 2, wo + 2, cp), jnp.bfloat16)],
        compiler_params=_CPARAMS)(y1, bn1, w2)


def _final_pass(y2, src, wd, bn, center, ho, wo, cinp, cp):
    n, hsrc, wsrc, _ = src.shape
    kern = _make_final_kernel(center, ho, wo, cinp, cp)
    return pl.pallas_call(
        kern, grid=(n,),
        in_specs=[pl.BlockSpec((1, ho, wo, cp), lambda i: (i, 0, 0, 0)),
                  pl.BlockSpec((1, hsrc, wsrc, cinp), lambda i: (i, 0, 0, 0)),
                  pl.BlockSpec((cinp, cp), lambda i: (0, 0)),        # resident
                  pl.BlockSpec((4, cp), lambda i: (0, 0))],          # resident
        out_specs=pl.BlockSpec((1, ho, wo, cp), lambda i: (i, 0, 0, 0)),
        out_shape=jax.ShapeDtypeStruct((n, ho, wo, cp), jnp.float32),
        compiler_params=_CPARAMS)(y2, src, wd, bn)


def _bn_scale_shift(stats, m_total, gamma, beta, cp):
    """Fold per-image partial sums + gamma/beta into one per-channel FMA."""
    tot = jnp.sum(stats.astype(jnp.float32), axis=0)          # (2, cp)
    mean = tot[0] / m_total
    var = jnp.maximum(tot[1] / m_total - mean * mean, 0.0)     # biased (BN train)
    g = jnp.pad(gamma.astype(jnp.float32), (0, cp - gamma.shape[0]))
    b = jnp.pad(beta.astype(jnp.float32), (0, cp - beta.shape[0]))
    scale = g * jax.lax.rsqrt(var + EPS)
    shift = b - mean * scale
    return scale.reshape(1, cp), shift.reshape(1, cp)


# --------------------------------------------------------------------------- #
# BasicBlock forward
# --------------------------------------------------------------------------- #
@functools.partial(jax.jit, static_argnames=("stride",))
def basic_block_forward(x_nchw, params, stride):
    """Pallas implementation of BasicBlock.forward.  x: NCHW -> NCHW output."""
    x = jnp.transpose(x_nchw, (0, 2, 3, 1))                   # NHWC
    n, h, w, cin = x.shape
    cout = params["w1"].shape[0]
    has_ds = (cin != cout) or (stride != 1)

    cp = _round_up(cout, LANE)
    cinp = _round_up(cin, KPAD)

    # cast to bf16 BEFORE building the padded source (halves the prep bytes)
    xb = x.astype(jnp.bfloat16)
    if cinp != cin:
        xb = jnp.pad(xb, ((0, 0), (0, 0), (0, 0), (0, cinp - cin)))
    src1, taps1, center1, ho, wo = _conv3x3_source(xb, stride)
    m_total = n * ho * wo

    # ---- pass A: conv1 (+ shortcut-conv stats when downsampling) -----------
    w1 = _fold_w3x3(params["w1"], cinp, cp)
    if has_ds:
        wd = _fold_w1x1(params["wd"], cinp, cp)
        y1, st1, std = _conv1_pass(src1, w1, wd, taps1, center1,
                                   ho, wo, cinp, cp, True)
        scd, shd = _bn_scale_shift(std, m_total, params["gd"], params["bd"], cp)
    else:
        # identity shortcut expressed as an exact identity 1x1 weight with
        # scale=1 / shift=0 (tiny, VMEM-resident; no dummy HBM tensors)
        wd = jnp.pad(jnp.eye(cin, dtype=jnp.float32),
                     ((0, cinp - cin), (0, cp - cin))).astype(jnp.bfloat16)
        y1, st1 = _conv1_pass(src1, w1, None, taps1, center1,
                              ho, wo, cinp, cp, False)
        scd = jnp.ones((1, cp), jnp.float32)
        shd = jnp.zeros((1, cp), jnp.float32)
    sc1, sh1 = _bn_scale_shift(st1, m_total, params["g1"], params["b1"], cp)
    bn1 = jnp.concatenate([sc1, sh1], axis=0)                  # (2, cp)

    # ---- pass B: fused BN1+ReLU -> conv2 (+ BN2 stats) ----------------------
    w2 = _fold_w3x3(params["w2"], cp, cp)
    y2, st2 = _conv2_pass(y1, bn1, w2, ho, wo, cp)
    sc2, sh2 = _bn_scale_shift(st2, m_total, params["g2"], params["b2"], cp)
    bn2 = jnp.concatenate([sc2, sh2, scd, shd], axis=0)        # (4, cp)

    # ---- pass C: relu(bn2(conv2) + shortcut) --------------------------------
    out = _final_pass(y2, src1, wd, bn2, center1, ho, wo, cinp, cp)
    out = out[:, :, :, :cout]
    return jnp.transpose(out, (0, 3, 1, 2))                    # -> NCHW


# --------------------------------------------------------------------------- #
# Pure-JAX reference (GEMM operands cast to bf16 to mirror the kernels)
# --------------------------------------------------------------------------- #
def _ref_basic_block(x_nchw, p, stride):
    x = jnp.transpose(x_nchw, (0, 2, 3, 1)).astype(jnp.float32)
    cin = x.shape[-1]
    cout = p["w1"].shape[0]
    has_ds = (cin != cout) or (stride != 1)

    def conv(t, w_oihw, s, pad):
        w_hwio = jnp.transpose(w_oihw, (2, 3, 1, 0)).astype(jnp.bfloat16)
        return jax.lax.conv_general_dilated(
            t.astype(jnp.bfloat16), w_hwio, (s, s), ((pad, pad), (pad, pad)),
            dimension_numbers=("NHWC", "HWIO", "NHWC"),
            preferred_element_type=jnp.float32)

    def bn(t, g, b):
        mu = jnp.mean(t, axis=(0, 1, 2))
        var = jnp.var(t, axis=(0, 1, 2))
        return (t - mu) * jax.lax.rsqrt(var + EPS) * g + b

    r = jax.nn.relu(bn(conv(x, p["w1"], stride, 1), p["g1"], p["b1"]))
    r = bn(conv(r, p["w2"], 1, 1), p["g2"], p["b2"])
    sc = bn(conv(x, p["wd"], stride, 0), p["gd"], p["bd"]) if has_ds else x
    return jnp.transpose(jax.nn.relu(sc + r), (0, 3, 1, 2))


def _make_params(key, cin, cout):
    ks = jax.random.split(key, 9)
    return {
        "w1": 0.1 * jax.random.normal(ks[0], (cout, cin, 3, 3), jnp.float32),
        "g1": 1.0 + 0.1 * jax.random.normal(ks[1], (cout,), jnp.float32),
        "b1": 0.1 * jax.random.normal(ks[2], (cout,), jnp.float32),
        "w2": 0.1 * jax.random.normal(ks[3], (cout, cout, 3, 3), jnp.float32),
        "g2": 1.0 + 0.1 * jax.random.normal(ks[4], (cout,), jnp.float32),
        "b2": 0.1 * jax.random.normal(ks[5], (cout,), jnp.float32),
        "wd": 0.1 * jax.random.normal(ks[6], (cout, cin, 1, 1), jnp.float32),
        "gd": 1.0 + 0.1 * jax.random.normal(ks[7], (cout,), jnp.float32),
        "bd": 0.1 * jax.random.normal(ks[8], (cout,), jnp.float32),
    }


if __name__ == "__main__":
    root = jax.random.PRNGKey(0)
    k_p1, k_x1, k_p2, k_x2 = jax.random.split(root, 4)

    # Config 1: downsample path (in_chan != out_chan, stride=2)
    params1 = _make_params(k_p1, cin=4, cout=8)
    x1 = jax.random.normal(k_x1, (2, 4, 16, 16), jnp.float32)        # NCHW
    out1 = jax.block_until_ready(basic_block_forward(x1, params1, stride=2))
    ref1 = _ref_basic_block(x1, params1, stride=2)
    assert out1.shape == (2, 8, 8, 8)
    err1 = float(jnp.max(jnp.abs(out1 - ref1)))
    # bf16 operands + bf16 intermediates -> bf16-level tolerance
    assert bool(jnp.allclose(out1, ref1, atol=3e-2, rtol=3e-2)), (
        f"downsample-path mismatch, max err {err1}")

    # Config 2: identity shortcut path (in_chan == out_chan, stride=1)
    params2 = _make_params(k_p2, cin=8, cout=8)
    x2 = jax.random.normal(k_x2, (2, 8, 8, 8), jnp.float32)          # NCHW
    out2 = jax.block_until_ready(basic_block_forward(x2, params2, stride=1))
    ref2 = _ref_basic_block(x2, params2, stride=1)
    assert out2.shape == (2, 8, 8, 8)
    err2 = float(jnp.max(jnp.abs(out2 - ref2)))
    assert bool(jnp.allclose(out2, ref2, atol=3e-2, rtol=3e-2)), (
        f"identity-path mismatch, max err {err2}")

    print("KERNEL_OK")
</pallas_src>

<mosaic_0001>
module attributes {stable_mosaic.version = 11 : i64} {
  func.func @kernel(%arg0: i32, %arg1: memref<1x36x9x16xbf16, #tpu.memory_space<vmem>>, %arg2: memref<9x16x128xbf16, #tpu.memory_space<vmem>>, %arg3: memref<16x128xbf16, #tpu.memory_space<vmem>>, %arg4: memref<1x8x8x128xbf16, #tpu.memory_space<vmem>>, %arg5: memref<1x2x128xf32, #tpu.memory_space<vmem>>, %arg6: memref<1x2x128xf32, #tpu.memory_space<vmem>>) attributes {dimension_semantics = [#tpu.dimension_semantics<parallel>], iteration_bounds = array<i64: 2>, scalar_prefetch = 0 : i64, scratch_operands = 0 : i64, tpu.core_type = #tpu.core_type<tc>, window_params = [{transform_indices = @transform_0, window_bounds = array<i64: 1, 36, 9, 16>}, {pipeline_mode = #tpu.pipeline_mode<synchronous>, transform_indices = @transform_1, window_bounds = array<i64: 9, 16, 128>}, {pipeline_mode = #tpu.pipeline_mode<synchronous>, transform_indices = @transform_2, window_bounds = array<i64: 16, 128>}, {transform_indices = @transform_3, window_bounds = array<i64: 1, 8, 8, 128>}, {transform_indices = @transform_4, window_bounds = array<i64: 1, 2, 128>}, {transform_indices = @transform_5, window_bounds = array<i64: 1, 2, 128>}]} {
    %cst = arith.constant 0.000000e+00 : f32
    %0 = vector.broadcast %cst : f32 to vector<64x128xf32>
    %c0 = arith.constant 0 : index
    %c0_0 = arith.constant 0 : index
    %c0_1 = arith.constant 0 : index
    %c0_2 = arith.constant 0 : index
    %1 = vector.load %arg1[%c0, %c0_0, %c0_1, %c0_2] : memref<1x36x9x16xbf16, #tpu.memory_space<vmem>>, vector<1x8x8x16xbf16>
    %2 = vector.shape_cast %1 : vector<1x8x8x16xbf16> to vector<8x8x16xbf16>
    %3 = vector.shape_cast %2 : vector<8x8x16xbf16> to vector<64x16xbf16>
    %c0_3 = arith.constant 0 : index
    %c0_4 = arith.constant 0 : index
    %c0_5 = arith.constant 0 : index
    %4 = vector.load %arg2[%c0_3, %c0_4, %c0_5] : memref<9x16x128xbf16, #tpu.memory_space<vmem>>, vector<1x16x128xbf16>
    %5 = vector.shape_cast %4 : vector<1x16x128xbf16> to vector<16x128xbf16>
    %cst_6 = arith.constant dense<0.000000e+00> : vector<64x128xf32>
    %6 = tpu.matmul %3, %5, %cst_6 {dimension_numbers = #tpu.dot_dimension_numbers<[1], [0], [0], [1], [0, 0, 1, 1], [], []>} : vector<64x16xbf16>, vector<16x128xbf16>, vector<64x128xf32> -> vector<64x128xf32>
    %7 = arith.addf %0, %6 : vector<64x128xf32>
    %c0_7 = arith.constant 0 : index
    %c9 = arith.constant 9 : index
    %c0_8 = arith.constant 0 : index
    %c0_9 = arith.constant 0 : index
    %8 = vector.load %arg1[%c0_7, %c9, %c0_8, %c0_9] : memref<1x36x9x16xbf16, #tpu.memory_space<vmem>>, vector<1x8x8x16xbf16>
    %9 = vector.shape_cast %8 : vector<1x8x8x16xbf16> to vector<8x8x16xbf16>
    %10 = vector.shape_cast %9 : vector<8x8x16xbf16> to vector<64x16xbf16>
    %c1 = arith.constant 1 : index
    %c0_10 = arith.constant 0 : index
    %c0_11 = arith.constant 0 : index
    %11 = vector.load %arg2[%c1, %c0_10, %c0_11] : memref<9x16x128xbf16, #tpu.memory_space<vmem>>, vector<1x16x128xbf16>
    %12 = vector.shape_cast %11 : vector<1x16x128xbf16> to vector<16x128xbf16>
    %cst_12 = arith.constant dense<0.000000e+00> : vector<64x128xf32>
    %13 = tpu.matmul %10, %12, %cst_12 {dimension_numbers = #tpu.dot_dimension_numbers<[1], [0], [0], [1], [0, 0, 1, 1], [], []>} : vector<64x16xbf16>, vector<16x128xbf16>, vector<64x128xf32> -> vector<64x128xf32>
    %14 = arith.addf %7, %13 : vector<64x128xf32>
    %c0_13 = arith.constant 0 : index
    %c0_14 = arith.constant 0 : index
    %c1_15 = arith.constant 1 : index
    %c0_16 = arith.constant 0 : index
    %15 = vector.load %arg1[%c0_13, %c0_14, %c1_15, %c0_16] : memref<1x36x9x16xbf16, #tpu.memory_space<vmem>>, vector<1x8x8x16xbf16>
    %16 = vector.shape_cast %15 : vector<1x8x8x16xbf16> to vector<8x8x16xbf16>
    %17 = vector.shape_cast %16 : vector<8x8x16xbf16> to vector<64x16xbf16>
    %c2 = arith.constant 2 : index
    %c0_17 = arith.constant 0 : index
    %c0_18 = arith.constant 0 : index
    %18 = vector.load %arg2[%c2, %c0_17, %c0_18] : memref<9x16x128xbf16, #tpu.memory_space<vmem>>, vector<1x16x128xbf16>
    %19 = vector.shape_cast %18 : vector<1x16x128xbf16> to vector<16x128xbf16>
    %cst_19 = arith.constant dense<0.000000e+00> : vector<64x128xf32>
    %20 = tpu.matmul %17, %19, %cst_19 {dimension_numbers = #tpu.dot_dimension_numbers<[1], [0], [0], [1], [0, 0, 1, 1], [], []>} : vector<64x16xbf16>, vector<16x128xbf16>, vector<64x128xf32> -> vector<64x128xf32>
    %21 = arith.addf %14, %20 : vector<64x128xf32>
    %c0_20 = arith.constant 0 : index
    %c18 = arith.constant 18 : index
    %c0_21 = arith.constant 0 : index
    %c0_22 = arith.constant 0 : index
    %22 = vector.load %arg1[%c0_20, %c18, %c0_21, %c0_22] : memref<1x36x9x16xbf16, #tpu.memory_space<vmem>>, vector<1x8x8x16xbf16>
    %23 = vector.shape_cast %22 : vector<1x8x8x16xbf16> to vector<8x8x16xbf16>
    %24 = vector.shape_cast %23 : vector<8x8x16xbf16> to vector<64x16xbf16>
    %c3 = arith.constant 3 : index
    %c0_23 = arith.constant 0 : index
    %c0_24 = arith.constant 0 : index
    %25 = vector.load %arg2[%c3, %c0_23, %c0_24] : memref<9x16x128xbf16, #tpu.memory_space<vmem>>, vector<1x16x128xbf16>
    %26 = vector.shape_cast %25 : vector<1x16x128xbf16> to vector<16x128xbf16>
    %cst_25 = arith.constant dense<0.000000e+00> : vector<64x128xf32>
    %27 = tpu.matmul %24, %26, %cst_25 {dimension_numbers = #tpu.dot_dimension_numbers<[1], [0], [0], [1], [0, 0, 1, 1], [], []>} : vector<64x16xbf16>, vector<16x128xbf16>, vector<64x128xf32> -> vector<64x128xf32>
    %28 = arith.addf %21, %27 : vector<64x128xf32>
    %c0_26 = arith.constant 0 : index
    %c27 = arith.constant 27 : index
    %c0_27 = arith.constant 0 : index
    %c0_28 = arith.constant 0 : index
    %29 = vector.load %arg1[%c0_26, %c27, %c0_27, %c0_28] : memref<1x36x9x16xbf16, #tpu.memory_space<vmem>>, vector<1x8x8x16xbf16>
    %30 = vector.shape_cast %29 : vector<1x8x8x16xbf16> to vector<8x8x16xbf16>
    %31 = vector.shape_cast %30 : vector<8x8x16xbf16> to vector<64x16xbf16>
    %c4 = arith.constant 4 : index
    %c0_29 = arith.constant 0 : index
    %c0_30 = arith.constant 0 : index
    %32 = vector.load %arg2[%c4, %c0_29, %c0_30] : memref<9x16x128xbf16, #tpu.memory_space<vmem>>, vector<1x16x128xbf16>
    %33 = vector.shape_cast %32 : vector<1x16x128xbf16> to vector<16x128xbf16>
    %cst_31 = arith.constant dense<0.000000e+00> : vector<64x128xf32>
    %34 = tpu.matmul %31, %33, %cst_31 {dimension_numbers = #tpu.dot_dimension_numbers<[1], [0], [0], [1], [0, 0, 1, 1], [], []>} : vector<64x16xbf16>, vector<16x128xbf16>, vector<64x128xf32> -> vector<64x128xf32>
    %35 = arith.addf %28, %34 : vector<64x128xf32>
    %c0_32 = arith.constant 0 : index
    %c18_33 = arith.constant 18 : index
    %c1_34 = arith.constant 1 : index
    %c0_35 = arith.constant 0 : index
    %36 = vector.load %arg1[%c0_32, %c18_33, %c1_34, %c0_35] : memref<1x36x9x16xbf16, #tpu.memory_space<vmem>>, vector<1x8x8x16xbf16>
    %37 = vector.shape_cast %36 : vector<1x8x8x16xbf16> to vector<8x8x16xbf16>
    %38 = vector.shape_cast %37 : vector<8x8x16xbf16> to vector<64x16xbf16>
    %c5 = arith.constant 5 : index
    %c0_36 = arith.constant 0 : index
    %c0_37 = arith.constant 0 : index
    %39 = vector.load %arg2[%c5, %c0_36, %c0_37] : memref<9x16x128xbf16, #tpu.memory_space<vmem>>, vector<1x16x128xbf16>
    %40 = vector.shape_cast %39 : vector<1x16x128xbf16> to vector<16x128xbf16>
    %cst_38 = arith.constant dense<0.000000e+00> : vector<64x128xf32>
    %41 = tpu.matmul %38, %40, %cst_38 {dimension_numbers = #tpu.dot_dimension_numbers<[1], [0], [0], [1], [0, 0, 1, 1], [], []>} : vector<64x16xbf16>, vector<16x128xbf16>, vector<64x128xf32> -> vector<64x128xf32>
    %42 = arith.addf %35, %41 : vector<64x128xf32>
    %c0_39 = arith.constant 0 : index
    %c1_40 = arith.constant 1 : index
    %c0_41 = arith.constant 0 : index
    %c0_42 = arith.constant 0 : index
    %43 = vector.load %arg1[%c0_39, %c1_40, %c0_41, %c0_42] : memref<1x36x9x16xbf16, #tpu.memory_space<vmem>>, vector<1x8x8x16xbf16>
    %44 = vector.shape_cast %43 : vector<1x8x8x16xbf16> to vector<8x8x16xbf16>
    %45 = vector.shape_cast %44 : vector<8x8x16xbf16> to vector<64x16xbf16>
    %c6 = arith.constant 6 : index
    %c0_43 = arith.constant 0 : index
    %c0_44 = arith.constant 0 : index
    %46 = vector.load %arg2[%c6, %c0_43, %c0_44] : memref<9x16x128xbf16, #tpu.memory_space<vmem>>, vector<1x16x128xbf16>
    %47 = vector.shape_cast %46 : vector<1x16x128xbf16> to vector<16x128xbf16>
    %cst_45 = arith.constant dense<0.000000e+00> : vector<64x128xf32>
    %48 = tpu.matmul %45, %47, %cst_45 {dimension_numbers = #tpu.dot_dimension_numbers<[1], [0], [0], [1], [0, 0, 1, 1], [], []>} : vector<64x16xbf16>, vector<16x128xbf16>, vector<64x128xf32> -> vector<64x128xf32>
    %49 = arith.addf %42, %48 : vector<64x128xf32>
    %c0_46 = arith.constant 0 : index
    %c10 = arith.constant 10 : index
    %c0_47 = arith.constant 0 : index
    %c0_48 = arith.constant 0 : index
    %50 = vector.load %arg1[%c0_46, %c10, %c0_47, %c0_48] : memref<1x36x9x16xbf16, #tpu.memory_space<vmem>>, vector<1x8x8x16xbf16>
    %51 = vector.shape_cast %50 : vector<1x8x8x16xbf16> to vector<8x8x16xbf16>
    %52 = vector.shape_cast %51 : vector<8x8x16xbf16> to vector<64x16xbf16>
    %c7 = arith.constant 7 : index
    %c0_49 = arith.constant 0 : index
    %c0_50 = arith.constant 0 : index
    %53 = vector.load %arg2[%c7, %c0_49, %c0_50] : memref<9x16x128xbf16, #tpu.memory_space<vmem>>, vector<1x16x128xbf16>
    %54 = vector.shape_cast %53 : vector<1x16x128xbf16> to vector<16x128xbf16>
    %cst_51 = arith.constant dense<0.000000e+00> : vector<64x128xf32>
    %55 = tpu.matmul %52, %54, %cst_51 {dimension_numbers = #tpu.dot_dimension_numbers<[1], [0], [0], [1], [0, 0, 1, 1], [], []>} : vector<64x16xbf16>, vector<16x128xbf16>, vector<64x128xf32> -> vector<64x128xf32>
    %56 = arith.addf %49, %55 : vector<64x128xf32>
    %c0_52 = arith.constant 0 : index
    %c1_53 = arith.constant 1 : index
    %c1_54 = arith.constant 1 : index
    %c0_55 = arith.constant 0 : index
    %57 = vector.load %arg1[%c0_52, %c1_53, %c1_54, %c0_55] : memref<1x36x9x16xbf16, #tpu.memory_space<vmem>>, vector<1x8x8x16xbf16>
    %58 = vector.shape_cast %57 : vector<1x8x8x16xbf16> to vector<8x8x16xbf16>
    %59 = vector.shape_cast %58 : vector<8x8x16xbf16> to vector<64x16xbf16>
    %c8 = arith.constant 8 : index
    %c0_56 = arith.constant 0 : index
    %c0_57 = arith.constant 0 : index
    %60 = vector.load %arg2[%c8, %c0_56, %c0_57] : memref<9x16x128xbf16, #tpu.memory_space<vmem>>, vector<1x16x128xbf16>
    %61 = vector.shape_cast %60 : vector<1x16x128xbf16> to vector<16x128xbf16>
    %cst_58 = arith.constant dense<0.000000e+00> : vector<64x128xf32>
    %62 = tpu.matmul %59, %61, %cst_58 {dimension_numbers = #tpu.dot_dimension_numbers<[1], [0], [0], [1], [0, 0, 1, 1], [], []>} : vector<64x16xbf16>, vector<16x128xbf16>, vector<64x128xf32> -> vector<64x128xf32>
    %63 = arith.addf %56, %62 : vector<64x128xf32>
    %cst_59 = arith.constant dense<0.000000e+00> : vector<128xf32>
    %64 = vector.multi_reduction <add>, %63, %cst_59 [0] : vector<64x128xf32> to vector<128xf32>
    %65 = vector.shape_cast %64 : vector<128xf32> to vector<1x128xf32>
    %c0_60 = arith.constant 0 : index
    %c0_61 = arith.constant 0 : index
    %c0_62 = arith.constant 0 : index
    %66 = vector.load %arg5[%c0_60, %c0_61, %c0_62] : memref<1x2x128xf32, #tpu.memory_space<vmem>>, vector<1x1x128xf32>
    %67 = vector.shape_cast %66 : vector<1x1x128xf32> to vector<1x128xf32>
    %68 = vector.shape_cast %65 : vector<1x128xf32> to vector<1x1x128xf32>
    tpu.vector_store %arg5[%c0_60, %c0_61, %c0_62], %68 {strides = array<i32>} : memref<1x2x128xf32, #tpu.memory_space<vmem>>, vector<1x1x128xf32>,
    %69 = arith.mulf %63, %63 : vector<64x128xf32>
    %cst_63 = arith.constant dense<0.000000e+00> : vector<128xf32>
    %70 = vector.multi_reduction <add>, %69, %cst_63 [0] : vector<64x128xf32> to vector<128xf32>
    %71 = vector.shape_cast %70 : vector<128xf32> to vector<1x128xf32>
    %c0_64 = arith.constant 0 : index
    %c1_65 = arith.constant 1 : index
    %c0_66 = arith.constant 0 : index
    %72 = vector.load %arg5[%c0_64, %c1_65, %c0_66] : memref<1x2x128xf32, #tpu.memory_space<vmem>>, vector<1x1x128xf32>
    %73 = vector.shape_cast %72 : vector<1x1x128xf32> to vector<1x128xf32>
    %74 = vector.shape_cast %71 : vector<1x128xf32> to vector<1x1x128xf32>
    tpu.vector_store %arg5[%c0_64, %c1_65, %c0_66], %74 {strides = array<i32>} : memref<1x2x128xf32, #tpu.memory_space<vmem>>, vector<1x1x128xf32>,
    %75 = vector.shape_cast %63 : vector<64x128xf32> to vector<8x8x128xf32>
    %76 = arith.truncf %75 : vector<8x8x128xf32> to vector<8x8x128xbf16>
    %c0_67 = arith.constant 0 : index
    %c0_68 = arith.constant 0 : index
    %c0_69 = arith.constant 0 : index
    %c0_70 = arith.constant 0 : index
    %77 = vector.load %arg4[%c0_67, %c0_68, %c0_69, %c0_70] : memref<1x8x8x128xbf16, #tpu.memory_space<vmem>>, vector<1x8x8x128xbf16>
    %78 = vector.shape_cast %77 : vector<1x8x8x128xbf16> to vector<8x8x128xbf16>
    %79 = vector.shape_cast %76 : vector<8x8x128xbf16> to vector<1x8x8x128xbf16>
    tpu.vector_store %arg4[%c0_67, %c0_68, %c0_69, %c0_70], %79 {strides = array<i32>} : memref<1x8x8x128xbf16, #tpu.memory_space<vmem>>, vector<1x8x8x128xbf16>,
    %c0_71 = arith.constant 0 : index
    %c27_72 = arith.constant 27 : index
    %c0_73 = arith.constant 0 : index
    %c0_74 = arith.constant 0 : index
    %80 = vector.load %arg1[%c0_71, %c27_72, %c0_73, %c0_74] : memref<1x36x9x16xbf16, #tpu.memory_space<vmem>>, vector<1x8x8x16xbf16>
    %81 = vector.shape_cast %80 : vector<1x8x8x16xbf16> to vector<8x8x16xbf16>
    %82 = vector.shape_cast %81 : vector<8x8x16xbf16> to vector<64x16xbf16>
    %c0_75 = arith.constant 0 : index
    %c0_76 = arith.constant 0 : index
    %83 = vector.load %arg3[%c0_75, %c0_76] : memref<16x128xbf16, #tpu.memory_space<vmem>>, vector<16x128xbf16>
    %cst_77 = arith.constant dense<0.000000e+00> : vector<64x128xf32>
    %84 = tpu.matmul %82, %83, %cst_77 {dimension_numbers = #tpu.dot_dimension_numbers<[1], [0], [0], [1], [0, 0, 1, 1], [], []>} : vector<64x16xbf16>, vector<16x128xbf16>, vector<64x128xf32> -> vector<64x128xf32>
    %cst_78 = arith.constant dense<0.000000e+00> : vector<128xf32>
    %85 = vector.multi_reduction <add>, %84, %cst_78 [0] : vector<64x128xf32> to vector<128xf32>
    %86 = vector.shape_cast %85 : vector<128xf32> to vector<1x128xf32>
    %c0_79 = arith.constant 0 : index
    %c0_80 = arith.constant 0 : index
    %c0_81 = arith.constant 0 : index
    %87 = vector.load %arg6[%c0_79, %c0_80, %c0_81] : memref<1x2x128xf32, #tpu.memory_space<vmem>>, vector<1x1x128xf32>
    %88 = vector.shape_cast %87 : vector<1x1x128xf32> to vector<1x128xf32>
    %89 = vector.shape_cast %86 : vector<1x128xf32> to vector<1x1x128xf32>
    tpu.vector_store %arg6[%c0_79, %c0_80, %c0_81], %89 {strides = array<i32>} : memref<1x2x128xf32, #tpu.memory_space<vmem>>, vector<1x1x128xf32>,
    %90 = arith.mulf %84, %84 : vector<64x128xf32>
    %cst_82 = arith.constant dense<0.000000e+00> : vector<128xf32>
    %91 = vector.multi_reduction <add>, %90, %cst_82 [0] : vector<64x128xf32> to vector<128xf32>
    %92 = vector.shape_cast %91 : vector<128xf32> to vector<1x128xf32>
    %c0_83 = arith.constant 0 : index
    %c1_84 = arith.constant 1 : index
    %c0_85 = arith.constant 0 : index
    %93 = vector.load %arg6[%c0_83, %c1_84, %c0_85] : memref<1x2x128xf32, #tpu.memory_space<vmem>>, vector<1x1x128xf32>
    %94 = vector.shape_cast %93 : vector<1x1x128xf32> to vector<1x128xf32>
    %95 = vector.shape_cast %92 : vector<1x128xf32> to vector<1x1x128xf32>
    tpu.vector_store %arg6[%c0_83, %c1_84, %c0_85], %95 {strides = array<i32>} : memref<1x2x128xf32, #tpu.memory_space<vmem>>, vector<1x1x128xf32>,
    return
  }
  func.func @transform_0(%arg0: i32) -> (i32, i32, i32, i32) {
    %c0_i32 = arith.constant 0 : i32
    %c0_i32_0 = arith.constant 0 : i32
    %c0_i32_1 = arith.constant 0 : i32
    %c0_i32_2 = arith.constant 0 : i32
    return %arg0, %c0_i32, %c0_i32_0, %c0_i32_1 : i32, i32, i32, i32
  }
  func.func @transform_1(%arg0: i32) -> (i32, i32, i32) {
    %c0_i32 = arith.constant 0 : i32
    %c0_i32_0 = arith.constant 0 : i32
    %c0_i32_1 = arith.constant 0 : i32
    %c0_i32_2 = arith.constant 0 : i32
    return %c0_i32, %c0_i32_0, %c0_i32_1 : i32, i32, i32
  }
  func.func @transform_2(%arg0: i32) -> (i32, i32) {
    %c0_i32 = arith.constant 0 : i32
    %c0_i32_0 = arith.constant 0 : i32
    %c0_i32_1 = arith.constant 0 : i32
    return %c0_i32, %c0_i32_0 : i32, i32
  }
  func.func @transform_3(%arg0: i32) -> (i32, i32, i32, i32) {
    %c0_i32 = arith.constant 0 : i32
    %c0_i32_0 = arith.constant 0 : i32
    %c0_i32_1 = arith.constant 0 : i32
    %c0_i32_2 = arith.constant 0 : i32
    return %arg0, %c0_i32, %c0_i32_0, %c0_i32_1 : i32, i32, i32, i32
  }
  func.func @transform_4(%arg0: i32) -> (i32, i32, i32) {
    %c0_i32 = arith.constant 0 : i32
    %c0_i32_0 = arith.constant 0 : i32
    %c0_i32_1 = arith.constant 0 : i32
    return %arg0, %c0_i32, %c0_i32_0 : i32, i32, i32
  }
  func.func @transform_5(%arg0: i32) -> (i32, i32, i32) {
    %c0_i32 = arith.constant 0 : i32
    %c0_i32_0 = arith.constant 0 : i32
    %c0_i32_1 = arith.constant 0 : i32
    return %arg0, %c0_i32, %c0_i32_0 : i32, i32, i32
  }
}

module attributes {stable_mosaic.version = 11 : i64} {
  func.func @kernel(%arg0: i32, %arg1: memref<1x8x8x128xbf16, #tpu.memory_space<vmem>>, %arg2: memref<2x128xf32, #tpu.memory_space<vmem>>, %arg3: memref<9x128x128xbf16, #tpu.memory_space<vmem>>, %arg4: memref<1x8x8x128xbf16, #tpu.memory_space<vmem>>, %arg5: memref<1x2x128xf32, #tpu.memory_space<vmem>>, %arg6: memref<10x10x128xbf16, #tpu.memory_space<vmem>>) attributes {dimension_semantics = [#tpu.dimension_semantics<parallel>], iteration_bounds = array<i64: 2>, scalar_prefetch = 0 : i64, scratch_operands = 1 : i64, tpu.core_type = #tpu.core_type<tc>, window_params = [{transform_indices = @transform_0, window_bounds = array<i64: 1, 8, 8, 128>}, {pipeline_mode = #tpu.pipeline_mode<synchronous>, transform_indices = @transform_1, window_bounds = array<i64: 2, 128>}, {pipeline_mode = #tpu.pipeline_mode<synchronous>, transform_indices = @transform_2, window_bounds = array<i64: 9, 128, 128>}, {transform_indices = @transform_3, window_bounds = array<i64: 1, 8, 8, 128>}, {transform_indices = @transform_4, window_bounds = array<i64: 1, 2, 128>}]} {
    %c0_i32 = arith.constant 0 : i32
    %0 = arith.cmpi eq, %arg0, %c0_i32 : i32
    %1 = arith.extui %0 : i1 to i32
    %c0_i32_0 = arith.constant 0 : i32
    %2 = arith.cmpi ne, %1, %c0_i32_0 : i32
    scf.if %2 {
      %cst_79 = arith.constant 0.000000e+00 : bf16
      %89 = vector.broadcast %cst_79 : bf16 to vector<10x10x128xbf16>
      %c0_80 = arith.constant 0 : index
      %c0_81 = arith.constant 0 : index
      %c0_82 = arith.constant 0 : index
      %90 = vector.load %arg6[%c0_80, %c0_81, %c0_82] : memref<10x10x128xbf16, #tpu.memory_space<vmem>>, vector<10x10x128xbf16>
      tpu.vector_store %arg6[%c0_80, %c0_81, %c0_82], %89 {strides = array<i32>} : memref<10x10x128xbf16, #tpu.memory_space<vmem>>, vector<10x10x128xbf16>,
    } else {
    }
    %c0 = arith.constant 0 : index
    %c0_1 = arith.constant 0 : index
    %c0_2 = arith.constant 0 : index
    %c0_3 = arith.constant 0 : index
    %3 = vector.load %arg1[%c0, %c0_1, %c0_2, %c0_3] : memref<1x8x8x128xbf16, #tpu.memory_space<vmem>>, vector<1x8x8x128xbf16>
    %4 = vector.shape_cast %3 : vector<1x8x8x128xbf16> to vector<8x8x128xbf16>
    %5 = arith.extf %4 : vector<8x8x128xbf16> to vector<8x8x128xf32>
    %c0_4 = arith.constant 0 : index
    %c0_5 = arith.constant 0 : index
    %6 = vector.load %arg2[%c0_4, %c0_5] : memref<2x128xf32, #tpu.memory_space<vmem>>, vector<1x128xf32>
    %7 = vector.shape_cast %6 : vector<1x128xf32> to vector<1x1x128xf32>
    %8 = vector.broadcast %7 : vector<1x1x128xf32> to vector<8x8x128xf32>
    %9 = arith.mulf %5, %8 : vector<8x8x128xf32>
    %c1 = arith.constant 1 : index
    %c0_6 = arith.constant 0 : index
    %10 = vector.load %arg2[%c1, %c0_6] : memref<2x128xf32, #tpu.memory_space<vmem>>, vector<1x128xf32>
    %11 = vector.shape_cast %10 : vector<1x128xf32> to vector<1x1x128xf32>
    %12 = vector.broadcast %11 : vector<1x1x128xf32> to vector<8x8x128xf32>
    %13 = arith.addf %9, %12 : vector<8x8x128xf32>
    %cst = arith.constant 0.000000e+00 : f32
    %14 = vector.broadcast %cst : f32 to vector<8x8x128xf32>
    %15 = arith.maximumf %13, %14 : vector<8x8x128xf32>
    %16 = arith.truncf %15 : vector<8x8x128xf32> to vector<8x8x128xbf16>
    %c1_7 = arith.constant 1 : index
    %c1_8 = arith.constant 1 : index
    %c0_9 = arith.constant 0 : index
    %17 = vector.load %arg6[%c1_7, %c1_8, %c0_9] : memref<10x10x128xbf16, #tpu.memory_space<vmem>>, vector<8x8x128xbf16>
    tpu.vector_store %arg6[%c1_7, %c1_8, %c0_9], %16 {strides = array<i32>} : memref<10x10x128xbf16, #tpu.memory_space<vmem>>, vector<8x8x128xbf16>,
    %cst_10 = arith.constant 0.000000e+00 : f32
    %18 = vector.broadcast %cst_10 : f32 to vector<64x128xf32>
    %c0_11 = arith.constant 0 : index
    %c0_12 = arith.constant 0 : index
    %c0_13 = arith.constant 0 : index
    %19 = vector.load %arg6[%c0_11, %c0_12, %c0_13] : memref<10x10x128xbf16, #tpu.memory_space<vmem>>, vector<8x8x128xbf16>
    %20 = vector.shape_cast %19 : vector<8x8x128xbf16> to vector<64x128xbf16>
    %c0_14 = arith.constant 0 : index
    %c0_15 = arith.constant 0 : index
    %c0_16 = arith.constant 0 : index
    %21 = vector.load %arg3[%c0_14, %c0_15, %c0_16] : memref<9x128x128xbf16, #tpu.memory_space<vmem>>, vector<1x128x128xbf16>
    %22 = vector.shape_cast %21 : vector<1x128x128xbf16> to vector<128x128xbf16>
    %cst_17 = arith.constant dense<0.000000e+00> : vector<64x128xf32>
    %23 = tpu.matmul %20, %22, %cst_17 {dimension_numbers = #tpu.dot_dimension_numbers<[1], [0], [0], [1], [0, 0, 1, 1], [], []>} : vector<64x128xbf16>, vector<128x128xbf16>, vector<64x128xf32> -> vector<64x128xf32>
    %24 = arith.addf %18, %23 : vector<64x128xf32>
    %c0_18 = arith.constant 0 : index
    %c1_19 = arith.constant 1 : index
    %c0_20 = arith.constant 0 : index
    %25 = vector.load %arg6[%c0_18, %c1_19, %c0_20] : memref<10x10x128xbf16, #tpu.memory_space<vmem>>, vector<8x8x128xbf16>
    %26 = vector.shape_cast %25 : vector<8x8x128xbf16> to vector<64x128xbf16>
    %c1_21 = arith.constant 1 : index
    %c0_22 = arith.constant 0 : index
    %c0_23 = arith.constant 0 : index
    %27 = vector.load %arg3[%c1_21, %c0_22, %c0_23] : memref<9x128x128xbf16, #tpu.memory_space<vmem>>, vector<1x128x128xbf16>
    %28 = vector.shape_cast %27 : vector<1x128x128xbf16> to vector<128x128xbf16>
    %cst_24 = arith.constant dense<0.000000e+00> : vector<64x128xf32>
    %29 = tpu.matmul %26, %28, %cst_24 {dimension_numbers = #tpu.dot_dimension_numbers<[1], [0], [0], [1], [0, 0, 1, 1], [], []>} : vector<64x128xbf16>, vector<128x128xbf16>, vector<64x128xf32> -> vector<64x128xf32>
    %30 = arith.addf %24, %29 : vector<64x128xf32>
    %c0_25 = arith.constant 0 : index
    %c2 = arith.constant 2 : index
    %c0_26 = arith.constant 0 : index
    %31 = vector.load %arg6[%c0_25, %c2, %c0_26] : memref<10x10x128xbf16, #tpu.memory_space<vmem>>, vector<8x8x128xbf16>
    %32 = vector.shape_cast %31 : vector<8x8x128xbf16> to vector<64x128xbf16>
    %c2_27 = arith.constant 2 : index
    %c0_28 = arith.constant 0 : index
    %c0_29 = arith.constant 0 : index
    %33 = vector.load %arg3[%c2_27, %c0_28, %c0_29] : memref<9x128x128xbf16, #tpu.memory_space<vmem>>, vector<1x128x128xbf16>
    %34 = vector.shape_cast %33 : vector<1x128x128xbf16> to vector<128x128xbf16>
    %cst_30 = arith.constant dense<0.000000e+00> : vector<64x128xf32>
    %35 = tpu.matmul %32, %34, %cst_30 {dimension_numbers = #tpu.dot_dimension_numbers<[1], [0], [0], [1], [0, 0, 1, 1], [], []>} : vector<64x128xbf16>, vector<128x128xbf16>, vector<64x128xf32> -> vector<64x128xf32>
    %36 = arith.addf %30, %35 : vector<64x128xf32>
    %c1_31 = arith.constant 1 : index
    %c0_32 = arith.constant 0 : index
    %c0_33 = arith.constant 0 : index
    %37 = vector.load %arg6[%c1_31, %c0_32, %c0_33] : memref<10x10x128xbf16, #tpu.memory_space<vmem>>, vector<8x8x128xbf16>
    %38 = vector.shape_cast %37 : vector<8x8x128xbf16> to vector<64x128xbf16>
    %c3 = arith.constant 3 : index
    %c0_34 = arith.constant 0 : index
    %c0_35 = arith.constant 0 : index
    %39 = vector.load %arg3[%c3, %c0_34, %c0_35] : memref<9x128x128xbf16, #tpu.memory_space<vmem>>, vector<1x128x128xbf16>
    %40 = vector.shape_cast %39 : vector<1x128x128xbf16> to vector<128x128xbf16>
    %cst_36 = arith.constant dense<0.000000e+00> : vector<64x128xf32>
    %41 = tpu.matmul %38, %40, %cst_36 {dimension_numbers = #tpu.dot_dimension_numbers<[1], [0], [0], [1], [0, 0, 1, 1], [], []>} : vector<64x128xbf16>, vector<128x128xbf16>, vector<64x128xf32> -> vector<64x128xf32>
    %42 = arith.addf %36, %41 : vector<64x128xf32>
    %c1_37 = arith.constant 1 : index
    %c1_38 = arith.constant 1 : index
    %c0_39 = arith.constant 0 : index
    %43 = vector.load %arg6[%c1_37, %c1_38, %c0_39] : memref<10x10x128xbf16, #tpu.memory_space<vmem>>, vector<8x8x128xbf16>
    %44 = vector.shape_cast %43 : vector<8x8x128xbf16> to vector<64x128xbf16>
    %c4 = arith.constant 4 : index
    %c0_40 = arith.constant 0 : index
    %c0_41 = arith.constant 0 : index
    %45 = vector.load %arg3[%c4, %c0_40, %c0_41] : memref<9x128x128xbf16, #tpu.memory_space<vmem>>, vector<1x128x128xbf16>
    %46 = vector.shape_cast %45 : vector<1x128x128xbf16> to vector<128x128xbf16>
    %cst_42 = arith.constant dense<0.000000e+00> : vector<64x128xf32>
    %47 = tpu.matmul %44, %46, %cst_42 {dimension_numbers = #tpu.dot_dimension_numbers<[1], [0], [0], [1], [0, 0, 1, 1], [], []>} : vector<64x128xbf16>, vector<128x128xbf16>, vector<64x128xf32> -> vector<64x128xf32>
    %48 = arith.addf %42, %47 : vector<64x128xf32>
    %c1_43 = arith.constant 1 : index
    %c2_44 = arith.constant 2 : index
    %c0_45 = arith.constant 0 : index
    %49 = vector.load %arg6[%c1_43, %c2_44, %c0_45] : memref<10x10x128xbf16, #tpu.memory_space<vmem>>, vector<8x8x128xbf16>
    %50 = vector.shape_cast %49 : vector<8x8x128xbf16> to vector<64x128xbf16>
    %c5 = arith.constant 5 : index
    %c0_46 = arith.constant 0 : index
    %c0_47 = arith.constant 0 : index
    %51 = vector.load %arg3[%c5, %c0_46, %c0_47] : memref<9x128x128xbf16, #tpu.memory_space<vmem>>, vector<1x128x128xbf16>
    %52 = vector.shape_cast %51 : vector<1x128x128xbf16> to vector<128x128xbf16>
    %cst_48 = arith.constant dense<0.000000e+00> : vector<64x128xf32>
    %53 = tpu.matmul %50, %52, %cst_48 {dimension_numbers = #tpu.dot_dimension_numbers<[1], [0], [0], [1], [0, 0, 1, 1], [], []>} : vector<64x128xbf16>, vector<128x128xbf16>, vector<64x128xf32> -> vector<64x128xf32>
    %54 = arith.addf %48, %53 : vector<64x128xf32>
    %c2_49 = arith.constant 2 : index
    %c0_50 = arith.constant 0 : index
    %c0_51 = arith.constant 0 : index
    %55 = vector.load %arg6[%c2_49, %c0_50, %c0_51] : memref<10x10x128xbf16, #tpu.memory_space<vmem>>, vector<8x8x128xbf16>
    %56 = vector.shape_cast %55 : vector<8x8x128xbf16> to vector<64x128xbf16>
    %c6 = arith.constant 6 : index
    %c0_52 = arith.constant 0 : index
    %c0_53 = arith.constant 0 : index
    %57 = vector.load %arg3[%c6, %c0_52, %c0_53] : memref<9x128x128xbf16, #tpu.memory_space<vmem>>, vector<1x128x128xbf16>
    %58 = vector.shape_cast %57 : vector<1x128x128xbf16> to vector<128x128xbf16>
    %cst_54 = arith.constant dense<0.000000e+00> : vector<64x128xf32>
    %59 = tpu.matmul %56, %58, %cst_54 {dimension_numbers = #tpu.dot_dimension_numbers<[1], [0], [0], [1], [0, 0, 1, 1], [], []>} : vector<64x128xbf16>, vector<128x128xbf16>, vector<64x128xf32> -> vector<64x128xf32>
    %60 = arith.addf %54, %59 : vector<64x128xf32>
    %c2_55 = arith.constant 2 : index
    %c1_56 = arith.constant 1 : index
    %c0_57 = arith.constant 0 : index
    %61 = vector.load %arg6[%c2_55, %c1_56, %c0_57] : memref<10x10x128xbf16, #tpu.memory_space<vmem>>, vector<8x8x128xbf16>
    %62 = vector.shape_cast %61 : vector<8x8x128xbf16> to vector<64x128xbf16>
    %c7 = arith.constant 7 : index
    %c0_58 = arith.constant 0 : index
    %c0_59 = arith.constant 0 : index
    %63 = vector.load %arg3[%c7, %c0_58, %c0_59] : memref<9x128x128xbf16, #tpu.memory_space<vmem>>, vector<1x128x128xbf16>
    %64 = vector.shape_cast %63 : vector<1x128x128xbf16> to vector<128x128xbf16>
    %cst_60 = arith.constant dense<0.000000e+00> : vector<64x128xf32>
    %65 = tpu.matmul %62, %64, %cst_60 {dimension_numbers = #tpu.dot_dimension_numbers<[1], [0], [0], [1], [0, 0, 1, 1], [], []>} : vector<64x128xbf16>, vector<128x128xbf16>, vector<64x128xf32> -> vector<64x128xf32>
    %66 = arith.addf %60, %65 : vector<64x128xf32>
    %c2_61 = arith.constant 2 : index
    %c2_62 = arith.constant 2 : index
    %c0_63 = arith.constant 0 : index
    %67 = vector.load %arg6[%c2_61, %c2_62, %c0_63] : memref<10x10x128xbf16, #tpu.memory_space<vmem>>, vector<8x8x128xbf16>
    %68 = vector.shape_cast %67 : vector<8x8x128xbf16> to vector<64x128xbf16>
    %c8 = arith.constant 8 : index
    %c0_64 = arith.constant 0 : index
    %c0_65 = arith.constant 0 : index
    %69 = vector.load %arg3[%c8, %c0_64, %c0_65] : memref<9x128x128xbf16, #tpu.memory_space<vmem>>, vector<1x128x128xbf16>
    %70 = vector.shape_cast %69 : vector<1x128x128xbf16> to vector<128x128xbf16>
    %cst_66 = arith.constant dense<0.000000e+00> : vector<64x128xf32>
    %71 = tpu.matmul %68, %70, %cst_66 {dimension_numbers = #tpu.dot_dimension_numbers<[1], [0], [0], [1], [0, 0, 1, 1], [], []>} : vector<64x128xbf16>, vector<128x128xbf16>, vector<64x128xf32> -> vector<64x128xf32>
    %72 = arith.addf %66, %71 : vector<64x128xf32>
    %cst_67 = arith.constant dense<0.000000e+00> : vector<128xf32>
    %73 = vector.multi_reduction <add>, %72, %cst_67 [0] : vector<64x128xf32> to vector<128xf32>
    %74 = vector.shape_cast %73 : vector<128xf32> to vector<1x128xf32>
    %c0_68 = arith.constant 0 : index
    %c0_69 = arith.constant 0 : index
    %c0_70 = arith.constant 0 : index
    %75 = vector.load %arg5[%c0_68, %c0_69, %c0_70] : memref<1x2x128xf32, #tpu.memory_space<vmem>>, vector<1x1x128xf32>
    %76 = vector.shape_cast %75 : vector<1x1x128xf32> to vector<1x128xf32>
    %77 = vector.shape_cast %74 : vector<1x128xf32> to vector<1x1x128xf32>
    tpu.vector_store %arg5[%c0_68, %c0_69, %c0_70], %77 {strides = array<i32>} : memref<1x2x128xf32, #tpu.memory_space<vmem>>, vector<1x1x128xf32>,
    %78 = arith.mulf %72, %72 : vector<64x128xf32>
    %cst_71 = arith.constant dense<0.000000e+00> : vector<128xf32>
    %79 = vector.multi_reduction <add>, %78, %cst_71 [0] : vector<64x128xf32> to vector<128xf32>
    %80 = vector.shape_cast %79 : vector<128xf32> to vector<1x128xf32>
    %c0_72 = arith.constant 0 : index
    %c1_73 = arith.constant 1 : index
    %c0_74 = arith.constant 0 : index
    %81 = vector.load %arg5[%c0_72, %c1_73, %c0_74] : memref<1x2x128xf32, #tpu.memory_space<vmem>>, vector<1x1x128xf32>
    %82 = vector.shape_cast %81 : vector<1x1x128xf32> to vector<1x128xf32>
    %83 = vector.shape_cast %80 : vector<1x128xf32> to vector<1x1x128xf32>
    tpu.vector_store %arg5[%c0_72, %c1_73, %c0_74], %83 {strides = array<i32>} : memref<1x2x128xf32, #tpu.memory_space<vmem>>, vector<1x1x128xf32>,
    %84 = vector.shape_cast %72 : vector<64x128xf32> to vector<8x8x128xf32>
    %85 = arith.truncf %84 : vector<8x8x128xf32> to vector<8x8x128xbf16>
    %c0_75 = arith.constant 0 : index
    %c0_76 = arith.constant 0 : index
    %c0_77 = arith.constant 0 : index
    %c0_78 = arith.constant 0 : index
    %86 = vector.load %arg4[%c0_75, %c0_76, %c0_77, %c0_78] : memref<1x8x8x128xbf16, #tpu.memory_space<vmem>>, vector<1x8x8x128xbf16>
    %87 = vector.shape_cast %86 : vector<1x8x8x128xbf16> to vector<8x8x128xbf16>
    %88 = vector.shape_cast %85 : vector<8x8x128xbf16> to vector<1x8x8x128xbf16>
    tpu.vector_store %arg4[%c0_75, %c0_76, %c0_77, %c0_78], %88 {strides = array<i32>} : memref<1x8x8x128xbf16, #tpu.memory_space<vmem>>, vector<1x8x8x128xbf16>,
    return
  }
  func.func @transform_0(%arg0: i32) -> (i32, i32, i32, i32) {
    %c0_i32 = arith.constant 0 : i32
    %c0_i32_0 = arith.constant 0 : i32
    %c0_i32_1 = arith.constant 0 : i32
    %c0_i32_2 = arith.constant 0 : i32
    return %arg0, %c0_i32, %c0_i32_0, %c0_i32_1 : i32, i32, i32, i32
  }
  func.func @transform_1(%arg0: i32) -> (i32, i32) {
    %c0_i32 = arith.constant 0 : i32
    %c0_i32_0 = arith.constant 0 : i32
    %c0_i32_1 = arith.constant 0 : i32
    return %c0_i32, %c0_i32_0 : i32, i32
  }
  func.func @transform_2(%arg0: i32) -> (i32, i32, i32) {
    %c0_i32 = arith.constant 0 : i32
    %c0_i32_0 = arith.constant 0 : i32
    %c0_i32_1 = arith.constant 0 : i32
    %c0_i32_2 = arith.constant 0 : i32
    return %c0_i32, %c0_i32_0, %c0_i32_1 : i32, i32, i32
  }
  func.func @transform_3(%arg0: i32) -> (i32, i32, i32, i32) {
    %c0_i32 = arith.constant 0 : i32
    %c0_i32_0 = arith.constant 0 : i32
    %c0_i32_1 = arith.constant 0 : i32
    %c0_i32_2 = arith.constant 0 : i32
    return %arg0, %c0_i32, %c0_i32_0, %c0_i32_1 : i32, i32, i32, i32
  }
  func.func @transform_4(%arg0: i32) -> (i32, i32, i32) {
    %c0_i32 = arith.constant 0 : i32
    %c0_i32_0 = arith.constant 0 : i32
    %c0_i32_1 = arith.constant 0 : i32
    return %arg0, %c0_i32, %c0_i32_0 : i32, i32, i32
  }
}

module attributes {stable_mosaic.version = 11 : i64} {
  func.func @kernel(%arg0: i32, %arg1: memref<1x8x8x128xbf16, #tpu.memory_space<vmem>>, %arg2: memref<1x36x9x16xbf16, #tpu.memory_space<vmem>>, %arg3: memref<16x128xbf16, #tpu.memory_space<vmem>>, %arg4: memref<4x128xf32, #tpu.memory_space<vmem>>, %arg5: memref<1x8x8x128xf32, #tpu.memory_space<vmem>>) attributes {dimension_semantics = [#tpu.dimension_semantics<parallel>], iteration_bounds = array<i64: 2>, scalar_prefetch = 0 : i64, scratch_operands = 0 : i64, tpu.core_type = #tpu.core_type<tc>, window_params = [{transform_indices = @transform_0, window_bounds = array<i64: 1, 8, 8, 128>}, {transform_indices = @transform_1, window_bounds = array<i64: 1, 36, 9, 16>}, {pipeline_mode = #tpu.pipeline_mode<synchronous>, transform_indices = @transform_2, window_bounds = array<i64: 16, 128>}, {pipeline_mode = #tpu.pipeline_mode<synchronous>, transform_indices = @transform_3, window_bounds = array<i64: 4, 128>}, {transform_indices = @transform_4, window_bounds = array<i64: 1, 8, 8, 128>}]} {
    %c0 = arith.constant 0 : index
    %c0_0 = arith.constant 0 : index
    %c0_1 = arith.constant 0 : index
    %c0_2 = arith.constant 0 : index
    %0 = vector.load %arg1[%c0, %c0_0, %c0_1, %c0_2] : memref<1x8x8x128xbf16, #tpu.memory_space<vmem>>, vector<1x8x8x128xbf16>
    %1 = vector.shape_cast %0 : vector<1x8x8x128xbf16> to vector<8x8x128xbf16>
    %2 = arith.extf %1 : vector<8x8x128xbf16> to vector<8x8x128xf32>
    %c0_3 = arith.constant 0 : index
    %c0_4 = arith.constant 0 : index
    %3 = vector.load %arg4[%c0_3, %c0_4] : memref<4x128xf32, #tpu.memory_space<vmem>>, vector<1x128xf32>
    %4 = vector.shape_cast %3 : vector<1x128xf32> to vector<1x1x128xf32>
    %5 = vector.broadcast %4 : vector<1x1x128xf32> to vector<8x8x128xf32>
    %6 = arith.mulf %2, %5 : vector<8x8x128xf32>
    %c1 = arith.constant 1 : index
    %c0_5 = arith.constant 0 : index
    %7 = vector.load %arg4[%c1, %c0_5] : memref<4x128xf32, #tpu.memory_space<vmem>>, vector<1x128xf32>
    %8 = vector.shape_cast %7 : vector<1x128xf32> to vector<1x1x128xf32>
    %9 = vector.broadcast %8 : vector<1x1x128xf32> to vector<8x8x128xf32>
    %10 = arith.addf %6, %9 : vector<8x8x128xf32>
    %c0_6 = arith.constant 0 : index
    %c27 = arith.constant 27 : index
    %c0_7 = arith.constant 0 : index
    %c0_8 = arith.constant 0 : index
    %11 = vector.load %arg2[%c0_6, %c27, %c0_7, %c0_8] : memref<1x36x9x16xbf16, #tpu.memory_space<vmem>>, vector<1x8x8x16xbf16>
    %12 = vector.shape_cast %11 : vector<1x8x8x16xbf16> to vector<8x8x16xbf16>
    %13 = vector.shape_cast %12 : vector<8x8x16xbf16> to vector<64x16xbf16>
    %c0_9 = arith.constant 0 : index
    %c0_10 = arith.constant 0 : index
    %14 = vector.load %arg3[%c0_9, %c0_10] : memref<16x128xbf16, #tpu.memory_space<vmem>>, vector<16x128xbf16>
    %cst = arith.constant dense<0.000000e+00> : vector<64x128xf32>
    %15 = tpu.matmul %13, %14, %cst {dimension_numbers = #tpu.dot_dimension_numbers<[1], [0], [0], [1], [0, 0, 1, 1], [], []>} : vector<64x16xbf16>, vector<16x128xbf16>, vector<64x128xf32> -> vector<64x128xf32>
    %c2 = arith.constant 2 : index
    %c0_11 = arith.constant 0 : index
    %16 = vector.load %arg4[%c2, %c0_11] : memref<4x128xf32, #tpu.memory_space<vmem>>, vector<1x128xf32>
    %17 = vector.broadcast %16 : vector<1x128xf32> to vector<64x128xf32>
    %18 = arith.mulf %15, %17 : vector<64x128xf32>
    %c3 = arith.constant 3 : index
    %c0_12 = arith.constant 0 : index
    %19 = vector.load %arg4[%c3, %c0_12] : memref<4x128xf32, #tpu.memory_space<vmem>>, vector<1x128xf32>
    %20 = vector.broadcast %19 : vector<1x128xf32> to vector<64x128xf32>
    %21 = arith.addf %18, %20 : vector<64x128xf32>
    %22 = vector.shape_cast %21 : vector<64x128xf32> to vector<8x8x128xf32>
    %23 = arith.addf %10, %22 : vector<8x8x128xf32>
    %cst_13 = arith.constant 0.000000e+00 : f32
    %24 = vector.broadcast %cst_13 : f32 to vector<8x8x128xf32>
    %25 = arith.maximumf %23, %24 : vector<8x8x128xf32>
    %c0_14 = arith.constant 0 : index
    %c0_15 = arith.constant 0 : index
    %c0_16 = arith.constant 0 : index
    %c0_17 = arith.constant 0 : index
    %26 = vector.load %arg5[%c0_14, %c0_15, %c0_16, %c0_17] : memref<1x8x8x128xf32, #tpu.memory_space<vmem>>, vector<1x8x8x128xf32>
    %27 = vector.shape_cast %26 : vector<1x8x8x128xf32> to vector<8x8x128xf32>
    %28 = vector.shape_cast %25 : vector<8x8x128xf32> to vector<1x8x8x128xf32>
    tpu.vector_store %arg5[%c0_14, %c0_15, %c0_16, %c0_17], %28 {strides = array<i32>} : memref<1x8x8x128xf32, #tpu.memory_space<vmem>>, vector<1x8x8x128xf32>,
    return
  }
  func.func @transform_0(%arg0: i32) -> (i32, i32, i32, i32) {
    %c0_i32 = arith.constant 0 : i32
    %c0_i32_0 = arith.constant 0 : i32
    %c0_i32_1 = arith.constant 0 : i32
    %c0_i32_2 = arith.constant 0 : i32
    return %arg0, %c0_i32, %c0_i32_0, %c0_i32_1 : i32, i32, i32, i32
  }
  func.func @transform_1(%arg0: i32) -> (i32, i32, i32, i32) {
    %c0_i32 = arith.constant 0 : i32
    %c0_i32_0 = arith.constant 0 : i32
    %c0_i32_1 = arith.constant 0 : i32
    %c0_i32_2 = arith.constant 0 : i32
    return %arg0, %c0_i32, %c0_i32_0, %c0_i32_1 : i32, i32, i32, i32
  }
  func.func @transform_2(%arg0: i32) -> (i32, i32) {
    %c0_i32 = arith.constant 0 : i32
    %c0_i32_0 = arith.constant 0 : i32
    %c0_i32_1 = arith.constant 0 : i32
    return %c0_i32, %c0_i32_0 : i32, i32
  }
  func.func @transform_3(%arg0: i32) -> (i32, i32) {
    %c0_i32 = arith.constant 0 : i32
    %c0_i32_0 = arith.constant 0 : i32
    %c0_i32_1 = arith.constant 0 : i32
    return %c0_i32, %c0_i32_0 : i32, i32
  }
  func.func @transform_4(%arg0: i32) -> (i32, i32, i32, i32) {
    %c0_i32 = arith.constant 0 : i32
    %c0_i32_0 = arith.constant 0 : i32
    %c0_i32_1 = arith.constant 0 : i32
    %c0_i32_2 = arith.constant 0 : i32
    return %arg0, %c0_i32, %c0_i32_0, %c0_i32_1 : i32, i32, i32, i32
  }
}

</mosaic_0001>

<llo_original>
// kernel: basic_block_forward.5
$region0: #{basic_block_forward.5}
  #allocation0 [shape = 'u32[]', space=smem, size = 0x4, offset = 0x4, fixed_abs, tag = 'smem constant byte address 0x4 - core index']
  #allocation1 [shape = 'u32[72,128]{1,0:T(1,128)}', space=vmem, size = 0x9000, scoped, tag = 'internal scratch']
  %s0 = inlined_call_operand.vmem [shape: bf16[2,8,8,128], index: 0, kind: input, shape index: {}]
  %s1 = inlined_call_operand.vmem [shape: bf16[2,36,9,16], index: 1, kind: input, shape index: {}]
  %s2 = inlined_call_operand.vmem [shape: bf16[16,128], index: 2, kind: input, shape index: {}]
  %s3 = inlined_call_operand.vmem [shape: f32[4,128], index: 3, kind: input, shape index: {}]
  %s4 = inlined_call_operand.vmem [shape: f32[2,8,8,128], index: 4, kind: output, shape index: {}]
  %s5 = sld [smem:[#allocation0]]
  $region49: #{basic_block_forward.5} parent=0
    _
  %s7 = ssub.s32 1, %s5
  %s8 = scalar_select 0, %s7, %s5
  loop: start=0, step=1, limit=4
  $region2: #{basic_block_forward.5} parent=0 // loop_pre_header
    _
  $region3: #{basic_block_forward.5} parent=0 // loop_header
    %s10 = sphi 0, %s14
    %p11 = scmp.ge.s32.totalorder %s10, 4
    %s20 = sphi 0, %s22
    %s23 = sphi 0, %s20
    %s24 = sphi 0, %s23
    %s40 = sphi 0, %s24
    %s46 = sphi 0, %s48
    %s49 = sphi 0, %s46
    %s50 = sphi 0, %s49
    %s66 = sphi 0, %s50
    %s70 = sphi 0, %s70
    %s72 = sphi 0, %s70
    %s73 = sphi 0, %s72
    %s87 = sphi 0, %s73
    %s91 = sphi 0, %s91
    %s93 = sphi 0, %s91
    %s94 = sphi 0, %s93
    %s108 = sphi 0, %s94
    %s114 = sphi 0, %s116
    %s117 = sphi 0, %s114
    %s118 = sphi 0, %s117
    %s134 = sphi 0, %s118
  $region4: #{basic_block_forward.5} parent=0 // loop_header_branch
    %13 = sbr.rel (%p11) target = $region8
  $region5: #{basic_block_forward.5} parent=0 // loop_body
    %s15 = ssub.s32 %s10, 1
    %s16 = ssub.s32 %s10, 2
    %s17 = sadd.s32 %s10, 1
    %s18 = ssub.s32 %s10, %s17
    %p19 = scmp.eq.s32.totalorder %s18, 0
    %s21 = sadd.s32 %s20, 1
    %s22 = scalar_select %p19, %s20, %s21
    %p25 = pneg %p19
    %p26 = scmp.eq.s32.totalorder %s10, 1
    %p27 = por %p25, %p26
    %p28 = scmp.ne.s32.totalorder %s20, %s23
    %p29 = scmp.eq.s32.totalorder %s10, 0
    %p30 = por %p28, %p29
    %p31 = scmp.ne.s32.totalorder %s20, %s23
    %p32 = scmp.eq.s32.totalorder %s15, 1
    %p33 = por %p31, %p32
    %p34 = scmp.ne.s32.totalorder %s23, %s24
    %p35 = scmp.eq.s32.totalorder %s15, 0
    %p36 = por %p34, %p35
    %p37 = scmp.ne.s32.totalorder %s23, %s24
    %p38 = scmp.eq.s32.totalorder %s16, 1
    %p39 = por %p37, %p38
    %p41 = scmp.ne.s32.totalorder %s24, %s40
    %p42 = scmp.eq.s32.totalorder %s16, 0
    %p43 = por %p41, %p42
    %s44 = ssub.s32 %s10, %s17
    %p45 = scmp.eq.s32.totalorder %s44, 0
    %s47 = sadd.s32 %s46, 1
    %s48 = scalar_select %p45, %s46, %s47
    %p51 = pneg %p45
    %p52 = scmp.eq.s32.totalorder %s10, 1
    %p53 = por %p51, %p52
    %p54 = scmp.ne.s32.totalorder %s46, %s49
    %p55 = scmp.eq.s32.totalorder %s10, 0
    %p56 = por %p54, %p55
    %p57 = scmp.ne.s32.totalorder %s46, %s49
    %p58 = scmp.eq.s32.totalorder %s15, 1
    %p59 = por %p57, %p58
    %p60 = scmp.ne.s32.totalorder %s49, %s50
    %p61 = scmp.eq.s32.totalorder %s15, 0
    %p62 = por %p60, %p61
    %p63 = scmp.ne.s32.totalorder %s49, %s50
    %p64 = scmp.eq.s32.totalorder %s16, 1
    %p65 = por %p63, %p64
    %p67 = scmp.ne.s32.totalorder %s50, %s66
    %p68 = scmp.eq.s32.totalorder %s16, 0
    %p69 = por %p67, %p68
    %s71 = sadd.s32 %s70, 1
    %p74 = scmp.eq.s32.totalorder %s10, 1
    %p75 = scmp.ne.s32.totalorder %s70, %s72
    %p76 = scmp.eq.s32.totalorder %s10, 0
    %p77 = por %p75, %p76
    %p78 = scmp.ne.s32.totalorder %s70, %s72
    %p79 = scmp.eq.s32.totalorder %s15, 1
    %p80 = por %p78, %p79
    %p81 = scmp.ne.s32.totalorder %s72, %s73
    %p82 = scmp.eq.s32.totalorder %s15, 0
    %p83 = por %p81, %p82
    %p84 = scmp.ne.s32.totalorder %s72, %s73
    %p85 = scmp.eq.s32.totalorder %s16, 1
    %p86 = por %p84, %p85
    %p88 = scmp.ne.s32.totalorder %s73, %s87
    %p89 = scmp.eq.s32.totalorder %s16, 0
    %p90 = por %p88, %p89
    %s92 = sadd.s32 %s91, 1
    %p95 = scmp.eq.s32.totalorder %s10, 1
    %p96 = scmp.ne.s32.totalorder %s91, %s93
    %p97 = scmp.eq.s32.totalorder %s10, 0
    %p98 = por %p96, %p97
    %p99 = scmp.ne.s32.totalorder %s91, %s93
    %p100 = scmp.eq.s32.totalorder %s15, 1
    %p101 = por %p99, %p100
    %p102 = scmp.ne.s32.totalorder %s93, %s94
    %p103 = scmp.eq.s32.totalorder %s15, 0
    %p104 = por %p102, %p103
    %p105 = scmp.ne.s32.totalorder %s93, %s94
    %p106 = scmp.eq.s32.totalorder %s16, 1
    %p107 = por %p105, %p106
    %p109 = scmp.ne.s32.totalorder %s94, %s108
    %p110 = scmp.eq.s32.totalorder %s16, 0
    %p111 = por %p109, %p110
    %s112 = ssub.s32 %s10, %s17
    %p113 = scmp.eq.s32.totalorder %s112, 0
    %s115 = sadd.s32 %s114, 1
    %s116 = scalar_select %p113, %s114, %s115
    %p119 = pneg %p113
    %p120 = scmp.eq.s32.totalorder %s10, 1
    %p121 = por %p119, %p120
    %p122 = scmp.ne.s32.totalorder %s114, %s117
    %p123 = scmp.eq.s32.totalorder %s10, 0
    %p124 = por %p122, %p123
    %p125 = scmp.ne.s32.totalorder %s114, %s117
    %p126 = scmp.eq.s32.totalorder %s15, 1
    %p127 = por %p125, %p126
    %p128 = scmp.ne.s32.totalorder %s117, %s118
    %p129 = scmp.eq.s32.totalorder %s15, 0
    %p130 = por %p128, %p129
    %p131 = scmp.ne.s32.totalorder %s117, %s118
    %p132 = scmp.eq.s32.totalorder %s16, 1
    %p133 = por %p131, %p132
    %p135 = scmp.ne.s32.totalorder %s118, %s134
    %p136 = scmp.eq.s32.totalorder %s16, 0
    %p137 = por %p135, %p136
    %p138 = scmp.le.s32.totalorder 1, %s10
    %p139 = scmp.lt.s32.totalorder %s10, 3
    %p140 = pnand %p138, %p139
    %p141 = pneg %p140
    // Predicated region
    $region9: #{basic_block_forward.5} parent=5 // pred_check
      _
    $region10: #{basic_block_forward.5} parent=5 // pred_check_branch
      %143 = sbr.rel (%p140) target = $region12
    $region11: #{basic_block_forward.5} parent=5 // pred_region
      %s144 = ssub.s32 %s10, 1
      // Predicated region
      $region13: #{basic_block_forward.5} parent=11 // pred_check
        %p145 = pneg %p83
      $region14: #{basic_block_forward.5} parent=11 // pred_check_branch
        %147 = sbr.rel (%p145) target = $region16
      $region15: #{basic_block_forward.5} parent=11 // pred_region
        _
      $region16: #{basic_block_forward.5} parent=11 // pred_fallthru
        _
      // Predicated region
      $region17: #{basic_block_forward.5} parent=11 // pred_check
        %p148 = pneg %p104
      $region18: #{basic_block_forward.5} parent=11 // pred_check_branch
        %150 = sbr.rel (%p148) target = $region20
      $region19: #{basic_block_forward.5} parent=11 // pred_region
        _
      $region20: #{basic_block_forward.5} parent=11 // pred_fallthru
        _
    $region12: #{basic_block_forward.5} parent=5 // pred_fallthru
      _
    %p151 = scmp.lt.s32.totalorder %s10, 2
    // Predicated region
    $region21: #{basic_block_forward.5} parent=5 // pred_check
      %p152 = pneg %p151
    $region22: #{basic_block_forward.5} parent=5 // pred_check_branch
      %154 = sbr.rel (%p152) target = $region24
    $region23: #{basic_block_forward.5} parent=5 // pred_region
      // Predicated region
      $region25: #{basic_block_forward.5} parent=23 // pred_check
        %p155 = pneg %p30
      $region26: #{basic_block_forward.5} parent=23 // pred_check_branch
        %157 = sbr.rel (%p155) target = $region28
      $region27: #{basic_block_forward.5} parent=23 // pred_region
        %p158 = scmp.lt.s32.totalorder %s10, 1
        %s159 = scalar_select %p158, %s10, 1
        %s160 = smul.addr %s159, 8
        %s161 = smul.addr %s160, 4
        %s162 = scalar_lea.vmem %s0, %s161
      $region28: #{basic_block_forward.5} parent=23 // pred_fallthru
        _
      // Predicated region
      $region29: #{basic_block_forward.5} parent=23 // pred_check
        %p163 = pneg %p56
      $region30: #{basic_block_forward.5} parent=23 // pred_check_branch
        %165 = sbr.rel (%p163) target = $region32
      $region31: #{basic_block_forward.5} parent=23 // pred_region
        %p166 = scmp.lt.s32.totalorder %s10, 1
        %s167 = scalar_select %p166, %s10, 1
        %s168 = smul.addr %s167, 72
        %s169 = smul.addr %s168, 4
        %s170 = scalar_lea.vmem %s1, %s169
      $region32: #{basic_block_forward.5} parent=23 // pred_fallthru
        _
    $region24: #{basic_block_forward.5} parent=5 // pred_fallthru
      _
    %p171 = scmp.le.s32.totalorder 1, %s10
    %p172 = scmp.lt.s32.totalorder %s10, 3
    %p173 = pnand %p171, %p172
    %p174 = pneg %p173
    // Predicated region
    $region33: #{basic_block_forward.5} parent=5 // pred_check
      _
    $region34: #{basic_block_forward.5} parent=5 // pred_check_branch
      %176 = sbr.rel (%p173) target = $region36
    $region35: #{basic_block_forward.5} parent=5 // pred_region
      %s177 = ssub.s32 %s10, 1
      %p178 = scmp.lt.s32.totalorder %s15, 1
      %s179 = scalar_select %p178, %s15, 1
      %s180 = smul.addr %s179, 8
      %s181 = smul.addr %s180, 4
      %s182 = scalar_lea.vmem %s0, %s181
      %p183 = pneg %p36
      %p184 = pneg %p33
      %p185 = scmp.lt.s32.totalorder %s15, 1
      %s186 = scalar_select %p185, %s15, 1
      %s187 = smul.addr %s186, 72
      %s188 = smul.addr %s187, 4
      %s189 = scalar_lea.vmem %s1, %s188
      %p190 = pneg %p62
      %p191 = pneg %p59
      %p192 = pneg %p83
      %p193 = pneg %p80
      %p194 = pneg %p104
      %p195 = pneg %p101
      %p196 = pneg %p130
      %p197 = pneg %p127
      %p198 = scmp.lt.s32.totalorder %s15, 1
      %s199 = scalar_select %p198, %s15, 1
      %s200 = smul.addr %s199, 8
      %s201 = smul.addr %s200, 8
      %s202 = scalar_lea.vmem %s4, %s201
      %p203 = scmp.lt.s32.totalorder %s15, 1
      %s204 = scalar_select %p203, %s15, 1
      %s205 = smul.addr %s204, 8
      %s206 = smul.addr %s205, 4
      %s207 = scalar_lea.vmem %s0, %s206
      %p208 = scmp.lt.s32.totalorder %s15, 1
      %s209 = scalar_select %p208, %s15, 1
      %s210 = smul.addr %s209, 72
      %s211 = smul.addr %s210, 4
      %s212 = scalar_lea.vmem %s1, %s211
      %p213 = scmp.lt.s32.totalorder %s15, 1
      %s214 = scalar_select %p213, %s15, 1
      %s215 = smul.addr %s214, 8
      %s216 = smul.addr %s215, 8
      %s217 = scalar_lea.vmem %s4, %s216
      %v219 = vld [vmem:[%s207] sm:$0xf]
      %v220 = vld [vmem:[%s207 + $0x4] sm:$0xf]
      %v221 = vld [vmem:[%s207 + $0x8] sm:$0xf]
      %v222 = vld [vmem:[%s207 + $0xc] sm:$0xf]
      %v223 = vld [vmem:[%s207 + $0x10] sm:$0xf]
      %v224 = vld [vmem:[%s207 + $0x14] sm:$0xf]
      %v225 = vld [vmem:[%s207 + $0x18] sm:$0xf]
      %v226 = vld [vmem:[%s207 + $0x1c] sm:$0xf]
      %v227 = vunpack.c.l.bf16 %v219
      %v228 = vunpack.c.l.bf16 %v220
      %v229 = vunpack.c.l.bf16 %v221
      %v230 = vunpack.c.l.bf16 %v222
      %v231 = vunpack.c.l.bf16 %v223
      %v232 = vunpack.c.l.bf16 %v224
      %v233 = vunpack.c.l.bf16 %v225
      %v234 = vunpack.c.l.bf16 %v226
      %v235 = vld [vmem:[%s3] sm:$0x1]
      %v236 = vperm.slane %v235, 0
      %v237 = vmul.f32 %v227, %v236
      %v238 = vmul.f32 %v228, %v236
      %v239 = vmul.f32 %v229, %v236
      %v240 = vmul.f32 %v230, %v236
      %v241 = vmul.f32 %v231, %v236
      %v242 = vmul.f32 %v232, %v236
      %v243 = vmul.f32 %v233, %v236
      %v244 = vmul.f32 %v234, %v236
      %v245 = vld [vmem:[%s3 + $0x1] sm:$0x1]
      %v246 = vperm.slane %v245, 0
      %v247 = vadd.f32 %v237, %v246
      %v248 = vadd.f32 %v238, %v246
      %v249 = vadd.f32 %v239, %v246
      %v250 = vadd.f32 %v240, %v246
      %v251 = vadd.f32 %v241, %v246
      %v252 = vadd.f32 %v242, %v246
      %v253 = vadd.f32 %v243, %v246
      %v254 = vadd.f32 %v244, %v246
      %s255 = scalar_lea.vmem %s212, 216
      %v256 = vld [vmem:[%s255] sm:$0xf]
      %v257 = vld [vmem:[%s255 + $0x8] sm:$0xf]
      %v258 = vld [vmem:[%s255 + $0x10] sm:$0xf]
      %v259 = vld [vmem:[%s255 + $0x18] sm:$0xf]
      %v260 = vld [vmem:[%s255 + $0x20] sm:$0xf]
      %v261 = vld [vmem:[%s255 + $0x28] sm:$0xf]
      %v262 = vld [vmem:[%s255 + $0x30] sm:$0xf]
      %v263 = vld [vmem:[%s255 + $0x38] sm:$0xf]
      %v264 = vld [vmem:[%s2] sm:$0xf]
      %v265 = vld [vmem:[%s2 + $0x4] sm:$0xf]
      %v274 = vunpack.c.l.b16 %v256
      %v275 = vunpack.c.l.b16 %v257
      %v276 = vunpack.c.l.b16 %v258
      %v277 = vunpack.c.l.b16 %v259
      %v278 = vunpack.c.l.b16 %v260
      %v279 = vunpack.c.l.b16 %v261
      %v280 = vunpack.c.l.b16 %v262
      %v281 = vunpack.c.l.b16 %v263
      %v282 = vpack.c.b16 %v275, %v274
      %v283 = vpack.c.b16 %v277, %v276
      %v284 = vpack.c.b16 %v279, %v278
      %v285 = vpack.c.b16 %v281, %v280
      %v288 = vunpack.c.l.b16 %v264
      %v289 = vunpack.c.l.b16 %v265
      %v290 = vpack.c.b16 %v289, %v288
      %vm292 = vcmask 130048
      %v294 = vsel %vm292, %v282, 0
      %v297 = vsel %vm292, %v283, 0
      %v300 = vsel %vm292, %v284, 0
      %v303 = vsel %vm292, %v285, 0
      %305 = vmatpush.bf16.msra.mxu0 0
      %306 = vmatpush.bf16.msra.mxu0 0
      %307 = vmatpush.bf16.msra.mxu0 0
      %308 = vmatpush.bf16.msra.mxu0 0
      %309 = vmatpush.bf16.msra.mxu0 0
      %310 = vmatpush.bf16.msra.mxu0 0
      %311 = vmatpush.bf16.msra.mxu0 0
      %312 = vmatpush.bf16.msra.mxu0 %v290
      %313 = vmatmul.bf16.gmra.mxu0 %v294
      %v314 = vpop.f32.mrf.mxu0
      %v315 = vadd.f32 0.0, %v314
      %v316 = vpop.f32.mrf.mxu0
      %v317 = vadd.f32 0.0, %v316
      %318 = vmatmul.bf16.gmra.mxu0 %v297
      %v319 = vpop.f32.mrf.mxu0
      %v320 = vadd.f32 0.0, %v319
      %v321 = vpop.f32.mrf.mxu0
      %v322 = vadd.f32 0.0, %v321
      %323 = vmatmul.bf16.gmra.mxu0 %v300
      %v324 = vpop.f32.mrf.mxu0
      %v325 = vadd.f32 0.0, %v324
      %v326 = vpop.f32.mrf.mxu0
      %v327 = vadd.f32 0.0, %v326
      %328 = vmatmul.bf16.gmra.mxu0 %v303
      %v329 = vpop.f32.mrf.mxu0
      %v330 = vadd.f32 0.0, %v329
      %v331 = vpop.f32.mrf.mxu0
      %v332 = vadd.f32 0.0, %v331
      %333 = vdwg.mxu0
      %v334 = vld [vmem:[%s3 + $0x2] sm:$0x1]
      %v335 = vperm.slane %v334, 0
      %v336 = vmul.f32 %v315, %v335
      %v337 = vmul.f32 %v317, %v335
      %v338 = vmul.f32 %v320, %v335
      %v339 = vmul.f32 %v322, %v335
      %v340 = vmul.f32 %v325, %v335
      %v341 = vmul.f32 %v327, %v335
      %v342 = vmul.f32 %v330, %v335
      %v343 = vmul.f32 %v332, %v335
      %v344 = vld [vmem:[%s3 + $0x3] sm:$0x1]
      %v345 = vperm.slane %v344, 0
      %v346 = vadd.f32 %v336, %v345
      %v347 = vadd.f32 %v337, %v345
      %v348 = vadd.f32 %v338, %v345
      %v349 = vadd.f32 %v339, %v345
      %v350 = vadd.f32 %v340, %v345
      %v351 = vadd.f32 %v341, %v345
      %v352 = vadd.f32 %v342, %v345
      %v353 = vadd.f32 %v343, %v345
      %v354 = vadd.f32 %v247, %v346
      %v355 = vadd.f32 %v248, %v347
      %v356 = vadd.f32 %v249, %v348
      %v357 = vadd.f32 %v250, %v349
      %v358 = vadd.f32 %v251, %v350
      %v359 = vadd.f32 %v252, %v351
      %v360 = vadd.f32 %v253, %v352
      %v361 = vadd.f32 %v254, %v353
      %v362 = vmax.f32 %v354, 0.0
      %v363 = vmax.f32 %v355, 0.0
      %v364 = vmax.f32 %v356, 0.0
      %v365 = vmax.f32 %v357, 0.0
      %v366 = vmax.f32 %v358, 0.0
      %v367 = vmax.f32 %v359, 0.0
      %v368 = vmax.f32 %v360, 0.0
      %v369 = vmax.f32 %v361, 0.0
      %370 = vst [vmem:[%s217] sm:$0xff] %v362
      %371 = vst [vmem:[%s217 + $0x8] sm:$0xff] %v363
      %372 = vst [vmem:[%s217 + $0x10] sm:$0xff] %v364
      %373 = vst [vmem:[%s217 + $0x18] sm:$0xff] %v365
      %374 = vst [vmem:[%s217 + $0x20] sm:$0xff] %v366
      %375 = vst [vmem:[%s217 + $0x28] sm:$0xff] %v367
      %376 = vst [vmem:[%s217 + $0x30] sm:$0xff] %v368
      %377 = vst [vmem:[%s217 + $0x38] sm:$0xff] %v369
      %p378 = scmp.lt.s32.totalorder %s15, 1
      %s379 = scalar_select %p378, %s15, 1
      %s380 = smul.addr %s379, 8
      %s381 = smul.addr %s380, 8
      %s382 = scalar_lea.vmem %s4, %s381
      // Predicated region
      $region37: #{basic_block_forward.5} parent=35 // pred_check
        %p383 = pneg %p127
      $region38: #{basic_block_forward.5} parent=35 // pred_check_branch
        %385 = sbr.rel (%p383) target = $region40
      $region39: #{basic_block_forward.5} parent=35 // pred_region
        _
      $region40: #{basic_block_forward.5} parent=35 // pred_fallthru
        _
    $region36: #{basic_block_forward.5} parent=5 // pred_fallthru
      _
    %p386 = scmp.le.s32.totalorder 2, %s10
    // Predicated region
    $region41: #{basic_block_forward.5} parent=5 // pred_check
      %p387 = pneg %p386
    $region42: #{basic_block_forward.5} parent=5 // pred_check_branch
      %389 = sbr.rel (%p387) target = $region44
    $region43: #{basic_block_forward.5} parent=5 // pred_region
      %s390 = ssub.s32 %s10, 2
      // Predicated region
      $region45: #{basic_block_forward.5} parent=43 // pred_check
        %p391 = pneg %p133
      $region46: #{basic_block_forward.5} parent=43 // pred_check_branch
        %393 = sbr.rel (%p391) target = $region48
      $region47: #{basic_block_forward.5} parent=43 // pred_region
        %p394 = scmp.lt.s32.totalorder %s16, 1
        %s395 = scalar_select %p394, %s16, 1
        %s396 = smul.addr %s395, 8
        %s397 = smul.addr %s396, 8
        %s398 = scalar_lea.vmem %s4, %s397
      $region48: #{basic_block_forward.5} parent=43 // pred_fallthru
        _
    $region44: #{basic_block_forward.5} parent=5 // pred_fallthru
      _
  $region6: #{basic_block_forward.5} parent=0 // loop_footer
    %s14 = sadd.s32 1, %s10
  $region7: #{basic_block_forward.5} parent=0 // loop_footer_branch
    %9 = sbr.rel target = $region3
  $region8: #{basic_block_forward.5} parent=0 // loop_exit
    _

// kernel: basic_block_forward.3
$region0: #{basic_block_forward.3}
  #allocation0 [shape = 'u32[]', space=smem, size = 0x4, offset = 0x4, fixed_abs, tag = 'smem constant byte address 0x4 - core index']
  #allocation1 [shape = 'u32[72,128]{1,0:T(1,128)}', space=vmem, size = 0x9000, scoped, tag = 'internal scratch']
  %s0 = inlined_call_operand.vmem [shape: bf16[2,36,9,16], index: 0, kind: input, shape index: {}]
  %s1 = inlined_call_operand.vmem [shape: bf16[9,16,128], index: 1, kind: input, shape index: {}]
  %s2 = inlined_call_operand.vmem [shape: bf16[16,128], index: 2, kind: input, shape index: {}]
  %s3 = inlined_call_operand.vmem [shape: bf16[2,8,8,128], index: 3, kind: output, shape index: {0}]
  %s4 = inlined_call_operand.vmem [shape: f32[2,2,128], index: 4, kind: output, shape index: {1}]
  %s5 = inlined_call_operand.vmem [shape: f32[2,2,128], index: 5, kind: output, shape index: {2}]
  %6 = xla_tuple %s3, %s4, %s5
  %s7 = sld [smem:[#allocation0]]
  $region61: #{basic_block_forward.3} parent=0
    _
  %s9 = ssub.s32 1, %s7
  %s10 = scalar_select 0, %s9, %s7
  loop: start=0, step=1, limit=4
  $region2: #{basic_block_forward.3} parent=0 // loop_pre_header
    _
  $region3: #{basic_block_forward.3} parent=0 // loop_header
    %s12 = sphi 0, %s16
    %p13 = scmp.ge.s32.totalorder %s12, 4
    %s22 = sphi 0, %s24
    %s25 = sphi 0, %s22
    %s26 = sphi 0, %s25
    %s42 = sphi 0, %s26
    %s46 = sphi 0, %s46
    %s48 = sphi 0, %s46
    %s49 = sphi 0, %s48
    %s63 = sphi 0, %s49
    %s67 = sphi 0, %s67
    %s69 = sphi 0, %s67
    %s70 = sphi 0, %s69
    %s84 = sphi 0, %s70
    %s90 = sphi 0, %s92
    %s93 = sphi 0, %s90
    %s94 = sphi 0, %s93
    %s110 = sphi 0, %s94
    %s116 = sphi 0, %s118
    %s119 = sphi 0, %s116
    %s120 = sphi 0, %s119
    %s136 = sphi 0, %s120
    %s142 = sphi 0, %s144
    %s145 = sphi 0, %s142
    %s146 = sphi 0, %s145
    %s162 = sphi 0, %s146
  $region4: #{basic_block_forward.3} parent=0 // loop_header_branch
    %15 = sbr.rel (%p13) target = $region8
  $region5: #{basic_block_forward.3} parent=0 // loop_body
    %s17 = ssub.s32 %s12, 1
    %s18 = ssub.s32 %s12, 2
    %s19 = sadd.s32 %s12, 1
    %s20 = ssub.s32 %s12, %s19
    %p21 = scmp.eq.s32.totalorder %s20, 0
    %s23 = sadd.s32 %s22, 1
    %s24 = scalar_select %p21, %s22, %s23
    %p27 = pneg %p21
    %p28 = scmp.eq.s32.totalorder %s12, 1
    %p29 = por %p27, %p28
    %p30 = scmp.ne.s32.totalorder %s22, %s25
    %p31 = scmp.eq.s32.totalorder %s12, 0
    %p32 = por %p30, %p31
    %p33 = scmp.ne.s32.totalorder %s22, %s25
    %p34 = scmp.eq.s32.totalorder %s17, 1
    %p35 = por %p33, %p34
    %p36 = scmp.ne.s32.totalorder %s25, %s26
    %p37 = scmp.eq.s32.totalorder %s17, 0
    %p38 = por %p36, %p37
    %p39 = scmp.ne.s32.totalorder %s25, %s26
    %p40 = scmp.eq.s32.totalorder %s18, 1
    %p41 = por %p39, %p40
    %p43 = scmp.ne.s32.totalorder %s26, %s42
    %p44 = scmp.eq.s32.totalorder %s18, 0
    %p45 = por %p43, %p44
    %s47 = sadd.s32 %s46, 1
    %p50 = scmp.eq.s32.totalorder %s12, 1
    %p51 = scmp.ne.s32.totalorder %s46, %s48
    %p52 = scmp.eq.s32.totalorder %s12, 0
    %p53 = por %p51, %p52
    %p54 = scmp.ne.s32.totalorder %s46, %s48
    %p55 = scmp.eq.s32.totalorder %s17, 1
    %p56 = por %p54, %p55
    %p57 = scmp.ne.s32.totalorder %s48, %s49
    %p58 = scmp.eq.s32.totalorder %s17, 0
    %p59 = por %p57, %p58
    %p60 = scmp.ne.s32.totalorder %s48, %s49
    %p61 = scmp.eq.s32.totalorder %s18, 1
    %p62 = por %p60, %p61
    %p64 = scmp.ne.s32.totalorder %s49, %s63
    %p65 = scmp.eq.s32.totalorder %s18, 0
    %p66 = por %p64, %p65
    %s68 = sadd.s32 %s67, 1
    %p71 = scmp.eq.s32.totalorder %s12, 1
    %p72 = scmp.ne.s32.totalorder %s67, %s69
    %p73 = scmp.eq.s32.totalorder %s12, 0
    %p74 = por %p72, %p73
    %p75 = scmp.ne.s32.totalorder %s67, %s69
    %p76 = scmp.eq.s32.totalorder %s17, 1
    %p77 = por %p75, %p76
    %p78 = scmp.ne.s32.totalorder %s69, %s70
    %p79 = scmp.eq.s32.totalorder %s17, 0
    %p80 = por %p78, %p79
    %p81 = scmp.ne.s32.totalorder %s69, %s70
    %p82 = scmp.eq.s32.totalorder %s18, 1
    %p83 = por %p81, %p82
    %p85 = scmp.ne.s32.totalorder %s70, %s84
    %p86 = scmp.eq.s32.totalorder %s18, 0
    %p87 = por %p85, %p86
    %s88 = ssub.s32 %s12, %s19
    %p89 = scmp.eq.s32.totalorder %s88, 0
    %s91 = sadd.s32 %s90, 1
    %s92 = scalar_select %p89, %s90, %s91
    %p95 = pneg %p89
    %p96 = scmp.eq.s32.totalorder %s12, 1
    %p97 = por %p95, %p96
    %p98 = scmp.ne.s32.totalorder %s90, %s93
    %p99 = scmp.eq.s32.totalorder %s12, 0
    %p100 = por %p98, %p99
    %p101 = scmp.ne.s32.totalorder %s90, %s93
    %p102 = scmp.eq.s32.totalorder %s17, 1
    %p103 = por %p101, %p102
    %p104 = scmp.ne.s32.totalorder %s93, %s94
    %p105 = scmp.eq.s32.totalorder %s17, 0
    %p106 = por %p104, %p105
    %p107 = scmp.ne.s32.totalorder %s93, %s94
    %p108 = scmp.eq.s32.totalorder %s18, 1
    %p109 = por %p107, %p108
    %p111 = scmp.ne.s32.totalorder %s94, %s110
    %p112 = scmp.eq.s32.totalorder %s18, 0
    %p113 = por %p111, %p112
    %s114 = ssub.s32 %s12, %s19
    %p115 = scmp.eq.s32.totalorder %s114, 0
    %s117 = sadd.s32 %s116, 1
    %s118 = scalar_select %p115, %s116, %s117
    %p121 = pneg %p115
    %p122 = scmp.eq.s32.totalorder %s12, 1
    %p123 = por %p121, %p122
    %p124 = scmp.ne.s32.totalorder %s116, %s119
    %p125 = scmp.eq.s32.totalorder %s12, 0
    %p126 = por %p124, %p125
    %p127 = scmp.ne.s32.totalorder %s116, %s119
    %p128 = scmp.eq.s32.totalorder %s17, 1
    %p129 = por %p127, %p128
    %p130 = scmp.ne.s32.totalorder %s119, %s120
    %p131 = scmp.eq.s32.totalorder %s17, 0
    %p132 = por %p130, %p131
    %p133 = scmp.ne.s32.totalorder %s119, %s120
    %p134 = scmp.eq.s32.totalorder %s18, 1
    %p135 = por %p133, %p134
    %p137 = scmp.ne.s32.totalorder %s120, %s136
    %p138 = scmp.eq.s32.totalorder %s18, 0
    %p139 = por %p137, %p138
    %s140 = ssub.s32 %s12, %s19
    %p141 = scmp.eq.s32.totalorder %s140, 0
    %s143 = sadd.s32 %s142, 1
    %s144 = scalar_select %p141, %s142, %s143
    %p147 = pneg %p141
    %p148 = scmp.eq.s32.totalorder %s12, 1
    %p149 = por %p147, %p148
    %p150 = scmp.ne.s32.totalorder %s142, %s145
    %p151 = scmp.eq.s32.totalorder %s12, 0
    %p152 = por %p150, %p151
    %p153 = scmp.ne.s32.totalorder %s142, %s145
    %p154 = scmp.eq.s32.totalorder %s17, 1
    %p155 = por %p153, %p154
    %p156 = scmp.ne.s32.totalorder %s145, %s146
    %p157 = scmp.eq.s32.totalorder %s17, 0
    %p158 = por %p156, %p157
    %p159 = scmp.ne.s32.totalorder %s145, %s146
    %p160 = scmp.eq.s32.totalorder %s18, 1
    %p161 = por %p159, %p160
    %p163 = scmp.ne.s32.totalorder %s146, %s162
    %p164 = scmp.eq.s32.totalorder %s18, 0
    %p165 = por %p163, %p164
    %p166 = scmp.le.s32.totalorder 1, %s12
    %p167 = scmp.lt.s32.totalorder %s12, 3
    %p168 = pnand %p166, %p167
    %p169 = pneg %p168
    // Predicated region
    $region9: #{basic_block_forward.3} parent=5 // pred_check
      _
    $region10: #{basic_block_forward.3} parent=5 // pred_check_branch
      %171 = sbr.rel (%p168) target = $region12
    $region11: #{basic_block_forward.3} parent=5 // pred_region
      %s172 = ssub.s32 %s12, 1
      // Predicated region
      $region13: #{basic_block_forward.3} parent=11 // pred_check
        %p173 = pneg %p59
      $region14: #{basic_block_forward.3} parent=11 // pred_check_branch
        %175 = sbr.rel (%p173) target = $region16
      $region15: #{basic_block_forward.3} parent=11 // pred_region
        _
      $region16: #{basic_block_forward.3} parent=11 // pred_fallthru
        _
      // Predicated region
      $region17: #{basic_block_forward.3} parent=11 // pred_check
        %p176 = pneg %p80
      $region18: #{basic_block_forward.3} parent=11 // pred_check_branch
        %178 = sbr.rel (%p176) target = $region20
      $region19: #{basic_block_forward.3} parent=11 // pred_region
        _
      $region20: #{basic_block_forward.3} parent=11 // pred_fallthru
        _
    $region12: #{basic_block_forward.3} parent=5 // pred_fallthru
      _
    %p179 = scmp.lt.s32.totalorder %s12, 2
    // Predicated region
    $region21: #{basic_block_forward.3} parent=5 // pred_check
      %p180 = pneg %p179
    $region22: #{basic_block_forward.3} parent=5 // pred_check_branch
      %182 = sbr.rel (%p180) target = $region24
    $region23: #{basic_block_forward.3} parent=5 // pred_region
      // Predicated region
      $region25: #{basic_block_forward.3} parent=23 // pred_check
        %p183 = pneg %p32
      $region26: #{basic_block_forward.3} parent=23 // pred_check_branch
        %185 = sbr.rel (%p183) target = $region28
      $region27: #{basic_block_forward.3} parent=23 // pred_region
        %p186 = scmp.lt.s32.totalorder %s12, 1
        %s187 = scalar_select %p186, %s12, 1
        %s188 = smul.addr %s187, 72
        %s189 = smul.addr %s188, 4
        %s190 = scalar_lea.vmem %s0, %s189
      $region28: #{basic_block_forward.3} parent=23 // pred_fallthru
        _
    $region24: #{basic_block_forward.3} parent=5 // pred_fallthru
      _
    %p191 = scmp.le.s32.totalorder 1, %s12
    %p192 = scmp.lt.s32.totalorder %s12, 3
    %p193 = pnand %p191, %p192
    %p194 = pneg %p193
    // Predicated region
    $region29: #{basic_block_forward.3} parent=5 // pred_check
      _
    $region30: #{basic_block_forward.3} parent=5 // pred_check_branch
      %196 = sbr.rel (%p193) target = $region32
    $region31: #{basic_block_forward.3} parent=5 // pred_region
      %s197 = ssub.s32 %s12, 1
      %p198 = scmp.lt.s32.totalorder %s17, 1
      %s199 = scalar_select %p198, %s17, 1
      %s200 = smul.addr %s199, 72
      %s201 = smul.addr %s200, 4
      %s202 = scalar_lea.vmem %s0, %s201
      %p203 = pneg %p38
      %p204 = pneg %p35
      %p205 = pneg %p59
      %p206 = pneg %p56
      %p207 = pneg %p80
      %p208 = pneg %p77
      %p209 = pneg %p106
      %p210 = pneg %p103
      %p211 = scmp.lt.s32.totalorder %s17, 1
      %s212 = scalar_select %p211, %s17, 1
      %s213 = smul.addr %s212, 8
      %s214 = smul.addr %s213, 4
      %s215 = scalar_lea.vmem %s3, %s214
      %p216 = pneg %p132
      %p217 = pneg %p129
      %p218 = scmp.lt.s32.totalorder %s17, 1
      %s219 = scalar_select %p218, %s17, 1
      %s220 = smul.addr %s219, 2
      %s221 = scalar_lea.vmem %s4, %s220
      %p222 = pneg %p158
      %p223 = pneg %p155
      %p224 = scmp.lt.s32.totalorder %s17, 1
      %s225 = scalar_select %p224, %s17, 1
      %s226 = smul.addr %s225, 2
      %s227 = scalar_lea.vmem %s5, %s226
      %p228 = scmp.lt.s32.totalorder %s17, 1
      %s229 = scalar_select %p228, %s17, 1
      %s230 = smul.addr %s229, 72
      %s231 = smul.addr %s230, 4
      %s232 = scalar_lea.vmem %s0, %s231
      %p233 = scmp.lt.s32.totalorder %s17, 1
      %s234 = scalar_select %p233, %s17, 1
      %s235 = smul.addr %s234, 8
      %s236 = smul.addr %s235, 4
      %s237 = scalar_lea.vmem %s3, %s236
      %p238 = scmp.lt.s32.totalorder %s17, 1
      %s239 = scalar_select %p238, %s17, 1
      %s240 = smul.addr %s239, 2
      %s241 = scalar_lea.vmem %s4, %s240
      %p242 = scmp.lt.s32.totalorder %s17, 1
      %s243 = scalar_select %p242, %s17, 1
      %s244 = smul.addr %s243, 2
      %s245 = scalar_lea.vmem %s5, %s244
      %v247 = vld [vmem:[%s232] sm:$0xf]
      %v248 = vld [vmem:[%s232 + $0x8] sm:$0xf]
      %v249 = vld [vmem:[%s232 + $0x10] sm:$0xf]
      %v250 = vld [vmem:[%s232 + $0x18] sm:$0xf]
      %v251 = vld [vmem:[%s232 + $0x20] sm:$0xf]
      %v252 = vld [vmem:[%s232 + $0x28] sm:$0xf]
      %v253 = vld [vmem:[%s232 + $0x30] sm:$0xf]
      %v254 = vld [vmem:[%s232 + $0x38] sm:$0xf]
      %v255 = vld [vmem:[%s1] sm:$0xf]
      %v256 = vld [vmem:[%s1 + $0x4] sm:$0xf]
      %s257 = scalar_lea.vmem %s232, 72
      %v258 = vld [vmem:[%s257] sm:$0xf]
      %v259 = vld [vmem:[%s257 + $0x8] sm:$0xf]
      %v260 = vld [vmem:[%s257 + $0x10] sm:$0xf]
      %v261 = vld [vmem:[%s257 + $0x18] sm:$0xf]
      %v262 = vld [vmem:[%s257 + $0x20] sm:$0xf]
      %v263 = vld [vmem:[%s257 + $0x28] sm:$0xf]
      %v264 = vld [vmem:[%s257 + $0x30] sm:$0xf]
      %v265 = vld [vmem:[%s257 + $0x38] sm:$0xf]
      %s266 = scalar_lea.vmem %s1, 8
      %v267 = vld [vmem:[%s266] sm:$0xf]
      %v268 = vld [vmem:[%s266 + $0x4] sm:$0xf]
      %v277 = vunpack.c.l.b16 %v258
      %v278 = vunpack.c.l.b16 %v259
      %v279 = vunpack.c.l.b16 %v260
      %v280 = vunpack.c.l.b16 %v261
      %v281 = vunpack.c.l.b16 %v262
      %v282 = vunpack.c.l.b16 %v263
      %v283 = vunpack.c.l.b16 %v264
      %v284 = vunpack.c.l.b16 %v265
      %v285 = vpack.c.b16 %v278, %v277
      %v286 = vpack.c.b16 %v280, %v279
      %v287 = vpack.c.b16 %v282, %v281
      %v288 = vpack.c.b16 %v284, %v283
      %v291 = vunpack.c.l.b16 %v267
      %v292 = vunpack.c.l.b16 %v268
      %v293 = vpack.c.b16 %v292, %v291
      %vm295 = vcmask 130048
      %v297 = vsel %vm295, %v285, 0
      %v300 = vsel %vm295, %v286, 0
      %v303 = vsel %vm295, %v287, 0
      %v306 = vsel %vm295, %v288, 0
      %308 = vmatpush.bf16.msra.mxu0 0
      %309 = vmatpush.bf16.msra.mxu0 0
      %310 = vmatpush.bf16.msra.mxu0 0
      %311 = vmatpush.bf16.msra.mxu0 0
      %312 = vmatpush.bf16.msra.mxu0 0
      %313 = vmatpush.bf16.msra.mxu0 0
      %314 = vmatpush.bf16.msra.mxu0 0
      %315 = vmatpush.bf16.msra.mxu0 %v293
      %316 = vmatmul.bf16.gmra.mxu0 %v297
      %v317 = vpop.f32.mrf.mxu0
      %v318 = vadd.f32 0.0, %v317
      %v319 = vpop.f32.mrf.mxu0
      %v320 = vadd.f32 0.0, %v319
      %321 = vmatmul.bf16.gmra.mxu0 %v300
      %v322 = vpop.f32.mrf.mxu0
      %v323 = vadd.f32 0.0, %v322
      %v324 = vpop.f32.mrf.mxu0
      %v325 = vadd.f32 0.0, %v324
      %326 = vmatmul.bf16.gmra.mxu0 %v303
      %v327 = vpop.f32.mrf.mxu0
      %v328 = vadd.f32 0.0, %v327
      %v329 = vpop.f32.mrf.mxu0
      %v330 = vadd.f32 0.0, %v329
      %331 = vmatmul.bf16.gmra.mxu0 %v306
      %v332 = vpop.f32.mrf.mxu0
      %v333 = vadd.f32 0.0, %v332
      %v334 = vpop.f32.mrf.mxu0
      %v335 = vadd.f32 0.0, %v334
      %336 = vdwg.mxu0
      %v345 = vunpack.c.l.b16 %v247
      %v346 = vunpack.c.l.b16 %v248
      %v347 = vunpack.c.l.b16 %v249
      %v348 = vunpack.c.l.b16 %v250
      %v349 = vunpack.c.l.b16 %v251
      %v350 = vunpack.c.l.b16 %v252
      %v351 = vunpack.c.l.b16 %v253
      %v352 = vunpack.c.l.b16 %v254
      %v353 = vpack.c.b16 %v346, %v345
      %v354 = vpack.c.b16 %v348, %v347
      %v355 = vpack.c.b16 %v350, %v349
      %v356 = vpack.c.b16 %v352, %v351
      %v359 = vunpack.c.l.b16 %v255
      %v360 = vunpack.c.l.b16 %v256
      %v361 = vpack.c.b16 %v360, %v359
      %v364 = vsel %vm295, %v353, 0
      %v367 = vsel %vm295, %v354, 0
      %v370 = vsel %vm295, %v355, 0
      %v373 = vsel %vm295, %v356, 0
      %375 = vmatpush.bf16.msra.mxu0 0
      %376 = vmatpush.bf16.msra.mxu0 0
      %377 = vmatpush.bf16.msra.mxu0 0
      %378 = vmatpush.bf16.msra.mxu0 0
      %379 = vmatpush.bf16.msra.mxu0 0
      %380 = vmatpush.bf16.msra.mxu0 0
      %381 = vmatpush.bf16.msra.mxu0 0
      %382 = vmatpush.bf16.msra.mxu0 %v361
      %383 = vmatmul.bf16.gmra.mxu0 %v364
      %v384 = vpop.f32.mrf.mxu0
      %v385 = vadd.f32 %v318, %v384
      %v386 = vpop.f32.mrf.mxu0
      %v387 = vadd.f32 %v320, %v386
      %388 = vmatmul.bf16.gmra.mxu0 %v367
      %v389 = vpop.f32.mrf.mxu0
      %v390 = vadd.f32 %v323, %v389
      %v391 = vpop.f32.mrf.mxu0
      %v392 = vadd.f32 %v325, %v391
      %393 = vmatmul.bf16.gmra.mxu0 %v370
      %v394 = vpop.f32.mrf.mxu0
      %v395 = vadd.f32 %v328, %v394
      %v396 = vpop.f32.mrf.mxu0
      %v397 = vadd.f32 %v330, %v396
      %398 = vmatmul.bf16.gmra.mxu0 %v373
      %v399 = vpop.f32.mrf.mxu0
      %v400 = vadd.f32 %v333, %v399
      %v401 = vpop.f32.mrf.mxu0
      %v402 = vadd.f32 %v335, %v401
      %403 = vdwg.mxu0
      %v404 = vld [vmem:[%s232] sm:$0xf]
      %v405 = vld [vmem:[%s232 + $0x4] sm:$0x1]
      %v406 = vld [vmem:[%s232 + $0x8] sm:$0xf]
      %v407 = vld [vmem:[%s232 + $0xc] sm:$0x1]
      %v408 = vld [vmem:[%s232 + $0x10] sm:$0xf]
      %v409 = vld [vmem:[%s232 + $0x14] sm:$0x1]
      %v410 = vld [vmem:[%s232 + $0x18] sm:$0xf]
      %v411 = vld [vmem:[%s232 + $0x1c] sm:$0x1]
      %v412 = vld [vmem:[%s232 + $0x20] sm:$0xf]
      %v413 = vld [vmem:[%s232 + $0x24] sm:$0x1]
      %v414 = vld [vmem:[%s232 + $0x28] sm:$0xf]
      %v415 = vld [vmem:[%s232 + $0x2c] sm:$0x1]
      %v416 = vld [vmem:[%s232 + $0x30] sm:$0xf]
      %v417 = vld [vmem:[%s232 + $0x34] sm:$0x1]
      %v418 = vld [vmem:[%s232 + $0x38] sm:$0xf]
      %v419 = vld [vmem:[%s232 + $0x3c] sm:$0x1]
      %vm420 = vsmask.f32 3328
      %vm421 = vsmask.f32 7440
      %vm422 = vmor %vm420, %vm421
      %v424 = vshrl.u32 %v404, 16
      %v426 = vrot.slane %v424, 4
      %v427 = vshll.u32 %v404, 16
      %v429 = vrot.slane %v427, 5
      %v430 = vor.u32 %v426, %v429
      %v431 = vrot.slane %v430, 4
      %v433 = vshll.u32 %v405, 16
      %v435 = vrot.slane %v433, 5
      %v436 = vsel %vm422, %v431, %v435
      %v438 = vshrl.u32 %v406, 16
      %v440 = vrot.slane %v438, 4
      %v441 = vshll.u32 %v406, 16
      %v443 = vrot.slane %v441, 5
      %v444 = vor.u32 %v440, %v443
      %v445 = vrot.slane %v444, 4
      %v447 = vshll.u32 %v407, 16
      %v449 = vrot.slane %v447, 5
      %v450 = vsel %vm422, %v445, %v449
      %v452 = vshrl.u32 %v408, 16
      %v454 = vrot.slane %v452, 4
      %v455 = vshll.u32 %v408, 16
      %v457 = vrot.slane %v455, 5
      %v458 = vor.u32 %v454, %v457
      %v459 = vrot.slane %v458, 4
      %v461 = vshll.u32 %v409, 16
      %v463 = vrot.slane %v461, 5
      %v464 = vsel %vm422, %v459, %v463
      %v466 = vshrl.u32 %v410, 16
      %v468 = vrot.slane %v466, 4
      %v469 = vshll.u32 %v410, 16
      %v471 = vrot.slane %v469, 5
      %v472 = vor.u32 %v468, %v471
      %v473 = vrot.slane %v472, 4
      %v475 = vshll.u32 %v411, 16
      %v477 = vrot.slane %v475, 5
      %v478 = vsel %vm422, %v473, %v477
      %v480 = vshrl.u32 %v412, 16
      %v482 = vrot.slane %v480, 4
      %v483 = vshll.u32 %v412, 16
      %v485 = vrot.slane %v483, 5
      %v486 = vor.u32 %v482, %v485
      %v487 = vrot.slane %v486, 4
      %v489 = vshll.u32 %v413, 16
      %v491 = vrot.slane %v489, 5
      %v492 = vsel %vm422, %v487, %v491
      %v494 = vshrl.u32 %v414, 16
      %v496 = vrot.slane %v494, 4
      %v497 = vshll.u32 %v414, 16
      %v499 = vrot.slane %v497, 5
      %v500 = vor.u32 %v496, %v499
      %v501 = vrot.slane %v500, 4
      %v503 = vshll.u32 %v415, 16
      %v505 = vrot.slane %v503, 5
      %v506 = vsel %vm422, %v501, %v505
      %v508 = vshrl.u32 %v416, 16
      %v510 = vrot.slane %v508, 4
      %v511 = vshll.u32 %v416, 16
      %v513 = vrot.slane %v511, 5
      %v514 = vor.u32 %v510, %v513
      %v515 = vrot.slane %v514, 4
      %v517 = vshll.u32 %v417, 16
      %v519 = vrot.slane %v517, 5
      %v520 = vsel %vm422, %v515, %v519
      %v522 = vshrl.u32 %v418, 16
      %v524 = vrot.slane %v522, 4
      %v525 = vshll.u32 %v418, 16
      %v527 = vrot.slane %v525, 5
      %v528 = vor.u32 %v524, %v527
      %v529 = vrot.slane %v528, 4
      %v531 = vshll.u32 %v419, 16
      %v533 = vrot.slane %v531, 5
      %v534 = vsel %vm422, %v529, %v533
      %s535 = scalar_lea.vmem %s1, 16
      %v536 = vld [vmem:[%s535] sm:$0xf]
      %v537 = vld [vmem:[%s535 + $0x4] sm:$0xf]
      %v538 = vunpack.c.l.b16 %v436
      %v539 = vunpack.c.l.b16 %v450
      %v540 = vunpack.c.l.b16 %v464
      %v541 = vunpack.c.l.b16 %v478
      %v542 = vunpack.c.l.b16 %v492
      %v543 = vunpack.c.l.b16 %v506
      %v544 = vunpack.c.l.b16 %v520
      %v545 = vunpack.c.l.b16 %v534
      %v546 = vpack.c.b16 %v539, %v538
      %v547 = vpack.c.b16 %v541, %v540
      %v548 = vpack.c.b16 %v543, %v542
      %v549 = vpack.c.b16 %v545, %v544
      %v552 = vunpack.c.l.b16 %v536
      %v553 = vunpack.c.l.b16 %v537
      %v554 = vpack.c.b16 %v553, %v552
      %v557 = vsel %vm295, %v546, 0
      %v560 = vsel %vm295, %v547, 0
      %v563 = vsel %vm295, %v548, 0
      %v566 = vsel %vm295, %v549, 0
      %568 = vmatpush.bf16.msra.mxu0 0
      %569 = vmatpush.bf16.msra.mxu0 0
      %570 = vmatpush.bf16.msra.mxu0 0
      %571 = vmatpush.bf16.msra.mxu0 0
      %572 = vmatpush.bf16.msra.mxu0 0
      %573 = vmatpush.bf16.msra.mxu0 0
      %574 = vmatpush.bf16.msra.mxu0 0
      %575 = vmatpush.bf16.msra.mxu0 %v554
      %576 = vmatmul.bf16.gmra.mxu0 %v557
      %v577 = vpop.f32.mrf.mxu0
      %v578 = vadd.f32 0.0, %v577
      %v579 = vpop.f32.mrf.mxu0
      %v580 = vadd.f32 0.0, %v579
      %581 = vmatmul.bf16.gmra.mxu0 %v560
      %v582 = vpop.f32.mrf.mxu0
      %v583 = vadd.f32 0.0, %v582
      %v584 = vpop.f32.mrf.mxu0
      %v585 = vadd.f32 0.0, %v584
      %586 = vmatmul.bf16.gmra.mxu0 %v563
      %v587 = vpop.f32.mrf.mxu0
      %v588 = vadd.f32 0.0, %v587
      %v589 = vpop.f32.mrf.mxu0
      %v590 = vadd.f32 0.0, %v589
      %591 = vmatmul.bf16.gmra.mxu0 %v566
      %v592 = vpop.f32.mrf.mxu0
      %v593 = vadd.f32 0.0, %v592
      %v594 = vpop.f32.mrf.mxu0
      %v595 = vadd.f32 0.0, %v594
      %596 = vdwg.mxu0
      %v597 = vadd.f32 %v385, %v578
      %v598 = vadd.f32 %v387, %v580
      %v599 = vadd.f32 %v390, %v583
      %v600 = vadd.f32 %v392, %v585
      %v601 = vadd.f32 %v395, %v588
      %v602 = vadd.f32 %v397, %v590
      %v603 = vadd.f32 %v400, %v593
      %v604 = vadd.f32 %v402, %v595
      %s605 = scalar_lea.vmem %s232, 144
      %v606 = vld [vmem:[%s605] sm:$0xf]
      %v607 = vld [vmem:[%s605 + $0x8] sm:$0xf]
      %v608 = vld [vmem:[%s605 + $0x10] sm:$0xf]
      %v609 = vld [vmem:[%s605 + $0x18] sm:$0xf]
      %v610 = vld [vmem:[%s605 + $0x20] sm:$0xf]
      %v611 = vld [vmem:[%s605 + $0x28] sm:$0xf]
      %v612 = vld [vmem:[%s605 + $0x30] sm:$0xf]
      %v613 = vld [vmem:[%s605 + $0x38] sm:$0xf]
      %s614 = scalar_lea.vmem %s1, 24
      %v615 = vld [vmem:[%s614] sm:$0xf]
      %v616 = vld [vmem:[%s614 + $0x4] sm:$0xf]
      %v625 = vunpack.c.l.b16 %v606
      %v626 = vunpack.c.l.b16 %v607
      %v627 = vunpack.c.l.b16 %v608
      %v628 = vunpack.c.l.b16 %v609
      %v629 = vunpack.c.l.b16 %v610
      %v630 = vunpack.c.l.b16 %v611
      %v631 = vunpack.c.l.b16 %v612
      %v632 = vunpack.c.l.b16 %v613
      %v633 = vpack.c.b16 %v626, %v625
      %v634 = vpack.c.b16 %v628, %v627
      %v635 = vpack.c.b16 %v630, %v629
      %v636 = vpack.c.b16 %v632, %v631
      %v639 = vunpack.c.l.b16 %v615
      %v640 = vunpack.c.l.b16 %v616
      %v641 = vpack.c.b16 %v640, %v639
      %v644 = vsel %vm295, %v633, 0
      %v647 = vsel %vm295, %v634, 0
      %v650 = vsel %vm295, %v635, 0
      %v653 = vsel %vm295, %v636, 0
      %655 = vmatpush.bf16.msra.mxu0 0
      %656 = vmatpush.bf16.msra.mxu0 0
      %657 = vmatpush.bf16.msra.mxu0 0
      %658 = vmatpush.bf16.msra.mxu0 0
      %659 = vmatpush.bf16.msra.mxu0 0
      %660 = vmatpush.bf16.msra.mxu0 0
      %661 = vmatpush.bf16.msra.mxu0 0
      %662 = vmatpush.bf16.msra.mxu0 %v641
      %663 = vmatmul.bf16.gmra.mxu0 %v644
      %v664 = vpop.f32.mrf.mxu0
      %v665 = vadd.f32 0.0, %v664
      %v666 = vpop.f32.mrf.mxu0
      %v667 = vadd.f32 0.0, %v666
      %668 = vmatmul.bf16.gmra.mxu0 %v647
      %v669 = vpop.f32.mrf.mxu0
      %v670 = vadd.f32 0.0, %v669
      %v671 = vpop.f32.mrf.mxu0
      %v672 = vadd.f32 0.0, %v671
      %673 = vmatmul.bf16.gmra.mxu0 %v650
      %v674 = vpop.f32.mrf.mxu0
      %v675 = vadd.f32 0.0, %v674
      %v676 = vpop.f32.mrf.mxu0
      %v677 = vadd.f32 0.0, %v676
      %678 = vmatmul.bf16.gmra.mxu0 %v653
      %v679 = vpop.f32.mrf.mxu0
      %v680 = vadd.f32 0.0, %v679
      %v681 = vpop.f32.mrf.mxu0
      %v682 = vadd.f32 0.0, %v681
      %683 = vdwg.mxu0
      %v684 = vadd.f32 %v597, %v665
      %v685 = vadd.f32 %v598, %v667
      %v686 = vadd.f32 %v599, %v670
      %v687 = vadd.f32 %v600, %v672
      %v688 = vadd.f32 %v601, %v675
      %v689 = vadd.f32 %v602, %v677
      %v690 = vadd.f32 %v603, %v680
      %v691 = vadd.f32 %v604, %v682
      %s692 = scalar_lea.vmem %s232, 216
      %v693 = vld [vmem:[%s692] sm:$0xf]
      %v694 = vld [vmem:[%s692 + $0x8] sm:$0xf]
      %v695 = vld [vmem:[%s692 + $0x10] sm:$0xf]
      %v696 = vld [vmem:[%s692 + $0x18] sm:$0xf]
      %v697 = vld [vmem:[%s692 + $0x20] sm:$0xf]
      %v698 = vld [vmem:[%s692 + $0x28] sm:$0xf]
      %v699 = vld [vmem:[%s692 + $0x30] sm:$0xf]
      %v700 = vld [vmem:[%s692 + $0x38] sm:$0xf]
      %s701 = scalar_lea.vmem %s1, 32
      %v702 = vld [vmem:[%s701] sm:$0xf]
      %v703 = vld [vmem:[%s701 + $0x4] sm:$0xf]
      %v712 = vunpack.c.l.b16 %v693
      %v713 = vunpack.c.l.b16 %v694
      %v714 = vunpack.c.l.b16 %v695
      %v715 = vunpack.c.l.b16 %v696
      %v716 = vunpack.c.l.b16 %v697
      %v717 = vunpack.c.l.b16 %v698
      %v718 = vunpack.c.l.b16 %v699
      %v719 = vunpack.c.l.b16 %v700
      %v720 = vpack.c.b16 %v713, %v712
      %v721 = vpack.c.b16 %v715, %v714
      %v722 = vpack.c.b16 %v717, %v716
      %v723 = vpack.c.b16 %v719, %v718
      %v726 = vunpack.c.l.b16 %v702
      %v727 = vunpack.c.l.b16 %v703
      %v728 = vpack.c.b16 %v727, %v726
      %v731 = vsel %vm295, %v720, 0
      %v734 = vsel %vm295, %v721, 0
      %v737 = vsel %vm295, %v722, 0
      %v740 = vsel %vm295, %v723, 0
      %742 = vmatpush.bf16.msra.mxu0 0
      %743 = vmatpush.bf16.msra.mxu0 0
      %744 = vmatpush.bf16.msra.mxu0 0
      %745 = vmatpush.bf16.msra.mxu0 0
      %746 = vmatpush.bf16.msra.mxu0 0
      %747 = vmatpush.bf16.msra.mxu0 0
      %748 = vmatpush.bf16.msra.mxu0 0
      %749 = vmatpush.bf16.msra.mxu0 %v728
      %750 = vmatmul.bf16.gmra.mxu0 %v731
      %v751 = vpop.f32.mrf.mxu0
      %v752 = vadd.f32 0.0, %v751
      %v753 = vpop.f32.mrf.mxu0
      %v754 = vadd.f32 0.0, %v753
      %755 = vmatmul.bf16.gmra.mxu0 %v734
      %v756 = vpop.f32.mrf.mxu0
      %v757 = vadd.f32 0.0, %v756
      %v758 = vpop.f32.mrf.mxu0
      %v759 = vadd.f32 0.0, %v758
      %760 = vmatmul.bf16.gmra.mxu0 %v737
      %v761 = vpop.f32.mrf.mxu0
      %v762 = vadd.f32 0.0, %v761
      %v763 = vpop.f32.mrf.mxu0
      %v764 = vadd.f32 0.0, %v763
      %765 = vmatmul.bf16.gmra.mxu0 %v740
      %v766 = vpop.f32.mrf.mxu0
      %v767 = vadd.f32 0.0, %v766
      %v768 = vpop.f32.mrf.mxu0
      %v769 = vadd.f32 0.0, %v768
      %770 = vdwg.mxu0
      %v771 = vadd.f32 %v684, %v752
      %v772 = vadd.f32 %v685, %v754
      %v773 = vadd.f32 %v686, %v757
      %v774 = vadd.f32 %v687, %v759
      %v775 = vadd.f32 %v688, %v762
      %v776 = vadd.f32 %v689, %v764
      %v777 = vadd.f32 %v690, %v767
      %v778 = vadd.f32 %v691, %v769
      %v779 = vld [vmem:[%s605] sm:$0xf]
      %v780 = vld [vmem:[%s605 + $0x4] sm:$0x1]
      %v781 = vld [vmem:[%s605 + $0x8] sm:$0xf]
      %v782 = vld [vmem:[%s605 + $0xc] sm:$0x1]
      %v783 = vld [vmem:[%s605 + $0x10] sm:$0xf]
      %v784 = vld [vmem:[%s605 + $0x14] sm:$0x1]
      %v785 = vld [vmem:[%s605 + $0x18] sm:$0xf]
      %v786 = vld [vmem:[%s605 + $0x1c] sm:$0x1]
      %v787 = vld [vmem:[%s605 + $0x20] sm:$0xf]
      %v788 = vld [vmem:[%s605 + $0x24] sm:$0x1]
      %v789 = vld [vmem:[%s605 + $0x28] sm:$0xf]
      %v790 = vld [vmem:[%s605 + $0x2c] sm:$0x1]
      %v791 = vld [vmem:[%s605 + $0x30] sm:$0xf]
      %v792 = vld [vmem:[%s605 + $0x34] sm:$0x1]
      %v793 = vld [vmem:[%s605 + $0x38] sm:$0xf]
      %v794 = vld [vmem:[%s605 + $0x3c] sm:$0x1]
      %v796 = vshrl.u32 %v779, 16
      %v798 = vrot.slane %v796, 4
      %v799 = vshll.u32 %v779, 16
      %v801 = vrot.slane %v799, 5
      %v802 = vor.u32 %v798, %v801
      %v803 = vrot.slane %v802, 4
      %v805 = vshll.u32 %v780, 16
      %v807 = vrot.slane %v805, 5
      %v808 = vsel %vm422, %v803, %v807
      %v810 = vshrl.u32 %v781, 16
      %v812 = vrot.slane %v810, 4
      %v813 = vshll.u32 %v781, 16
      %v815 = vrot.slane %v813, 5
      %v816 = vor.u32 %v812, %v815
      %v817 = vrot.slane %v816, 4
      %v819 = vshll.u32 %v782, 16
      %v821 = vrot.slane %v819, 5
      %v822 = vsel %vm422, %v817, %v821
      %v824 = vshrl.u32 %v783, 16
      %v826 = vrot.slane %v824, 4
      %v827 = vshll.u32 %v783, 16
      %v829 = vrot.slane %v827, 5
      %v830 = vor.u32 %v826, %v829
      %v831 = vrot.slane %v830, 4
      %v833 = vshll.u32 %v784, 16
      %v835 = vrot.slane %v833, 5
      %v836 = vsel %vm422, %v831, %v835
      %v838 = vshrl.u32 %v785, 16
      %v840 = vrot.slane %v838, 4
      %v841 = vshll.u32 %v785, 16
      %v843 = vrot.slane %v841, 5
      %v844 = vor.u32 %v840, %v843
      %v845 = vrot.slane %v844, 4
      %v847 = vshll.u32 %v786, 16
      %v849 = vrot.slane %v847, 5
      %v850 = vsel %vm422, %v845, %v849
      %v852 = vshrl.u32 %v787, 16
      %v854 = vrot.slane %v852, 4
      %v855 = vshll.u32 %v787, 16
      %v857 = vrot.slane %v855, 5
      %v858 = vor.u32 %v854, %v857
      %v859 = vrot.slane %v858, 4
      %v861 = vshll.u32 %v788, 16
      %v863 = vrot.slane %v861, 5
      %v864 = vsel %vm422, %v859, %v863
      %v866 = vshrl.u32 %v789, 16
      %v868 = vrot.slane %v866, 4
      %v869 = vshll.u32 %v789, 16
      %v871 = vrot.slane %v869, 5
      %v872 = vor.u32 %v868, %v871
      %v873 = vrot.slane %v872, 4
      %v875 = vshll.u32 %v790, 16
      %v877 = vrot.slane %v875, 5
      %v878 = vsel %vm422, %v873, %v877
      %v880 = vshrl.u32 %v791, 16
      %v882 = vrot.slane %v880, 4
      %v883 = vshll.u32 %v791, 16
      %v885 = vrot.slane %v883, 5
      %v886 = vor.u32 %v882, %v885
      %v887 = vrot.slane %v886, 4
      %v889 = vshll.u32 %v792, 16
      %v891 = vrot.slane %v889, 5
      %v892 = vsel %vm422, %v887, %v891
      %v894 = vshrl.u32 %v793, 16
      %v896 = vrot.slane %v894, 4
      %v897 = vshll.u32 %v793, 16
      %v899 = vrot.slane %v897, 5
      %v900 = vor.u32 %v896, %v899
      %v901 = vrot.slane %v900, 4
      %v903 = vshll.u32 %v794, 16
      %v905 = vrot.slane %v903, 5
      %v906 = vsel %vm422, %v901, %v905
      %s907 = scalar_lea.vmem %s1, 40
      %v908 = vld [vmem:[%s907] sm:$0xf]
      %v909 = vld [vmem:[%s907 + $0x4] sm:$0xf]
      %v910 = vunpack.c.l.b16 %v808
      %v911 = vunpack.c.l.b16 %v822
      %v912 = vunpack.c.l.b16 %v836
      %v913 = vunpack.c.l.b16 %v850
      %v914 = vunpack.c.l.b16 %v864
      %v915 = vunpack.c.l.b16 %v878
      %v916 = vunpack.c.l.b16 %v892
      %v917 = vunpack.c.l.b16 %v906
      %v918 = vpack.c.b16 %v911, %v910
      %v919 = vpack.c.b16 %v913, %v912
      %v920 = vpack.c.b16 %v915, %v914
      %v921 = vpack.c.b16 %v917, %v916
      %v924 = vunpack.c.l.b16 %v908
      %v925 = vunpack.c.l.b16 %v909
      %v926 = vpack.c.b16 %v925, %v924
      %v929 = vsel %vm295, %v918, 0
      %v932 = vsel %vm295, %v919, 0
      %v935 = vsel %vm295, %v920, 0
      %v938 = vsel %vm295, %v921, 0
      %940 = vmatpush.bf16.msra.mxu0 0
      %941 = vmatpush.bf16.msra.mxu0 0
      %942 = vmatpush.bf16.msra.mxu0 0
      %943 = vmatpush.bf16.msra.mxu0 0
      %944 = vmatpush.bf16.msra.mxu0 0
      %945 = vmatpush.bf16.msra.mxu0 0
      %946 = vmatpush.bf16.msra.mxu0 0
      %947 = vmatpush.bf16.msra.mxu0 %v926
      %948 = vmatmul.bf16.gmra.mxu0 %v929
      %v949 = vpop.f32.mrf.mxu0
      %v950 = vadd.f32 0.0, %v949
      %v951 = vpop.f32.mrf.mxu0
      %v952 = vadd.f32 0.0, %v951
      %953 = vmatmul.bf16.gmra.mxu0 %v932
      %v954 = vpop.f32.mrf.mxu0
      %v955 = vadd.f32 0.0, %v954
      %v956 = vpop.f32.mrf.mxu0
      %v957 = vadd.f32 0.0, %v956
      %958 = vmatmul.bf16.gmra.mxu0 %v935
      %v959 = vpop.f32.mrf.mxu0
      %v960 = vadd.f32 0.0, %v959
      %v961 = vpop.f32.mrf.mxu0
      %v962 = vadd.f32 0.0, %v961
      %963 = vmatmul.bf16.gmra.mxu0 %v938
      %v964 = vpop.f32.mrf.mxu0
      %v965 = vadd.f32 0.0, %v964
      %v966 = vpop.f32.mrf.mxu0
      %v967 = vadd.f32 0.0, %v966
      %968 = vdwg.mxu0
      %v969 = vadd.f32 %v771, %v950
      %v970 = vadd.f32 %v772, %v952
      %v971 = vadd.f32 %v773, %v955
      %v972 = vadd.f32 %v774, %v957
      %v973 = vadd.f32 %v775, %v960
      %v974 = vadd.f32 %v776, %v962
      %v975 = vadd.f32 %v777, %v965
      %v976 = vadd.f32 %v778, %v967
      %s977 = scalar_lea.vmem %s232, 8
      %v978 = vld [vmem:[%s977] sm:$0xf]
      %v979 = vld [vmem:[%s977 + $0x8] sm:$0xf]
      %v980 = vld [vmem:[%s977 + $0x10] sm:$0xf]
      %v981 = vld [vmem:[%s977 + $0x18] sm:$0xf]
      %v982 = vld [vmem:[%s977 + $0x20] sm:$0xf]
      %v983 = vld [vmem:[%s977 + $0x28] sm:$0xf]
      %v984 = vld [vmem:[%s977 + $0x30] sm:$0xf]
      %v985 = vld [vmem:[%s977 + $0x38] sm:$0xf]
      %s986 = scalar_lea.vmem %s1, 48
      %v987 = vld [vmem:[%s986] sm:$0xf]
      %v988 = vld [vmem:[%s986 + $0x4] sm:$0xf]
      %v997 = vunpack.c.l.b16 %v978
      %v998 = vunpack.c.l.b16 %v979
      %v999 = vunpack.c.l.b16 %v980
      %v1000 = vunpack.c.l.b16 %v981
      %v1001 = vunpack.c.l.b16 %v982
      %v1002 = vunpack.c.l.b16 %v983
      %v1003 = vunpack.c.l.b16 %v984
      %v1004 = vunpack.c.l.b16 %v985
      %v1005 = vpack.c.b16 %v998, %v997
      %v1006 = vpack.c.b16 %v1000, %v999
      %v1007 = vpack.c.b16 %v1002, %v1001
      %v1008 = vpack.c.b16 %v1004, %v1003
      %v1011 = vunpack.c.l.b16 %v987
      %v1012 = vunpack.c.l.b16 %v988
      %v1013 = vpack.c.b16 %v1012, %v1011
      %v1016 = vsel %vm295, %v1005, 0
      %v1019 = vsel %vm295, %v1006, 0
      %v1022 = vsel %vm295, %v1007, 0
      %v1025 = vsel %vm295, %v1008, 0
      %1027 = vmatpush.bf16.msra.mxu0 0
      %1028 = vmatpush.bf16.msra.mxu0 0
      %1029 = vmatpush.bf16.msra.mxu0 0
      %1030 = vmatpush.bf16.msra.mxu0 0
      %1031 = vmatpush.bf16.msra.mxu0 0
      %1032 = vmatpush.bf16.msra.mxu0 0
      %1033 = vmatpush.bf16.msra.mxu0 0
      %1034 = vmatpush.bf16.msra.mxu0 %v1013
      %1035 = vmatmul.bf16.gmra.mxu0 %v1016
      %v1036 = vpop.f32.mrf.mxu0
      %v1037 = vadd.f32 0.0, %v1036
      %v1038 = vpop.f32.mrf.mxu0
      %v1039 = vadd.f32 0.0, %v1038
      %1040 = vmatmul.bf16.gmra.mxu0 %v1019
      %v1041 = vpop.f32.mrf.mxu0
      %v1042 = vadd.f32 0.0, %v1041
      %v1043 = vpop.f32.mrf.mxu0
      %v1044 = vadd.f32 0.0, %v1043
      %1045 = vmatmul.bf16.gmra.mxu0 %v1022
      %v1046 = vpop.f32.mrf.mxu0
      %v1047 = vadd.f32 0.0, %v1046
      %v1048 = vpop.f32.mrf.mxu0
      %v1049 = vadd.f32 0.0, %v1048
      %1050 = vmatmul.bf16.gmra.mxu0 %v1025
      %v1051 = vpop.f32.mrf.mxu0
      %v1052 = vadd.f32 0.0, %v1051
      %v1053 = vpop.f32.mrf.mxu0
      %v1054 = vadd.f32 0.0, %v1053
      %1055 = vdwg.mxu0
      %v1056 = vadd.f32 %v969, %v1037
      %v1057 = vadd.f32 %v970, %v1039
      %v1058 = vadd.f32 %v971, %v1042
      %v1059 = vadd.f32 %v972, %v1044
      %v1060 = vadd.f32 %v973, %v1047
      %v1061 = vadd.f32 %v974, %v1049
      %v1062 = vadd.f32 %v975, %v1052
      %v1063 = vadd.f32 %v976, %v1054
      %s1064 = scalar_lea.vmem %s232, 80
      %v1065 = vld [vmem:[%s1064] sm:$0xf]
      %v1066 = vld [vmem:[%s1064 + $0x8] sm:$0xf]
      %v1067 = vld [vmem:[%s1064 + $0x10] sm:$0xf]
      %v1068 = vld [vmem:[%s1064 + $0x18] sm:$0xf]
      %v1069 = vld [vmem:[%s1064 + $0x20] sm:$0xf]
      %v1070 = vld [vmem:[%s1064 + $0x28] sm:$0xf]
      %v1071 = vld [vmem:[%s1064 + $0x30] sm:$0xf]
      %v1072 = vld [vmem:[%s1064 + $0x38] sm:$0xf]
      %s1073 = scalar_lea.vmem %s1, 56
      %v1074 = vld [vmem:[%s1073] sm:$0xf]
      %v1075 = vld [vmem:[%s1073 + $0x4] sm:$0xf]
      %v1084 = vunpack.c.l.b16 %v1065
      %v1085 = vunpack.c.l.b16 %v1066
      %v1086 = vunpack.c.l.b16 %v1067
      %v1087 = vunpack.c.l.b16 %v1068
      %v1088 = vunpack.c.l.b16 %v1069
      %v1089 = vunpack.c.l.b16 %v1070
      %v1090 = vunpack.c.l.b16 %v1071
      %v1091 = vunpack.c.l.b16 %v1072
      %v1092 = vpack.c.b16 %v1085, %v1084
      %v1093 = vpack.c.b16 %v1087, %v1086
      %v1094 = vpack.c.b16 %v1089, %v1088
      %v1095 = vpack.c.b16 %v1091, %v1090
      %v1098 = vunpack.c.l.b16 %v1074
      %v1099 = vunpack.c.l.b16 %v1075
      %v1100 = vpack.c.b16 %v1099, %v1098
      %v1103 = vsel %vm295, %v1092, 0
      %v1106 = vsel %vm295, %v1093, 0
      %v1109 = vsel %vm295, %v1094, 0
      %v1112 = vsel %vm295, %v1095, 0
      %1114 = vmatpush.bf16.msra.mxu0 0
      %1115 = vmatpush.bf16.msra.mxu0 0
      %1116 = vmatpush.bf16.msra.mxu0 0
      %1117 = vmatpush.bf16.msra.mxu0 0
      %1118 = vmatpush.bf16.msra.mxu0 0
      %1119 = vmatpush.bf16.msra.mxu0 0
      %1120 = vmatpush.bf16.msra.mxu0 0
      %1121 = vmatpush.bf16.msra.mxu0 %v1100
      %1122 = vmatmul.bf16.gmra.mxu0 %v1103
      %v1123 = vpop.f32.mrf.mxu0
      %v1124 = vadd.f32 0.0, %v1123
      %v1125 = vpop.f32.mrf.mxu0
      %v1126 = vadd.f32 0.0, %v1125
      %1127 = vmatmul.bf16.gmra.mxu0 %v1106
      %v1128 = vpop.f32.mrf.mxu0
      %v1129 = vadd.f32 0.0, %v1128
      %v1130 = vpop.f32.mrf.mxu0
      %v1131 = vadd.f32 0.0, %v1130
      %1132 = vmatmul.bf16.gmra.mxu0 %v1109
      %v1133 = vpop.f32.mrf.mxu0
      %v1134 = vadd.f32 0.0, %v1133
      %v1135 = vpop.f32.mrf.mxu0
      %v1136 = vadd.f32 0.0, %v1135
      %1137 = vmatmul.bf16.gmra.mxu0 %v1112
      %v1138 = vpop.f32.mrf.mxu0
      %v1139 = vadd.f32 0.0, %v1138
      %v1140 = vpop.f32.mrf.mxu0
      %v1141 = vadd.f32 0.0, %v1140
      %1142 = vdwg.mxu0
      %v1143 = vadd.f32 %v1056, %v1124
      %v1144 = vadd.f32 %v1057, %v1126
      %v1145 = vadd.f32 %v1058, %v1129
      %v1146 = vadd.f32 %v1059, %v1131
      %v1147 = vadd.f32 %v1060, %v1134
      %v1148 = vadd.f32 %v1061, %v1136
      %v1149 = vadd.f32 %v1062, %v1139
      %v1150 = vadd.f32 %v1063, %v1141
      %v1151 = vld [vmem:[%s977] sm:$0xf]
      %v1152 = vld [vmem:[%s977 + $0x4] sm:$0x1]
      %v1153 = vld [vmem:[%s977 + $0x8] sm:$0xf]
      %v1154 = vld [vmem:[%s977 + $0xc] sm:$0x1]
      %v1155 = vld [vmem:[%s977 + $0x10] sm:$0xf]
      %v1156 = vld [vmem:[%s977 + $0x14] sm:$0x1]
      %v1157 = vld [vmem:[%s977 + $0x18] sm:$0xf]
      %v1158 = vld [vmem:[%s977 + $0x1c] sm:$0x1]
      %v1159 = vld [vmem:[%s977 + $0x20] sm:$0xf]
      %v1160 = vld [vmem:[%s977 + $0x24] sm:$0x1]
      %v1161 = vld [vmem:[%s977 + $0x28] sm:$0xf]
      %v1162 = vld [vmem:[%s977 + $0x2c] sm:$0x1]
      %v1163 = vld [vmem:[%s977 + $0x30] sm:$0xf]
      %v1164 = vld [vmem:[%s977 + $0x34] sm:$0x1]
      %v1165 = vld [vmem:[%s977 + $0x38] sm:$0xf]
      %v1166 = vld [vmem:[%s977 + $0x3c] sm:$0x1]
      %v1168 = vshrl.u32 %v1151, 16
      %v1170 = vrot.slane %v1168, 4
      %v1171 = vshll.u32 %v1151, 16
      %v1173 = vrot.slane %v1171, 5
      %v1174 = vor.u32 %v1170, %v1173
      %v1175 = vrot.slane %v1174, 4
      %v1177 = vshll.u32 %v1152, 16
      %v1179 = vrot.slane %v1177, 5
      %v1180 = vsel %vm422, %v1175, %v1179
      %v1182 = vshrl.u32 %v1153, 16
      %v1184 = vrot.slane %v1182, 4
      %v1185 = vshll.u32 %v1153, 16
      %v1187 = vrot.slane %v1185, 5
      %v1188 = vor.u32 %v1184, %v1187
      %v1189 = vrot.slane %v1188, 4
      %v1191 = vshll.u32 %v1154, 16
      %v1193 = vrot.slane %v1191, 5
      %v1194 = vsel %vm422, %v1189, %v1193
      %v1196 = vshrl.u32 %v1155, 16
      %v1198 = vrot.slane %v1196, 4
      %v1199 = vshll.u32 %v1155, 16
      %v1201 = vrot.slane %v1199, 5
      %v1202 = vor.u32 %v1198, %v1201
      %v1203 = vrot.slane %v1202, 4
      %v1205 = vshll.u32 %v1156, 16
      %v1207 = vrot.slane %v1205, 5
      %v1208 = vsel %vm422, %v1203, %v1207
      %v1210 = vshrl.u32 %v1157, 16
      %v1212 = vrot.slane %v1210, 4
      %v1213 = vshll.u32 %v1157, 16
      %v1215 = vrot.slane %v1213, 5
      %v1216 = vor.u32 %v1212, %v1215
      %v1217 = vrot.slane %v1216, 4
      %v1219 = vshll.u32 %v1158, 16
      %v1221 = vrot.slane %v1219, 5
      %v1222 = vsel %vm422, %v1217, %v1221
      %v1224 = vshrl.u32 %v1159, 16
      %v1226 = vrot.slane %v1224, 4
      %v1227 = vshll.u32 %v1159, 16
      %v1229 = vrot.slane %v1227, 5
      %v1230 = vor.u32 %v1226, %v1229
      %v1231 = vrot.slane %v1230, 4
      %v1233 = vshll.u32 %v1160, 16
      %v1235 = vrot.slane %v1233, 5
      %v1236 = vsel %vm422, %v1231, %v1235
      %v1238 = vshrl.u32 %v1161, 16
      %v1240 = vrot.slane %v1238, 4
      %v1241 = vshll.u32 %v1161, 16
      %v1243 = vrot.slane %v1241, 5
      %v1244 = vor.u32 %v1240, %v1243
      %v1245 = vrot.slane %v1244, 4
      %v1247 = vshll.u32 %v1162, 16
      %v1249 = vrot.slane %v1247, 5
      %v1250 = vsel %vm422, %v1245, %v1249
      %v1252 = vshrl.u32 %v1163, 16
      %v1254 = vrot.slane %v1252, 4
      %v1255 = vshll.u32 %v1163, 16
      %v1257 = vrot.slane %v1255, 5
      %v1258 = vor.u32 %v1254, %v1257
      %v1259 = vrot.slane %v1258, 4
      %v1261 = vshll.u32 %v1164, 16
      %v1263 = vrot.slane %v1261, 5
      %v1264 = vsel %vm422, %v1259, %v1263
      %v1266 = vshrl.u32 %v1165, 16
      %v1268 = vrot.slane %v1266, 4
      %v1269 = vshll.u32 %v1165, 16
      %v1271 = vrot.slane %v1269, 5
      %v1272 = vor.u32 %v1268, %v1271
      %v1273 = vrot.slane %v1272, 4
      %v1275 = vshll.u32 %v1166, 16
      %v1277 = vrot.slane %v1275, 5
      %v1278 = vsel %vm422, %v1273, %v1277
      %s1279 = scalar_lea.vmem %s1, 64
      %v1280 = vld [vmem:[%s1279] sm:$0xf]
      %v1281 = vld [vmem:[%s1279 + $0x4] sm:$0xf]
      %v1282 = vunpack.c.l.b16 %v1180
      %v1283 = vunpack.c.l.b16 %v1194
      %v1284 = vunpack.c.l.b16 %v1208
      %v1285 = vunpack.c.l.b16 %v1222
      %v1286 = vunpack.c.l.b16 %v1236
      %v1287 = vunpack.c.l.b16 %v1250
      %v1288 = vunpack.c.l.b16 %v1264
      %v1289 = vunpack.c.l.b16 %v1278
      %v1290 = vpack.c.b16 %v1283, %v1282
      %v1291 = vpack.c.b16 %v1285, %v1284
      %v1292 = vpack.c.b16 %v1287, %v1286
      %v1293 = vpack.c.b16 %v1289, %v1288
      %v1296 = vunpack.c.l.b16 %v1280
      %v1297 = vunpack.c.l.b16 %v1281
      %v1298 = vpack.c.b16 %v1297, %v1296
      %v1301 = vsel %vm295, %v1290, 0
      %v1304 = vsel %vm295, %v1291, 0
      %v1307 = vsel %vm295, %v1292, 0
      %v1310 = vsel %vm295, %v1293, 0
      %1312 = vmatpush.bf16.msra.mxu0 0
      %1313 = vmatpush.bf16.msra.mxu0 0
      %1314 = vmatpush.bf16.msra.mxu0 0
      %1315 = vmatpush.bf16.msra.mxu0 0
      %1316 = vmatpush.bf16.msra.mxu0 0
      %1317 = vmatpush.bf16.msra.mxu0 0
      %1318 = vmatpush.bf16.msra.mxu0 0
      %1319 = vmatpush.bf16.msra.mxu0 %v1298
      %1320 = vmatmul.bf16.gmra.mxu0 %v1301
      %v1321 = vpop.f32.mrf.mxu0
      %v1322 = vadd.f32 0.0, %v1321
      %v1323 = vpop.f32.mrf.mxu0
      %v1324 = vadd.f32 0.0, %v1323
      %1325 = vmatmul.bf16.gmra.mxu0 %v1304
      %v1326 = vpop.f32.mrf.mxu0
      %v1327 = vadd.f32 0.0, %v1326
      %v1328 = vpop.f32.mrf.mxu0
      %v1329 = vadd.f32 0.0, %v1328
      %1330 = vmatmul.bf16.gmra.mxu0 %v1307
      %v1331 = vpop.f32.mrf.mxu0
      %v1332 = vadd.f32 0.0, %v1331
      %v1333 = vpop.f32.mrf.mxu0
      %v1334 = vadd.f32 0.0, %v1333
      %1335 = vmatmul.bf16.gmra.mxu0 %v1310
      %v1336 = vpop.f32.mrf.mxu0
      %v1337 = vadd.f32 0.0, %v1336
      %v1338 = vpop.f32.mrf.mxu0
      %v1339 = vadd.f32 0.0, %v1338
      %1340 = vdwg.mxu0
      %v1341 = vadd.f32 %v1143, %v1322
      %v1342 = vadd.f32 %v1144, %v1324
      %v1343 = vadd.f32 %v1145, %v1327
      %v1344 = vadd.f32 %v1146, %v1329
      %v1345 = vadd.f32 %v1147, %v1332
      %v1346 = vadd.f32 %v1148, %v1334
      %v1347 = vadd.f32 %v1149, %v1337
      %v1348 = vadd.f32 %v1150, %v1339
      %v1349 = vadd.f32 %v1341, %v1342
      %v1350 = vadd.f32 %v1349, %v1343
      %v1351 = vadd.f32 %v1350, %v1344
      %v1352 = vadd.f32 %v1351, %v1345
      %v1353 = vadd.f32 %v1352, %v1346
      %v1354 = vadd.f32 %v1353, %v1347
      %v1355 = vadd.f32 %v1354, %v1348
      %v1356 = vrot.slane %v1355, 4
      %v1357 = vadd.f32 %v1355, %v1356
      %v1358 = vrot.slane %v1357, 2
      %v1359 = vadd.f32 %v1357, %v1358
      %v1360 = vrot.slane %v1359, 1
      %v1361 = vadd.f32 %v1359, %v1360
      %1362 = vst [vmem:[%s241] sm:$0x1] %v1361
      %v1363 = vmul.f32 %v1341, %v1341
      %v1364 = vmul.f32 %v1342, %v1342
      %v1365 = vmul.f32 %v1343, %v1343
      %v1366 = vmul.f32 %v1344, %v1344
      %v1367 = vmul.f32 %v1345, %v1345
      %v1368 = vmul.f32 %v1346, %v1346
      %v1369 = vmul.f32 %v1347, %v1347
      %v1370 = vmul.f32 %v1348, %v1348
      %v1371 = vadd.f32 %v1363, %v1364
      %v1372 = vadd.f32 %v1371, %v1365
      %v1373 = vadd.f32 %v1372, %v1366
      %v1374 = vadd.f32 %v1373, %v1367
      %v1375 = vadd.f32 %v1374, %v1368
      %v1376 = vadd.f32 %v1375, %v1369
      %v1377 = vadd.f32 %v1376, %v1370
      %v1378 = vrot.slane %v1377, 4
      %v1379 = vadd.f32 %v1377, %v1378
      %v1380 = vrot.slane %v1379, 2
      %v1381 = vadd.f32 %v1379, %v1380
      %v1382 = vrot.slane %v1381, 1
      %v1383 = vadd.f32 %v1381, %v1382
      %1384 = vst [vmem:[%s241 + $0x1] sm:$0x1] %v1383
      %v1385 = vpack.c.bf16 %v1341, %v1341
      %v1386 = vpack.c.bf16 %v1342, %v1342
      %v1387 = vpack.c.bf16 %v1343, %v1343
      %v1388 = vpack.c.bf16 %v1344, %v1344
      %v1389 = vpack.c.bf16 %v1345, %v1345
      %v1390 = vpack.c.bf16 %v1346, %v1346
      %v1391 = vpack.c.bf16 %v1347, %v1347
      %v1392 = vpack.c.bf16 %v1348, %v1348
      %1393 = vst [vmem:[%s237] sm:$0xf] %v1385
      %1394 = vst [vmem:[%s237 + $0x4] sm:$0xf] %v1386
      %1395 = vst [vmem:[%s237 + $0x8] sm:$0xf] %v1387
      %1396 = vst [vmem:[%s237 + $0xc] sm:$0xf] %v1388
      %1397 = vst [vmem:[%s237 + $0x10] sm:$0xf] %v1389
      %1398 = vst [vmem:[%s237 + $0x14] sm:$0xf] %v1390
      %1399 = vst [vmem:[%s237 + $0x18] sm:$0xf] %v1391
      %1400 = vst [vmem:[%s237 + $0x1c] sm:$0xf] %v1392
      %v1401 = vld [vmem:[%s692] sm:$0xf]
      %v1402 = vld [vmem:[%s692 + $0x8] sm:$0xf]
      %v1403 = vld [vmem:[%s692 + $0x10] sm:$0xf]
      %v1404 = vld [vmem:[%s692 + $0x18] sm:$0xf]
      %v1405 = vld [vmem:[%s692 + $0x20] sm:$0xf]
      %v1406 = vld [vmem:[%s692 + $0x28] sm:$0xf]
      %v1407 = vld [vmem:[%s692 + $0x30] sm:$0xf]
      %v1408 = vld [vmem:[%s692 + $0x38] sm:$0xf]
      %v1409 = vld [vmem:[%s2] sm:$0xf]
      %v1410 = vld [vmem:[%s2 + $0x4] sm:$0xf]
      %v1419 = vunpack.c.l.b16 %v1401
      %v1420 = vunpack.c.l.b16 %v1402
      %v1421 = vunpack.c.l.b16 %v1403
      %v1422 = vunpack.c.l.b16 %v1404
      %v1423 = vunpack.c.l.b16 %v1405
      %v1424 = vunpack.c.l.b16 %v1406
      %v1425 = vunpack.c.l.b16 %v1407
      %v1426 = vunpack.c.l.b16 %v1408
      %v1427 = vpack.c.b16 %v1420, %v1419
      %v1428 = vpack.c.b16 %v1422, %v1421
      %v1429 = vpack.c.b16 %v1424, %v1423
      %v1430 = vpack.c.b16 %v1426, %v1425
      %v1433 = vunpack.c.l.b16 %v1409
      %v1434 = vunpack.c.l.b16 %v1410
      %v1435 = vpack.c.b16 %v1434, %v1433
      %v1438 = vsel %vm295, %v1427, 0
      %v1441 = vsel %vm295, %v1428, 0
      %v1444 = vsel %vm295, %v1429, 0
      %v1447 = vsel %vm295, %v1430, 0
      %1449 = vmatpush.bf16.msra.mxu0 0
      %1450 = vmatpush.bf16.msra.mxu0 0
      %1451 = vmatpush.bf16.msra.mxu0 0
      %1452 = vmatpush.bf16.msra.mxu0 0
      %1453 = vmatpush.bf16.msra.mxu0 0
      %1454 = vmatpush.bf16.msra.mxu0 0
      %1455 = vmatpush.bf16.msra.mxu0 0
      %1456 = vmatpush.bf16.msra.mxu0 %v1435
      %1457 = vmatmul.bf16.gmra.mxu0 %v1438
      %v1458 = vpop.f32.mrf.mxu0
      %v1459 = vadd.f32 0.0, %v1458
      %v1460 = vpop.f32.mrf.mxu0
      %v1461 = vadd.f32 0.0, %v1460
      %1462 = vmatmul.bf16.gmra.mxu0 %v1441
      %v1463 = vpop.f32.mrf.mxu0
      %v1464 = vadd.f32 0.0, %v1463
      %v1465 = vpop.f32.mrf.mxu0
      %v1466 = vadd.f32 0.0, %v1465
      %1467 = vmatmul.bf16.gmra.mxu0 %v1444
      %v1468 = vpop.f32.mrf.mxu0
      %v1469 = vadd.f32 0.0, %v1468
      %v1470 = vpop.f32.mrf.mxu0
      %v1471 = vadd.f32 0.0, %v1470
      %1472 = vmatmul.bf16.gmra.mxu0 %v1447
      %v1473 = vpop.f32.mrf.mxu0
      %v1474 = vadd.f32 0.0, %v1473
      %v1475 = vpop.f32.mrf.mxu0
      %v1476 = vadd.f32 0.0, %v1475
      %1477 = vdwg.mxu0
      %v1478 = vadd.f32 %v1459, %v1461
      %v1479 = vadd.f32 %v1478, %v1464
      %v1480 = vadd.f32 %v1479, %v1466
      %v1481 = vadd.f32 %v1480, %v1469
      %v1482 = vadd.f32 %v1481, %v1471
      %v1483 = vadd.f32 %v1482, %v1474
      %v1484 = vadd.f32 %v1483, %v1476
      %v1485 = vrot.slane %v1484, 4
      %v1486 = vadd.f32 %v1484, %v1485
      %v1487 = vrot.slane %v1486, 2
      %v1488 = vadd.f32 %v1486, %v1487
      %v1489 = vrot.slane %v1488, 1
      %v1490 = vadd.f32 %v1488, %v1489
      %1491 = vst [vmem:[%s245] sm:$0x1] %v1490
      %v1492 = vmul.f32 %v1459, %v1459
      %v1493 = vmul.f32 %v1461, %v1461
      %v1494 = vmul.f32 %v1464, %v1464
      %v1495 = vmul.f32 %v1466, %v1466
      %v1496 = vmul.f32 %v1469, %v1469
      %v1497 = vmul.f32 %v1471, %v1471
      %v1498 = vmul.f32 %v1474, %v1474
      %v1499 = vmul.f32 %v1476, %v1476
      %v1500 = vadd.f32 %v1492, %v1493
      %v1501 = vadd.f32 %v1500, %v1494
      %v1502 = vadd.f32 %v1501, %v1495
      %v1503 = vadd.f32 %v1502, %v1496
      %v1504 = vadd.f32 %v1503, %v1497
      %v1505 = vadd.f32 %v1504, %v1498
      %v1506 = vadd.f32 %v1505, %v1499
      %v1507 = vrot.slane %v1506, 4
      %v1508 = vadd.f32 %v1506, %v1507
      %v1509 = vrot.slane %v1508, 2
      %v1510 = vadd.f32 %v1508, %v1509
      %v1511 = vrot.slane %v1510, 1
      %v1512 = vadd.f32 %v1510, %v1511
      %1513 = vst [vmem:[%s245 + $0x1] sm:$0x1] %v1512
      %p1514 = scmp.lt.s32.totalorder %s17, 1
      %s1515 = scalar_select %p1514, %s17, 1
      %s1516 = smul.addr %s1515, 8
      %s1517 = smul.addr %s1516, 4
      %s1518 = scalar_lea.vmem %s3, %s1517
      %p1519 = scmp.lt.s32.totalorder %s17, 1
      %s1520 = scalar_select %p1519, %s17, 1
      %s1521 = smul.addr %s1520, 2
      %s1522 = scalar_lea.vmem %s4, %s1521
      %p1523 = scmp.lt.s32.totalorder %s17, 1
      %s1524 = scalar_select %p1523, %s17, 1
      %s1525 = smul.addr %s1524, 2
      %s1526 = scalar_lea.vmem %s5, %s1525
      // Predicated region
      $region33: #{basic_block_forward.3} parent=31 // pred_check
        %p1527 = pneg %p103
      $region34: #{basic_block_forward.3} parent=31 // pred_check_branch
        %1529 = sbr.rel (%p1527) target = $region36
      $region35: #{basic_block_forward.3} parent=31 // pred_region
        _
      $region36: #{basic_block_forward.3} parent=31 // pred_fallthru
        _
      // Predicated region
      $region37: #{basic_block_forward.3} parent=31 // pred_check
        %p1530 = pneg %p129
      $region38: #{basic_block_forward.3} parent=31 // pred_check_branch
        %1532 = sbr.rel (%p1530) target = $region40
      $region39: #{basic_block_forward.3} parent=31 // pred_region
        _
      $region40: #{basic_block_forward.3} parent=31 // pred_fallthru
        _
      // Predicated region
      $region41: #{basic_block_forward.3} parent=31 // pred_check
        %p1533 = pneg %p155
      $region42: #{basic_block_forward.3} parent=31 // pred_check_branch
        %1535 = sbr.rel (%p1533) target = $region44
      $region43: #{basic_block_forward.3} parent=31 // pred_region
        _
      $region44: #{basic_block_forward.3} parent=31 // pred_fallthru
        _
    $region32: #{basic_block_forward.3} parent=5 // pred_fallthru
      _
    %p1536 = scmp.le.s32.totalorder 2, %s12
    // Predicated region
    $region45: #{basic_block_forward.3} parent=5 // pred_check
      %p1537 = pneg %p1536
    $region46: #{basic_block_forward.3} parent=5 // pred_check_branch
      %1539 = sbr.rel (%p1537) target = $region48
    $region47: #{basic_block_forward.3} parent=5 // pred_region
      %s1540 = ssub.s32 %s12, 2
      // Predicated region
      $region49: #{basic_block_forward.3} parent=47 // pred_check
        %p1541 = pneg %p109
      $region50: #{basic_block_forward.3} parent=47 // pred_check_branch
        %1543 = sbr.rel (%p1541) target = $region52
      $region51: #{basic_block_forward.3} parent=47 // pred_region
        %p1544 = scmp.lt.s32.totalorder %s18, 1
        %s1545 = scalar_select %p1544, %s18, 1
        %s1546 = smul.addr %s1545, 8
        %s1547 = smul.addr %s1546, 4
        %s1548 = scalar_lea.vmem %s3, %s1547
      $region52: #{basic_block_forward.3} parent=47 // pred_fallthru
        _
      // Predicated region
      $region53: #{basic_block_forward.3} parent=47 // pred_check
        %p1549 = pneg %p135
      $region54: #{basic_block_forward.3} parent=47 // pred_check_branch
        %1551 = sbr.rel (%p1549) target = $region56
      $region55: #{basic_block_forward.3} parent=47 // pred_region
        %p1552 = scmp.lt.s32.totalorder %s18, 1
        %s1553 = scalar_select %p1552, %s18, 1
        %s1554 = smul.addr %s1553, 2
        %s1555 = scalar_lea.vmem %s4, %s1554
      $region56: #{basic_block_forward.3} parent=47 // pred_fallthru
        _
      // Predicated region
      $region57: #{basic_block_forward.3} parent=47 // pred_check
        %p1556 = pneg %p161
      $region58: #{basic_block_forward.3} parent=47 // pred_check_branch
        %1558 = sbr.rel (%p1556) target = $region60
      $region59: #{basic_block_forward.3} parent=47 // pred_region
        %p1559 = scmp.lt.s32.totalorder %s18, 1
        %s1560 = scalar_select %p1559, %s18, 1
        %s1561 = smul.addr %s1560, 2
        %s1562 = scalar_lea.vmem %s5, %s1561
      $region60: #{basic_block_forward.3} parent=47 // pred_fallthru
        _
    $region48: #{basic_block_forward.3} parent=5 // pred_fallthru
      _
  $region6: #{basic_block_forward.3} parent=0 // loop_footer
    %s16 = sadd.s32 1, %s12
  $region7: #{basic_block_forward.3} parent=0 // loop_footer_branch
    %11 = sbr.rel target = $region3
  $region8: #{basic_block_forward.3} parent=0 // loop_exit
    _

// kernel: basic_block_forward.4
$region0: #{basic_block_forward.4}
  #allocation0 [shape = 'u32[]', space=smem, size = 0x4, offset = 0x4, fixed_abs, tag = 'smem constant byte address 0x4 - core index']
  #allocation1 [shape = 'u32[72,128]{1,0:T(1,128)}', space=vmem, size = 0x9000, scoped, tag = 'internal scratch']
  #allocation2 [shape = 'bf16[10,10,128]{2,1,0:T(8,128)(2,1)}', space=vmem, size = 0xa000, scoped, tag = 'scratch operand']
  %s0 = inlined_call_operand.vmem [shape: bf16[2,8,8,128], index: 0, kind: input, shape index: {}]
  %s1 = inlined_call_operand.vmem [shape: f32[2,128], index: 1, kind: input, shape index: {}]
  %s2 = inlined_call_operand.vmem [shape: bf16[9,128,128], index: 2, kind: input, shape index: {}]
  %s3 = inlined_call_operand.vmem [shape: bf16[2,8,8,128], index: 3, kind: output, shape index: {0}]
  %s4 = inlined_call_operand.vmem [shape: f32[2,2,128], index: 4, kind: output, shape index: {1}]
  %5 = xla_tuple %s3, %s4
  %s6 = sld [smem:[#allocation0]]
  $region57: #{basic_block_forward.4} parent=0
    _
  %s8 = ssub.s32 1, %s6
  %s9 = scalar_select 0, %s8, %s6
  loop: start=0, step=1, limit=4
  $region2: #{basic_block_forward.4} parent=0 // loop_pre_header
    _
  $region3: #{basic_block_forward.4} parent=0 // loop_header
    %s11 = sphi 0, %s15
    %p12 = scmp.ge.s32.totalorder %s11, 4
    %s21 = sphi 0, %s23
    %s24 = sphi 0, %s21
    %s25 = sphi 0, %s24
    %s41 = sphi 0, %s25
    %s45 = sphi 0, %s45
    %s47 = sphi 0, %s45
    %s48 = sphi 0, %s47
    %s62 = sphi 0, %s48
    %s66 = sphi 0, %s66
    %s68 = sphi 0, %s66
    %s69 = sphi 0, %s68
    %s83 = sphi 0, %s69
    %s89 = sphi 0, %s91
    %s92 = sphi 0, %s89
    %s93 = sphi 0, %s92
    %s109 = sphi 0, %s93
    %s115 = sphi 0, %s117
    %s118 = sphi 0, %s115
    %s119 = sphi 0, %s118
    %s135 = sphi 0, %s119
  $region4: #{basic_block_forward.4} parent=0 // loop_header_branch
    %14 = sbr.rel (%p12) target = $region8
  $region5: #{basic_block_forward.4} parent=0 // loop_body
    %s16 = ssub.s32 %s11, 1
    %s17 = ssub.s32 %s11, 2
    %s18 = sadd.s32 %s11, 1
    %s19 = ssub.s32 %s11, %s18
    %p20 = scmp.eq.s32.totalorder %s19, 0
    %s22 = sadd.s32 %s21, 1
    %s23 = scalar_select %p20, %s21, %s22
    %p26 = pneg %p20
    %p27 = scmp.eq.s32.totalorder %s11, 1
    %p28 = por %p26, %p27
    %p29 = scmp.ne.s32.totalorder %s21, %s24
    %p30 = scmp.eq.s32.totalorder %s11, 0
    %p31 = por %p29, %p30
    %p32 = scmp.ne.s32.totalorder %s21, %s24
    %p33 = scmp.eq.s32.totalorder %s16, 1
    %p34 = por %p32, %p33
    %p35 = scmp.ne.s32.totalorder %s24, %s25
    %p36 = scmp.eq.s32.totalorder %s16, 0
    %p37 = por %p35, %p36
    %p38 = scmp.ne.s32.totalorder %s24, %s25
    %p39 = scmp.eq.s32.totalorder %s17, 1
    %p40 = por %p38, %p39
    %p42 = scmp.ne.s32.totalorder %s25, %s41
    %p43 = scmp.eq.s32.totalorder %s17, 0
    %p44 = por %p42, %p43
    %s46 = sadd.s32 %s45, 1
    %p49 = scmp.eq.s32.totalorder %s11, 1
    %p50 = scmp.ne.s32.totalorder %s45, %s47
    %p51 = scmp.eq.s32.totalorder %s11, 0
    %p52 = por %p50, %p51
    %p53 = scmp.ne.s32.totalorder %s45, %s47
    %p54 = scmp.eq.s32.totalorder %s16, 1
    %p55 = por %p53, %p54
    %p56 = scmp.ne.s32.totalorder %s47, %s48
    %p57 = scmp.eq.s32.totalorder %s16, 0
    %p58 = por %p56, %p57
    %p59 = scmp.ne.s32.totalorder %s47, %s48
    %p60 = scmp.eq.s32.totalorder %s17, 1
    %p61 = por %p59, %p60
    %p63 = scmp.ne.s32.totalorder %s48, %s62
    %p64 = scmp.eq.s32.totalorder %s17, 0
    %p65 = por %p63, %p64
    %s67 = sadd.s32 %s66, 1
    %p70 = scmp.eq.s32.totalorder %s11, 1
    %p71 = scmp.ne.s32.totalorder %s66, %s68
    %p72 = scmp.eq.s32.totalorder %s11, 0
    %p73 = por %p71, %p72
    %p74 = scmp.ne.s32.totalorder %s66, %s68
    %p75 = scmp.eq.s32.totalorder %s16, 1
    %p76 = por %p74, %p75
    %p77 = scmp.ne.s32.totalorder %s68, %s69
    %p78 = scmp.eq.s32.totalorder %s16, 0
    %p79 = por %p77, %p78
    %p80 = scmp.ne.s32.totalorder %s68, %s69
    %p81 = scmp.eq.s32.totalorder %s17, 1
    %p82 = por %p80, %p81
    %p84 = scmp.ne.s32.totalorder %s69, %s83
    %p85 = scmp.eq.s32.totalorder %s17, 0
    %p86 = por %p84, %p85
    %s87 = ssub.s32 %s11, %s18
    %p88 = scmp.eq.s32.totalorder %s87, 0
    %s90 = sadd.s32 %s89, 1
    %s91 = scalar_select %p88, %s89, %s90
    %p94 = pneg %p88
    %p95 = scmp.eq.s32.totalorder %s11, 1
    %p96 = por %p94, %p95
    %p97 = scmp.ne.s32.totalorder %s89, %s92
    %p98 = scmp.eq.s32.totalorder %s11, 0
    %p99 = por %p97, %p98
    %p100 = scmp.ne.s32.totalorder %s89, %s92
    %p101 = scmp.eq.s32.totalorder %s16, 1
    %p102 = por %p100, %p101
    %p103 = scmp.ne.s32.totalorder %s92, %s93
    %p104 = scmp.eq.s32.totalorder %s16, 0
    %p105 = por %p103, %p104
    %p106 = scmp.ne.s32.totalorder %s92, %s93
    %p107 = scmp.eq.s32.totalorder %s17, 1
    %p108 = por %p106, %p107
    %p110 = scmp.ne.s32.totalorder %s93, %s109
    %p111 = scmp.eq.s32.totalorder %s17, 0
    %p112 = por %p110, %p111
    %s113 = ssub.s32 %s11, %s18
    %p114 = scmp.eq.s32.totalorder %s113, 0
    %s116 = sadd.s32 %s115, 1
    %s117 = scalar_select %p114, %s115, %s116
    %p120 = pneg %p114
    %p121 = scmp.eq.s32.totalorder %s11, 1
    %p122 = por %p120, %p121
    %p123 = scmp.ne.s32.totalorder %s115, %s118
    %p124 = scmp.eq.s32.totalorder %s11, 0
    %p125 = por %p123, %p124
    %p126 = scmp.ne.s32.totalorder %s115, %s118
    %p127 = scmp.eq.s32.totalorder %s16, 1
    %p128 = por %p126, %p127
    %p129 = scmp.ne.s32.totalorder %s118, %s119
    %p130 = scmp.eq.s32.totalorder %s16, 0
    %p131 = por %p129, %p130
    %p132 = scmp.ne.s32.totalorder %s118, %s119
    %p133 = scmp.eq.s32.totalorder %s17, 1
    %p134 = por %p132, %p133
    %p136 = scmp.ne.s32.totalorder %s119, %s135
    %p137 = scmp.eq.s32.totalorder %s17, 0
    %p138 = por %p136, %p137
    %p139 = scmp.le.s32.totalorder 1, %s11
    %p140 = scmp.lt.s32.totalorder %s11, 3
    %p141 = pnand %p139, %p140
    %p142 = pneg %p141
    // Predicated region
    $region9: #{basic_block_forward.4} parent=5 // pred_check
      _
    $region10: #{basic_block_forward.4} parent=5 // pred_check_branch
      %144 = sbr.rel (%p141) target = $region12
    $region11: #{basic_block_forward.4} parent=5 // pred_region
      %s145 = ssub.s32 %s11, 1
      // Predicated region
      $region13: #{basic_block_forward.4} parent=11 // pred_check
        %p146 = pneg %p58
      $region14: #{basic_block_forward.4} parent=11 // pred_check_branch
        %148 = sbr.rel (%p146) target = $region16
      $region15: #{basic_block_forward.4} parent=11 // pred_region
        _
      $region16: #{basic_block_forward.4} parent=11 // pred_fallthru
        _
      // Predicated region
      $region17: #{basic_block_forward.4} parent=11 // pred_check
        %p149 = pneg %p79
      $region18: #{basic_block_forward.4} parent=11 // pred_check_branch
        %151 = sbr.rel (%p149) target = $region20
      $region19: #{basic_block_forward.4} parent=11 // pred_region
        _
      $region20: #{basic_block_forward.4} parent=11 // pred_fallthru
        _
    $region12: #{basic_block_forward.4} parent=5 // pred_fallthru
      _
    %p152 = scmp.lt.s32.totalorder %s11, 2
    // Predicated region
    $region21: #{basic_block_forward.4} parent=5 // pred_check
      %p153 = pneg %p152
    $region22: #{basic_block_forward.4} parent=5 // pred_check_branch
      %155 = sbr.rel (%p153) target = $region24
    $region23: #{basic_block_forward.4} parent=5 // pred_region
      // Predicated region
      $region25: #{basic_block_forward.4} parent=23 // pred_check
        %p156 = pneg %p31
      $region26: #{basic_block_forward.4} parent=23 // pred_check_branch
        %158 = sbr.rel (%p156) target = $region28
      $region27: #{basic_block_forward.4} parent=23 // pred_region
        %p159 = scmp.lt.s32.totalorder %s11, 1
        %s160 = scalar_select %p159, %s11, 1
        %s161 = smul.addr %s160, 8
        %s162 = smul.addr %s161, 4
        %s163 = scalar_lea.vmem %s0, %s162
      $region28: #{basic_block_forward.4} parent=23 // pred_fallthru
        _
    $region24: #{basic_block_forward.4} parent=5 // pred_fallthru
      _
    %p164 = scmp.le.s32.totalorder 1, %s11
    %p165 = scmp.lt.s32.totalorder %s11, 3
    %p166 = pnand %p164, %p165
    %p167 = pneg %p166
    // Predicated region
    $region29: #{basic_block_forward.4} parent=5 // pred_check
      _
    $region30: #{basic_block_forward.4} parent=5 // pred_check_branch
      %169 = sbr.rel (%p166) target = $region32
    $region31: #{basic_block_forward.4} parent=5 // pred_region
      %s170 = ssub.s32 %s11, 1
      %p171 = scmp.lt.s32.totalorder %s16, 1
      %s172 = scalar_select %p171, %s16, 1
      %s173 = smul.addr %s172, 8
      %s174 = smul.addr %s173, 4
      %s175 = scalar_lea.vmem %s0, %s174
      %p176 = pneg %p37
      %p177 = pneg %p34
      %p178 = pneg %p58
      %p179 = pneg %p55
      %p180 = pneg %p79
      %p181 = pneg %p76
      %p182 = pneg %p105
      %p183 = pneg %p102
      %p184 = scmp.lt.s32.totalorder %s16, 1
      %s185 = scalar_select %p184, %s16, 1
      %s186 = smul.addr %s185, 8
      %s187 = smul.addr %s186, 4
      %s188 = scalar_lea.vmem %s3, %s187
      %p189 = pneg %p131
      %p190 = pneg %p128
      %p191 = scmp.lt.s32.totalorder %s16, 1
      %s192 = scalar_select %p191, %s16, 1
      %s193 = smul.addr %s192, 2
      %s194 = scalar_lea.vmem %s4, %s193
      %p195 = scmp.lt.s32.totalorder %s16, 1
      %s196 = scalar_select %p195, %s16, 1
      %s197 = smul.addr %s196, 8
      %s198 = smul.addr %s197, 4
      %s199 = scalar_lea.vmem %s0, %s198
      %p200 = scmp.lt.s32.totalorder %s16, 1
      %s201 = scalar_select %p200, %s16, 1
      %s202 = smul.addr %s201, 8
      %s203 = smul.addr %s202, 4
      %s204 = scalar_lea.vmem %s3, %s203
      %p205 = scmp.lt.s32.totalorder %s16, 1
      %s206 = scalar_select %p205, %s16, 1
      %s207 = smul.addr %s206, 2
      %s208 = scalar_lea.vmem %s4, %s207
      %p210 = scmp.eq.s32.totalorder %s16, 0
      // Predicated region
      $region33: #{basic_block_forward.4} parent=31 // pred_check
        %p211 = pneg %p210
      $region34: #{basic_block_forward.4} parent=31 // pred_check_branch
        %213 = sbr.rel (%p211) target = $region36
      $region35: #{basic_block_forward.4} parent=31 // pred_region
        %214 = vst [vmem:[#allocation2] sm:$0xf] 0
        %215 = vst [vmem:[#allocation2 + $0x4] sm:$0x1] 0
        %216 = vst [vmem:[#allocation2 + $0x8] sm:$0xf] 0
        %217 = vst [vmem:[#allocation2 + $0xc] sm:$0x1] 0
        %218 = vst [vmem:[#allocation2 + $0x10] sm:$0xf] 0
        %219 = vst [vmem:[#allocation2 + $0x14] sm:$0x1] 0
        %220 = vst [vmem:[#allocation2 + $0x18] sm:$0xf] 0
        %221 = vst [vmem:[#allocation2 + $0x1c] sm:$0x1] 0
        %222 = vst [vmem:[#allocation2 + $0x20] sm:$0xf] 0
        %223 = vst [vmem:[#allocation2 + $0x24] sm:$0x1] 0
        %224 = vst [vmem:[#allocation2 + $0x28] sm:$0xf] 0
        %225 = vst [vmem:[#allocation2 + $0x2c] sm:$0x1] 0
        %226 = vst [vmem:[#allocation2 + $0x30] sm:$0xf] 0
        %227 = vst [vmem:[#allocation2 + $0x34] sm:$0x1] 0
        %228 = vst [vmem:[#allocation2 + $0x38] sm:$0xf] 0
        %229 = vst [vmem:[#allocation2 + $0x3c] sm:$0x1] 0
        %230 = vst [vmem:[#allocation2 + $0x40] sm:$0xf] 0
        %231 = vst [vmem:[#allocation2 + $0x44] sm:$0x1] 0
        %232 = vst [vmem:[#allocation2 + $0x48] sm:$0xf] 0
        %233 = vst [vmem:[#allocation2 + $0x4c] sm:$0x1] 0
      $region36: #{basic_block_forward.4} parent=31 // pred_fallthru
        _
      %v234 = vld [vmem:[%s199] sm:$0xf]
      %v235 = vld [vmem:[%s199 + $0x4] sm:$0xf]
      %v236 = vld [vmem:[%s199 + $0x8] sm:$0xf]
      %v237 = vld [vmem:[%s199 + $0xc] sm:$0xf]
      %v238 = vld [vmem:[%s199 + $0x10] sm:$0xf]
      %v239 = vld [vmem:[%s199 + $0x14] sm:$0xf]
      %v240 = vld [vmem:[%s199 + $0x18] sm:$0xf]
      %v241 = vld [vmem:[%s199 + $0x1c] sm:$0xf]
      %v242 = vunpack.c.l.bf16 %v234
      %v243 = vunpack.c.l.bf16 %v235
      %v244 = vunpack.c.l.bf16 %v236
      %v245 = vunpack.c.l.bf16 %v237
      %v246 = vunpack.c.l.bf16 %v238
      %v247 = vunpack.c.l.bf16 %v239
      %v248 = vunpack.c.l.bf16 %v240
      %v249 = vunpack.c.l.bf16 %v241
      %v250 = vld [vmem:[%s1] sm:$0x1]
      %v251 = vperm.slane %v250, 0
      %v252 = vmul.f32 %v242, %v251
      %v253 = vmul.f32 %v243, %v251
      %v254 = vmul.f32 %v244, %v251
      %v255 = vmul.f32 %v245, %v251
      %v256 = vmul.f32 %v246, %v251
      %v257 = vmul.f32 %v247, %v251
      %v258 = vmul.f32 %v248, %v251
      %v259 = vmul.f32 %v249, %v251
      %v260 = vld [vmem:[%s1 + $0x1] sm:$0x1]
      %v261 = vperm.slane %v260, 0
      %v262 = vadd.f32 %v252, %v261
      %v263 = vadd.f32 %v253, %v261
      %v264 = vadd.f32 %v254, %v261
      %v265 = vadd.f32 %v255, %v261
      %v266 = vadd.f32 %v256, %v261
      %v267 = vadd.f32 %v257, %v261
      %v268 = vadd.f32 %v258, %v261
      %v269 = vadd.f32 %v259, %v261
      %v270 = vmax.f32 %v262, 0.0
      %v271 = vmax.f32 %v263, 0.0
      %v272 = vmax.f32 %v264, 0.0
      %v273 = vmax.f32 %v265, 0.0
      %v274 = vmax.f32 %v266, 0.0
      %v275 = vmax.f32 %v267, 0.0
      %v276 = vmax.f32 %v268, 0.0
      %v277 = vmax.f32 %v269, 0.0
      %v278 = vpack.c.bf16 %v270, %v270
      %v279 = vpack.c.bf16 %v271, %v271
      %v280 = vpack.c.bf16 %v272, %v272
      %v281 = vpack.c.bf16 %v273, %v273
      %v282 = vpack.c.bf16 %v274, %v274
      %v283 = vpack.c.bf16 %v275, %v275
      %v284 = vpack.c.bf16 %v276, %v276
      %v285 = vpack.c.bf16 %v277, %v277
      %v287 = vshrl.u32 %v278, 16
      %v289 = vrot.slane %v287, 7
      %v290 = vshll.u32 %v278, 16
      %v292 = vor.u32 %v289, %v290
      %v293 = vrot.slane %v289, 4
      %v295 = vshrl.u32 %v279, 16
      %v297 = vrot.slane %v295, 7
      %v298 = vshll.u32 %v279, 16
      %v300 = vor.u32 %v297, %v298
      %v301 = vrot.slane %v297, 4
      %v303 = vshrl.u32 %v280, 16
      %v305 = vrot.slane %v303, 7
      %v306 = vshll.u32 %v280, 16
      %v308 = vor.u32 %v305, %v306
      %v309 = vrot.slane %v305, 4
      %v311 = vshrl.u32 %v281, 16
      %v313 = vrot.slane %v311, 7
      %v314 = vshll.u32 %v281, 16
      %v316 = vor.u32 %v313, %v314
      %v317 = vrot.slane %v313, 4
      %v319 = vshrl.u32 %v282, 16
      %v321 = vrot.slane %v319, 7
      %v322 = vshll.u32 %v282, 16
      %v324 = vor.u32 %v321, %v322
      %v325 = vrot.slane %v321, 4
      %v327 = vshrl.u32 %v283, 16
      %v329 = vrot.slane %v327, 7
      %v330 = vshll.u32 %v283, 16
      %v332 = vor.u32 %v329, %v330
      %v333 = vrot.slane %v329, 4
      %v335 = vshrl.u32 %v284, 16
      %v337 = vrot.slane %v335, 7
      %v338 = vshll.u32 %v284, 16
      %v340 = vor.u32 %v337, %v338
      %v341 = vrot.slane %v337, 4
      %v343 = vshrl.u32 %v285, 16
      %v345 = vrot.slane %v343, 7
      %v346 = vshll.u32 %v285, 16
      %v348 = vor.u32 %v345, %v346
      %v349 = vrot.slane %v345, 4
      %s366 = scalar_lea.vmem [#allocation2], 8
      %vm367 = vcmask 1043456
      %vm368 = vsmask.f32 7938
      %vm369 = vmand %vm367, %vm368
      %v370 = vld [vmem:[%s366] sm:$0xf]
      %v371 = vsel %vm369, %v292, %v370
      %372 = vst [vmem:[%s366] sm:$0xf] %v371
      %vm373 = vcmask 1040384
      %vm374 = vsmask.f32 256
      %vm375 = vmand %vm373, %vm374
      %v376 = vld [vmem:[%s366 + $0x4] sm:$0x1]
      %v377 = vsel %vm375, %v293, %v376
      %378 = vst [vmem:[%s366 + $0x4] sm:$0x1] %v377
      %v379 = vld [vmem:[%s366 + $0x8] sm:$0xf]
      %v380 = vsel %vm369, %v300, %v379
      %381 = vst [vmem:[%s366 + $0x8] sm:$0xf] %v380
      %v382 = vld [vmem:[%s366 + $0xc] sm:$0x1]
      %v383 = vsel %vm375, %v301, %v382
      %384 = vst [vmem:[%s366 + $0xc] sm:$0x1] %v383
      %v385 = vld [vmem:[%s366 + $0x10] sm:$0xf]
      %v386 = vsel %vm369, %v308, %v385
      %387 = vst [vmem:[%s366 + $0x10] sm:$0xf] %v386
      %v388 = vld [vmem:[%s366 + $0x14] sm:$0x1]
      %v389 = vsel %vm375, %v309, %v388
      %390 = vst [vmem:[%s366 + $0x14] sm:$0x1] %v389
      %v391 = vld [vmem:[%s366 + $0x18] sm:$0xf]
      %v392 = vsel %vm369, %v316, %v391
      %393 = vst [vmem:[%s366 + $0x18] sm:$0xf] %v392
      %v394 = vld [vmem:[%s366 + $0x1c] sm:$0x1]
      %v395 = vsel %vm375, %v317, %v394
      %396 = vst [vmem:[%s366 + $0x1c] sm:$0x1] %v395
      %v397 = vld [vmem:[%s366 + $0x20] sm:$0xf]
      %v398 = vsel %vm369, %v324, %v397
      %399 = vst [vmem:[%s366 + $0x20] sm:$0xf] %v398
      %v400 = vld [vmem:[%s366 + $0x24] sm:$0x1]
      %v401 = vsel %vm375, %v325, %v400
      %402 = vst [vmem:[%s366 + $0x24] sm:$0x1] %v401
      %v403 = vld [vmem:[%s366 + $0x28] sm:$0xf]
      %v404 = vsel %vm369, %v332, %v403
      %405 = vst [vmem:[%s366 + $0x28] sm:$0xf] %v404
      %v406 = vld [vmem:[%s366 + $0x2c] sm:$0x1]
      %v407 = vsel %vm375, %v333, %v406
      %408 = vst [vmem:[%s366 + $0x2c] sm:$0x1] %v407
      %v409 = vld [vmem:[%s366 + $0x30] sm:$0xf]
      %v410 = vsel %vm369, %v340, %v409
      %411 = vst [vmem:[%s366 + $0x30] sm:$0xf] %v410
      %v412 = vld [vmem:[%s366 + $0x34] sm:$0x1]
      %v413 = vsel %vm375, %v341, %v412
      %414 = vst [vmem:[%s366 + $0x34] sm:$0x1] %v413
      %v415 = vld [vmem:[%s366 + $0x38] sm:$0xf]
      %v416 = vsel %vm369, %v348, %v415
      %417 = vst [vmem:[%s366 + $0x38] sm:$0xf] %v416
      %v418 = vld [vmem:[%s366 + $0x3c] sm:$0x1]
      %v419 = vsel %vm375, %v349, %v418
      %420 = vst [vmem:[%s366 + $0x3c] sm:$0x1] %v419
      %v421 = vld [vmem:[#allocation2] sm:$0xf]
      %v422 = vld [vmem:[#allocation2 + $0x8] sm:$0xf]
      %v423 = vld [vmem:[#allocation2 + $0x10] sm:$0xf]
      %v424 = vld [vmem:[#allocation2 + $0x18] sm:$0xf]
      %v425 = vld [vmem:[#allocation2 + $0x20] sm:$0xf]
      %v426 = vld [vmem:[#allocation2 + $0x28] sm:$0xf]
      %v427 = vld [vmem:[#allocation2 + $0x30] sm:$0xf]
      %v428 = vld [vmem:[#allocation2 + $0x38] sm:$0xf]
      %v429 = vld [vmem:[%s2] sm:$0xf]
      %v430 = vld [vmem:[%s2 + $0x4] sm:$0xf]
      %v431 = vld [vmem:[%s2 + $0x8] sm:$0xf]
      %v432 = vld [vmem:[%s2 + $0xc] sm:$0xf]
      %v433 = vld [vmem:[%s2 + $0x10] sm:$0xf]
      %v434 = vld [vmem:[%s2 + $0x14] sm:$0xf]
      %v435 = vld [vmem:[%s2 + $0x18] sm:$0xf]
      %v436 = vld [vmem:[%s2 + $0x1c] sm:$0xf]
      %v437 = vld [vmem:[%s2 + $0x20] sm:$0xf]
      %v438 = vld [vmem:[%s2 + $0x24] sm:$0xf]
      %v439 = vld [vmem:[%s2 + $0x28] sm:$0xf]
      %v440 = vld [vmem:[%s2 + $0x2c] sm:$0xf]
      %v441 = vld [vmem:[%s2 + $0x30] sm:$0xf]
      %v442 = vld [vmem:[%s2 + $0x34] sm:$0xf]
      %v443 = vld [vmem:[%s2 + $0x38] sm:$0xf]
      %v444 = vld [vmem:[%s2 + $0x3c] sm:$0xf]
      %v445 = vld [vmem:[#allocation2 + $0x4] sm:$0x1]
      %v446 = vld [vmem:[#allocation2 + $0xc] sm:$0x1]
      %v447 = vld [vmem:[#allocation2 + $0x14] sm:$0x1]
      %v448 = vld [vmem:[#allocation2 + $0x1c] sm:$0x1]
      %v449 = vld [vmem:[#allocation2 + $0x24] sm:$0x1]
      %v450 = vld [vmem:[#allocation2 + $0x2c] sm:$0x1]
      %v451 = vld [vmem:[#allocation2 + $0x34] sm:$0x1]
      %v452 = vld [vmem:[#allocation2 + $0x3c] sm:$0x1]
      %vm453 = vsmask.f32 3328
      %vm454 = vsmask.f32 7440
      %vm455 = vmor %vm453, %vm454
      %v457 = vshrl.u32 %v421, 16
      %v459 = vrot.slane %v457, 4
      %v460 = vshll.u32 %v421, 16
      %v462 = vrot.slane %v460, 5
      %v463 = vor.u32 %v459, %v462
      %v464 = vrot.slane %v463, 4
      %v466 = vshll.u32 %v445, 16
      %v468 = vrot.slane %v466, 5
      %v469 = vsel %vm455, %v464, %v468
      %v471 = vshrl.u32 %v422, 16
      %v473 = vrot.slane %v471, 4
      %v474 = vshll.u32 %v422, 16
      %v476 = vrot.slane %v474, 5
      %v477 = vor.u32 %v473, %v476
      %v478 = vrot.slane %v477, 4
      %v480 = vshll.u32 %v446, 16
      %v482 = vrot.slane %v480, 5
      %v483 = vsel %vm455, %v478, %v482
      %v485 = vshrl.u32 %v423, 16
      %v487 = vrot.slane %v485, 4
      %v488 = vshll.u32 %v423, 16
      %v490 = vrot.slane %v488, 5
      %v491 = vor.u32 %v487, %v490
      %v492 = vrot.slane %v491, 4
      %v494 = vshll.u32 %v447, 16
      %v496 = vrot.slane %v494, 5
      %v497 = vsel %vm455, %v492, %v496
      %v499 = vshrl.u32 %v424, 16
      %v501 = vrot.slane %v499, 4
      %v502 = vshll.u32 %v424, 16
      %v504 = vrot.slane %v502, 5
      %v505 = vor.u32 %v501, %v504
      %v506 = vrot.slane %v505, 4
      %v508 = vshll.u32 %v448, 16
      %v510 = vrot.slane %v508, 5
      %v511 = vsel %vm455, %v506, %v510
      %v513 = vshrl.u32 %v425, 16
      %v515 = vrot.slane %v513, 4
      %v516 = vshll.u32 %v425, 16
      %v518 = vrot.slane %v516, 5
      %v519 = vor.u32 %v515, %v518
      %v520 = vrot.slane %v519, 4
      %v522 = vshll.u32 %v449, 16
      %v524 = vrot.slane %v522, 5
      %v525 = vsel %vm455, %v520, %v524
      %v527 = vshrl.u32 %v426, 16
      %v529 = vrot.slane %v527, 4
      %v530 = vshll.u32 %v426, 16
      %v532 = vrot.slane %v530, 5
      %v533 = vor.u32 %v529, %v532
      %v534 = vrot.slane %v533, 4
      %v536 = vshll.u32 %v450, 16
      %v538 = vrot.slane %v536, 5
      %v539 = vsel %vm455, %v534, %v538
      %v541 = vshrl.u32 %v427, 16
      %v543 = vrot.slane %v541, 4
      %v544 = vshll.u32 %v427, 16
      %v546 = vrot.slane %v544, 5
      %v547 = vor.u32 %v543, %v546
      %v548 = vrot.slane %v547, 4
      %v550 = vshll.u32 %v451, 16
      %v552 = vrot.slane %v550, 5
      %v553 = vsel %vm455, %v548, %v552
      %v555 = vshrl.u32 %v428, 16
      %v557 = vrot.slane %v555, 4
      %v558 = vshll.u32 %v428, 16
      %v560 = vrot.slane %v558, 5
      %v561 = vor.u32 %v557, %v560
      %v562 = vrot.slane %v561, 4
      %v564 = vshll.u32 %v452, 16
      %v566 = vrot.slane %v564, 5
      %v567 = vsel %vm455, %v562, %v566
      %s568 = scalar_lea.vmem %s2, 64
      %v569 = vld [vmem:[%s568] sm:$0xf]
      %v570 = vld [vmem:[%s568 + $0x4] sm:$0xf]
      %v571 = vld [vmem:[%s568 + $0x8] sm:$0xf]
      %v572 = vld [vmem:[%s568 + $0xc] sm:$0xf]
      %v573 = vld [vmem:[%s568 + $0x10] sm:$0xf]
      %v574 = vld [vmem:[%s568 + $0x14] sm:$0xf]
      %v575 = vld [vmem:[%s568 + $0x18] sm:$0xf]
      %v576 = vld [vmem:[%s568 + $0x1c] sm:$0xf]
      %v577 = vld [vmem:[%s568 + $0x20] sm:$0xf]
      %v578 = vld [vmem:[%s568 + $0x24] sm:$0xf]
      %v579 = vld [vmem:[%s568 + $0x28] sm:$0xf]
      %v580 = vld [vmem:[%s568 + $0x2c] sm:$0xf]
      %v581 = vld [vmem:[%s568 + $0x30] sm:$0xf]
      %v582 = vld [vmem:[%s568 + $0x34] sm:$0xf]
      %v583 = vld [vmem:[%s568 + $0x38] sm:$0xf]
      %v584 = vld [vmem:[%s568 + $0x3c] sm:$0xf]
      %v585 = vunpack.c.l.b16 %v469
      %v586 = vunpack.c.l.b16 %v483
      %v587 = vunpack.c.l.b16 %v497
      %v588 = vunpack.c.l.b16 %v511
      %v589 = vunpack.c.l.b16 %v525
      %v590 = vunpack.c.l.b16 %v539
      %v591 = vunpack.c.l.b16 %v553
      %v592 = vunpack.c.l.b16 %v567
      %v593 = vpack.c.b16 %v586, %v585
      %v594 = vpack.c.b16 %v588, %v587
      %v595 = vpack.c.b16 %v590, %v589
      %v596 = vpack.c.b16 %v592, %v591
      %v617 = vunpack.c.l.b16 %v569
      %v618 = vunpack.c.l.b16 %v570
      %v619 = vunpack.c.l.b16 %v571
      %v620 = vunpack.c.l.b16 %v572
      %v621 = vunpack.c.l.b16 %v573
      %v622 = vunpack.c.l.b16 %v574
      %v623 = vunpack.c.l.b16 %v575
      %v624 = vunpack.c.l.b16 %v576
      %v625 = vunpack.c.l.b16 %v577
      %v626 = vunpack.c.l.b16 %v578
      %v627 = vunpack.c.l.b16 %v579
      %v628 = vunpack.c.l.b16 %v580
      %v629 = vunpack.c.l.b16 %v581
      %v630 = vunpack.c.l.b16 %v582
      %v631 = vunpack.c.l.b16 %v583
      %v632 = vunpack.c.l.b16 %v584
      %v633 = vpack.c.b16 %v618, %v617
      %v634 = vpack.c.b16 %v620, %v619
      %v635 = vpack.c.b16 %v622, %v621
      %v636 = vpack.c.b16 %v624, %v623
      %v637 = vpack.c.b16 %v626, %v625
      %v638 = vpack.c.b16 %v628, %v627
      %v639 = vpack.c.b16 %v630, %v629
      %v640 = vpack.c.b16 %v632, %v631
      %649 = vmatpush.bf16.msra.mxu0 %v640
      %650 = vmatpush.bf16.msra.mxu0 %v639
      %651 = vmatpush.bf16.msra.mxu0 %v638
      %652 = vmatpush.bf16.msra.mxu0 %v637
      %653 = vmatpush.bf16.msra.mxu0 %v636
      %654 = vmatpush.bf16.msra.mxu0 %v635
      %655 = vmatpush.bf16.msra.mxu0 %v634
      %656 = vmatpush.bf16.msra.mxu0 %v633
      %657 = vmatmul.bf16.gmra.mxu0 %v593
      %v658 = vpop.f32.mrf.mxu0
      %v659 = vadd.f32 0.0, %v658
      %v660 = vpop.f32.mrf.mxu0
      %v661 = vadd.f32 0.0, %v660
      %662 = vmatmul.bf16.gmra.mxu0 %v594
      %v663 = vpop.f32.mrf.mxu0
      %v664 = vadd.f32 0.0, %v663
      %v665 = vpop.f32.mrf.mxu0
      %v666 = vadd.f32 0.0, %v665
      %667 = vmatmul.bf16.gmra.mxu0 %v595
      %v668 = vpop.f32.mrf.mxu0
      %v669 = vadd.f32 0.0, %v668
      %v670 = vpop.f32.mrf.mxu0
      %v671 = vadd.f32 0.0, %v670
      %672 = vmatmul.bf16.gmra.mxu0 %v596
      %v673 = vpop.f32.mrf.mxu0
      %v674 = vadd.f32 0.0, %v673
      %v675 = vpop.f32.mrf.mxu0
      %v676 = vadd.f32 0.0, %v675
      %677 = vdwg.mxu0
      %v686 = vunpack.c.l.b16 %v421
      %v687 = vunpack.c.l.b16 %v422
      %v688 = vunpack.c.l.b16 %v423
      %v689 = vunpack.c.l.b16 %v424
      %v690 = vunpack.c.l.b16 %v425
      %v691 = vunpack.c.l.b16 %v426
      %v692 = vunpack.c.l.b16 %v427
      %v693 = vunpack.c.l.b16 %v428
      %v694 = vpack.c.b16 %v687, %v686
      %v695 = vpack.c.b16 %v689, %v688
      %v696 = vpack.c.b16 %v691, %v690
      %v697 = vpack.c.b16 %v693, %v692
      %v718 = vunpack.c.l.b16 %v429
      %v719 = vunpack.c.l.b16 %v430
      %v720 = vunpack.c.l.b16 %v431
      %v721 = vunpack.c.l.b16 %v432
      %v722 = vunpack.c.l.b16 %v433
      %v723 = vunpack.c.l.b16 %v434
      %v724 = vunpack.c.l.b16 %v435
      %v725 = vunpack.c.l.b16 %v436
      %v726 = vunpack.c.l.b16 %v437
      %v727 = vunpack.c.l.b16 %v438
      %v728 = vunpack.c.l.b16 %v439
      %v729 = vunpack.c.l.b16 %v440
      %v730 = vunpack.c.l.b16 %v441
      %v731 = vunpack.c.l.b16 %v442
      %v732 = vunpack.c.l.b16 %v443
      %v733 = vunpack.c.l.b16 %v444
      %v734 = vpack.c.b16 %v719, %v718
      %v735 = vpack.c.b16 %v721, %v720
      %v736 = vpack.c.b16 %v723, %v722
      %v737 = vpack.c.b16 %v725, %v724
      %v738 = vpack.c.b16 %v727, %v726
      %v739 = vpack.c.b16 %v729, %v728
      %v740 = vpack.c.b16 %v731, %v730
      %v741 = vpack.c.b16 %v733, %v732
      %750 = vmatpush.bf16.msra.mxu0 %v741
      %751 = vmatpush.bf16.msra.mxu0 %v740
      %752 = vmatpush.bf16.msra.mxu0 %v739
      %753 = vmatpush.bf16.msra.mxu0 %v738
      %754 = vmatpush.bf16.msra.mxu0 %v737
      %755 = vmatpush.bf16.msra.mxu0 %v736
      %756 = vmatpush.bf16.msra.mxu0 %v735
      %757 = vmatpush.bf16.msra.mxu0 %v734
      %758 = vmatmul.bf16.gmra.mxu0 %v694
      %v759 = vpop.f32.mrf.mxu0
      %v760 = vadd.f32 %v659, %v759
      %v761 = vpop.f32.mrf.mxu0
      %v762 = vadd.f32 %v661, %v761
      %763 = vmatmul.bf16.gmra.mxu0 %v695
      %v764 = vpop.f32.mrf.mxu0
      %v765 = vadd.f32 %v664, %v764
      %v766 = vpop.f32.mrf.mxu0
      %v767 = vadd.f32 %v666, %v766
      %768 = vmatmul.bf16.gmra.mxu0 %v696
      %v769 = vpop.f32.mrf.mxu0
      %v770 = vadd.f32 %v669, %v769
      %v771 = vpop.f32.mrf.mxu0
      %v772 = vadd.f32 %v671, %v771
      %773 = vmatmul.bf16.gmra.mxu0 %v697
      %v774 = vpop.f32.mrf.mxu0
      %v775 = vadd.f32 %v674, %v774
      %v776 = vpop.f32.mrf.mxu0
      %v777 = vadd.f32 %v676, %v776
      %778 = vdwg.mxu0
      %v779 = vld [vmem:[#allocation2] sm:$0xe]
      %v780 = vld [vmem:[#allocation2 + $0x8] sm:$0xe]
      %v781 = vld [vmem:[#allocation2 + $0x10] sm:$0xe]
      %v782 = vld [vmem:[#allocation2 + $0x18] sm:$0xe]
      %v783 = vld [vmem:[#allocation2 + $0x20] sm:$0xe]
      %v784 = vld [vmem:[#allocation2 + $0x28] sm:$0xe]
      %v785 = vld [vmem:[#allocation2 + $0x30] sm:$0xe]
      %v786 = vld [vmem:[#allocation2 + $0x38] sm:$0xe]
      %vm803 = vcmask 1042432
      %vm804 = vcmask 1046532
      %vm805 = vmor %vm803, %vm804
      %v806 = vrot.slane %v779, 5
      %v807 = vrot.slane %v806, 4
      %v808 = vrot.slane %v445, 5
      %v809 = vsel %vm805, %v807, %v808
      %v810 = vrot.slane %v780, 5
      %v811 = vrot.slane %v810, 4
      %v812 = vrot.slane %v446, 5
      %v813 = vsel %vm805, %v811, %v812
      %v814 = vrot.slane %v781, 5
      %v815 = vrot.slane %v814, 4
      %v816 = vrot.slane %v447, 5
      %v817 = vsel %vm805, %v815, %v816
      %v818 = vrot.slane %v782, 5
      %v819 = vrot.slane %v818, 4
      %v820 = vrot.slane %v448, 5
      %v821 = vsel %vm805, %v819, %v820
      %v822 = vrot.slane %v783, 5
      %v823 = vrot.slane %v822, 4
      %v824 = vrot.slane %v449, 5
      %v825 = vsel %vm805, %v823, %v824
      %v826 = vrot.slane %v784, 5
      %v827 = vrot.slane %v826, 4
      %v828 = vrot.slane %v450, 5
      %v829 = vsel %vm805, %v827, %v828
      %v830 = vrot.slane %v785, 5
      %v831 = vrot.slane %v830, 4
      %v832 = vrot.slane %v451, 5
      %v833 = vsel %vm805, %v831, %v832
      %v834 = vrot.slane %v786, 5
      %v835 = vrot.slane %v834, 4
      %v836 = vrot.slane %v452, 5
      %v837 = vsel %vm805, %v835, %v836
      %s838 = scalar_lea.vmem %s2, 128
      %v839 = vld [vmem:[%s838] sm:$0xf]
      %v840 = vld [vmem:[%s838 + $0x4] sm:$0xf]
      %v841 = vld [vmem:[%s838 + $0x8] sm:$0xf]
      %v842 = vld [vmem:[%s838 + $0xc] sm:$0xf]
      %v843 = vld [vmem:[%s838 + $0x10] sm:$0xf]
      %v844 = vld [vmem:[%s838 + $0x14] sm:$0xf]
      %v845 = vld [vmem:[%s838 + $0x18] sm:$0xf]
      %v846 = vld [vmem:[%s838 + $0x1c] sm:$0xf]
      %v847 = vld [vmem:[%s838 + $0x20] sm:$0xf]
      %v848 = vld [vmem:[%s838 + $0x24] sm:$0xf]
      %v849 = vld [vmem:[%s838 + $0x28] sm:$0xf]
      %v850 = vld [vmem:[%s838 + $0x2c] sm:$0xf]
      %v851 = vld [vmem:[%s838 + $0x30] sm:$0xf]
      %v852 = vld [vmem:[%s838 + $0x34] sm:$0xf]
      %v853 = vld [vmem:[%s838 + $0x38] sm:$0xf]
      %v854 = vld [vmem:[%s838 + $0x3c] sm:$0xf]
      %v855 = vunpack.c.l.b16 %v809
      %v856 = vunpack.c.l.b16 %v813
      %v857 = vunpack.c.l.b16 %v817
      %v858 = vunpack.c.l.b16 %v821
      %v859 = vunpack.c.l.b16 %v825
      %v860 = vunpack.c.l.b16 %v829
      %v861 = vunpack.c.l.b16 %v833
      %v862 = vunpack.c.l.b16 %v837
      %v863 = vpack.c.b16 %v856, %v855
      %v864 = vpack.c.b16 %v858, %v857
      %v865 = vpack.c.b16 %v860, %v859
      %v866 = vpack.c.b16 %v862, %v861
      %v887 = vunpack.c.l.b16 %v839
      %v888 = vunpack.c.l.b16 %v840
      %v889 = vunpack.c.l.b16 %v841
      %v890 = vunpack.c.l.b16 %v842
      %v891 = vunpack.c.l.b16 %v843
      %v892 = vunpack.c.l.b16 %v844
      %v893 = vunpack.c.l.b16 %v845
      %v894 = vunpack.c.l.b16 %v846
      %v895 = vunpack.c.l.b16 %v847
      %v896 = vunpack.c.l.b16 %v848
      %v897 = vunpack.c.l.b16 %v849
      %v898 = vunpack.c.l.b16 %v850
      %v899 = vunpack.c.l.b16 %v851
      %v900 = vunpack.c.l.b16 %v852
      %v901 = vunpack.c.l.b16 %v853
      %v902 = vunpack.c.l.b16 %v854
      %v903 = vpack.c.b16 %v888, %v887
      %v904 = vpack.c.b16 %v890, %v889
      %v905 = vpack.c.b16 %v892, %v891
      %v906 = vpack.c.b16 %v894, %v893
      %v907 = vpack.c.b16 %v896, %v895
      %v908 = vpack.c.b16 %v898, %v897
      %v909 = vpack.c.b16 %v900, %v899
      %v910 = vpack.c.b16 %v902, %v901
      %919 = vmatpush.bf16.msra.mxu0 %v910
      %920 = vmatpush.bf16.msra.mxu0 %v909
      %921 = vmatpush.bf16.msra.mxu0 %v908
      %922 = vmatpush.bf16.msra.mxu0 %v907
      %923 = vmatpush.bf16.msra.mxu0 %v906
      %924 = vmatpush.bf16.msra.mxu0 %v905
      %925 = vmatpush.bf16.msra.mxu0 %v904
      %926 = vmatpush.bf16.msra.mxu0 %v903
      %927 = vmatmul.bf16.gmra.mxu0 %v863
      %v928 = vpop.f32.mrf.mxu0
      %v929 = vadd.f32 0.0, %v928
      %v930 = vpop.f32.mrf.mxu0
      %v931 = vadd.f32 0.0, %v930
      %932 = vmatmul.bf16.gmra.mxu0 %v864
      %v933 = vpop.f32.mrf.mxu0
      %v934 = vadd.f32 0.0, %v933
      %v935 = vpop.f32.mrf.mxu0
      %v936 = vadd.f32 0.0, %v935
      %937 = vmatmul.bf16.gmra.mxu0 %v865
      %v938 = vpop.f32.mrf.mxu0
      %v939 = vadd.f32 0.0, %v938
      %v940 = vpop.f32.mrf.mxu0
      %v941 = vadd.f32 0.0, %v940
      %942 = vmatmul.bf16.gmra.mxu0 %v866
      %v943 = vpop.f32.mrf.mxu0
      %v944 = vadd.f32 0.0, %v943
      %v945 = vpop.f32.mrf.mxu0
      %v946 = vadd.f32 0.0, %v945
      %947 = vdwg.mxu0
      %v948 = vadd.f32 %v760, %v929
      %v949 = vadd.f32 %v762, %v931
      %v950 = vadd.f32 %v765, %v934
      %v951 = vadd.f32 %v767, %v936
      %v952 = vadd.f32 %v770, %v939
      %v953 = vadd.f32 %v772, %v941
      %v954 = vadd.f32 %v775, %v944
      %v955 = vadd.f32 %v777, %v946
      %v956 = vld [vmem:[%s366] sm:$0xf]
      %v957 = vld [vmem:[%s366 + $0x8] sm:$0xf]
      %v958 = vld [vmem:[%s366 + $0x10] sm:$0xf]
      %v959 = vld [vmem:[%s366 + $0x18] sm:$0xf]
      %v960 = vld [vmem:[%s366 + $0x20] sm:$0xf]
      %v961 = vld [vmem:[%s366 + $0x28] sm:$0xf]
      %v962 = vld [vmem:[%s366 + $0x30] sm:$0xf]
      %v963 = vld [vmem:[%s366 + $0x38] sm:$0xf]
      %s964 = scalar_lea.vmem %s2, 192
      %v965 = vld [vmem:[%s964] sm:$0xf]
      %v966 = vld [vmem:[%s964 + $0x4] sm:$0xf]
      %v967 = vld [vmem:[%s964 + $0x8] sm:$0xf]
      %v968 = vld [vmem:[%s964 + $0xc] sm:$0xf]
      %v969 = vld [vmem:[%s964 + $0x10] sm:$0xf]
      %v970 = vld [vmem:[%s964 + $0x14] sm:$0xf]
      %v971 = vld [vmem:[%s964 + $0x18] sm:$0xf]
      %v972 = vld [vmem:[%s964 + $0x1c] sm:$0xf]
      %v973 = vld [vmem:[%s964 + $0x20] sm:$0xf]
      %v974 = vld [vmem:[%s964 + $0x24] sm:$0xf]
      %v975 = vld [vmem:[%s964 + $0x28] sm:$0xf]
      %v976 = vld [vmem:[%s964 + $0x2c] sm:$0xf]
      %v977 = vld [vmem:[%s964 + $0x30] sm:$0xf]
      %v978 = vld [vmem:[%s964 + $0x34] sm:$0xf]
      %v979 = vld [vmem:[%s964 + $0x38] sm:$0xf]
      %v980 = vld [vmem:[%s964 + $0x3c] sm:$0xf]
      %v989 = vunpack.c.l.b16 %v956
      %v990 = vunpack.c.l.b16 %v957
      %v991 = vunpack.c.l.b16 %v958
      %v992 = vunpack.c.l.b16 %v959
      %v993 = vunpack.c.l.b16 %v960
      %v994 = vunpack.c.l.b16 %v961
      %v995 = vunpack.c.l.b16 %v962
      %v996 = vunpack.c.l.b16 %v963
      %v997 = vpack.c.b16 %v990, %v989
      %v998 = vpack.c.b16 %v992, %v991
      %v999 = vpack.c.b16 %v994, %v993
      %v1000 = vpack.c.b16 %v996, %v995
      %v1021 = vunpack.c.l.b16 %v965
      %v1022 = vunpack.c.l.b16 %v966
      %v1023 = vunpack.c.l.b16 %v967
      %v1024 = vunpack.c.l.b16 %v968
      %v1025 = vunpack.c.l.b16 %v969
      %v1026 = vunpack.c.l.b16 %v970
      %v1027 = vunpack.c.l.b16 %v971
      %v1028 = vunpack.c.l.b16 %v972
      %v1029 = vunpack.c.l.b16 %v973
      %v1030 = vunpack.c.l.b16 %v974
      %v1031 = vunpack.c.l.b16 %v975
      %v1032 = vunpack.c.l.b16 %v976
      %v1033 = vunpack.c.l.b16 %v977
      %v1034 = vunpack.c.l.b16 %v978
      %v1035 = vunpack.c.l.b16 %v979
      %v1036 = vunpack.c.l.b16 %v980
      %v1037 = vpack.c.b16 %v1022, %v1021
      %v1038 = vpack.c.b16 %v1024, %v1023
      %v1039 = vpack.c.b16 %v1026, %v1025
      %v1040 = vpack.c.b16 %v1028, %v1027
      %v1041 = vpack.c.b16 %v1030, %v1029
      %v1042 = vpack.c.b16 %v1032, %v1031
      %v1043 = vpack.c.b16 %v1034, %v1033
      %v1044 = vpack.c.b16 %v1036, %v1035
      %1053 = vmatpush.bf16.msra.mxu0 %v1044
      %1054 = vmatpush.bf16.msra.mxu0 %v1043
      %1055 = vmatpush.bf16.msra.mxu0 %v1042
      %1056 = vmatpush.bf16.msra.mxu0 %v1041
      %1057 = vmatpush.bf16.msra.mxu0 %v1040
      %1058 = vmatpush.bf16.msra.mxu0 %v1039
      %1059 = vmatpush.bf16.msra.mxu0 %v1038
      %1060 = vmatpush.bf16.msra.mxu0 %v1037
      %1061 = vmatmul.bf16.gmra.mxu0 %v997
      %v1062 = vpop.f32.mrf.mxu0
      %v1063 = vadd.f32 0.0, %v1062
      %v1064 = vpop.f32.mrf.mxu0
      %v1065 = vadd.f32 0.0, %v1064
      %1066 = vmatmul.bf16.gmra.mxu0 %v998
      %v1067 = vpop.f32.mrf.mxu0
      %v1068 = vadd.f32 0.0, %v1067
      %v1069 = vpop.f32.mrf.mxu0
      %v1070 = vadd.f32 0.0, %v1069
      %1071 = vmatmul.bf16.gmra.mxu0 %v999
      %v1072 = vpop.f32.mrf.mxu0
      %v1073 = vadd.f32 0.0, %v1072
      %v1074 = vpop.f32.mrf.mxu0
      %v1075 = vadd.f32 0.0, %v1074
      %1076 = vmatmul.bf16.gmra.mxu0 %v1000
      %v1077 = vpop.f32.mrf.mxu0
      %v1078 = vadd.f32 0.0, %v1077
      %v1079 = vpop.f32.mrf.mxu0
      %v1080 = vadd.f32 0.0, %v1079
      %1081 = vdwg.mxu0
      %v1082 = vadd.f32 %v948, %v1063
      %v1083 = vadd.f32 %v949, %v1065
      %v1084 = vadd.f32 %v950, %v1068
      %v1085 = vadd.f32 %v951, %v1070
      %v1086 = vadd.f32 %v952, %v1073
      %v1087 = vadd.f32 %v953, %v1075
      %v1088 = vadd.f32 %v954, %v1078
      %v1089 = vadd.f32 %v955, %v1080
      %v1090 = vld [vmem:[%s366] sm:$0xf]
      %v1091 = vld [vmem:[%s366 + $0x4] sm:$0x1]
      %v1092 = vld [vmem:[%s366 + $0x8] sm:$0xf]
      %v1093 = vld [vmem:[%s366 + $0xc] sm:$0x1]
      %v1094 = vld [vmem:[%s366 + $0x10] sm:$0xf]
      %v1095 = vld [vmem:[%s366 + $0x14] sm:$0x1]
      %v1096 = vld [vmem:[%s366 + $0x18] sm:$0xf]
      %v1097 = vld [vmem:[%s366 + $0x1c] sm:$0x1]
      %v1098 = vld [vmem:[%s366 + $0x20] sm:$0xf]
      %v1099 = vld [vmem:[%s366 + $0x24] sm:$0x1]
      %v1100 = vld [vmem:[%s366 + $0x28] sm:$0xf]
      %v1101 = vld [vmem:[%s366 + $0x2c] sm:$0x1]
      %v1102 = vld [vmem:[%s366 + $0x30] sm:$0xf]
      %v1103 = vld [vmem:[%s366 + $0x34] sm:$0x1]
      %v1104 = vld [vmem:[%s366 + $0x38] sm:$0xf]
      %v1105 = vld [vmem:[%s366 + $0x3c] sm:$0x1]
      %v1107 = vshrl.u32 %v1090, 16
      %v1109 = vrot.slane %v1107, 4
      %v1110 = vshll.u32 %v1090, 16
      %v1112 = vrot.slane %v1110, 5
      %v1113 = vor.u32 %v1109, %v1112
      %v1114 = vrot.slane %v1113, 4
      %v1116 = vshll.u32 %v1091, 16
      %v1118 = vrot.slane %v1116, 5
      %v1119 = vsel %vm455, %v1114, %v1118
      %v1121 = vshrl.u32 %v1092, 16
      %v1123 = vrot.slane %v1121, 4
      %v1124 = vshll.u32 %v1092, 16
      %v1126 = vrot.slane %v1124, 5
      %v1127 = vor.u32 %v1123, %v1126
      %v1128 = vrot.slane %v1127, 4
      %v1130 = vshll.u32 %v1093, 16
      %v1132 = vrot.slane %v1130, 5
      %v1133 = vsel %vm455, %v1128, %v1132
      %v1135 = vshrl.u32 %v1094, 16
      %v1137 = vrot.slane %v1135, 4
      %v1138 = vshll.u32 %v1094, 16
      %v1140 = vrot.slane %v1138, 5
      %v1141 = vor.u32 %v1137, %v1140
      %v1142 = vrot.slane %v1141, 4
      %v1144 = vshll.u32 %v1095, 16
      %v1146 = vrot.slane %v1144, 5
      %v1147 = vsel %vm455, %v1142, %v1146
      %v1149 = vshrl.u32 %v1096, 16
      %v1151 = vrot.slane %v1149, 4
      %v1152 = vshll.u32 %v1096, 16
      %v1154 = vrot.slane %v1152, 5
      %v1155 = vor.u32 %v1151, %v1154
      %v1156 = vrot.slane %v1155, 4
      %v1158 = vshll.u32 %v1097, 16
      %v1160 = vrot.slane %v1158, 5
      %v1161 = vsel %vm455, %v1156, %v1160
      %v1163 = vshrl.u32 %v1098, 16
      %v1165 = vrot.slane %v1163, 4
      %v1166 = vshll.u32 %v1098, 16
      %v1168 = vrot.slane %v1166, 5
      %v1169 = vor.u32 %v1165, %v1168
      %v1170 = vrot.slane %v1169, 4
      %v1172 = vshll.u32 %v1099, 16
      %v1174 = vrot.slane %v1172, 5
      %v1175 = vsel %vm455, %v1170, %v1174
      %v1177 = vshrl.u32 %v1100, 16
      %v1179 = vrot.slane %v1177, 4
      %v1180 = vshll.u32 %v1100, 16
      %v1182 = vrot.slane %v1180, 5
      %v1183 = vor.u32 %v1179, %v1182
      %v1184 = vrot.slane %v1183, 4
      %v1186 = vshll.u32 %v1101, 16
      %v1188 = vrot.slane %v1186, 5
      %v1189 = vsel %vm455, %v1184, %v1188
      %v1191 = vshrl.u32 %v1102, 16
      %v1193 = vrot.slane %v1191, 4
      %v1194 = vshll.u32 %v1102, 16
      %v1196 = vrot.slane %v1194, 5
      %v1197 = vor.u32 %v1193, %v1196
      %v1198 = vrot.slane %v1197, 4
      %v1200 = vshll.u32 %v1103, 16
      %v1202 = vrot.slane %v1200, 5
      %v1203 = vsel %vm455, %v1198, %v1202
      %v1205 = vshrl.u32 %v1104, 16
      %v1207 = vrot.slane %v1205, 4
      %v1208 = vshll.u32 %v1104, 16
      %v1210 = vrot.slane %v1208, 5
      %v1211 = vor.u32 %v1207, %v1210
      %v1212 = vrot.slane %v1211, 4
      %v1214 = vshll.u32 %v1105, 16
      %v1216 = vrot.slane %v1214, 5
      %v1217 = vsel %vm455, %v1212, %v1216
      %s1218 = scalar_lea.vmem %s2, 256
      %v1219 = vld [vmem:[%s1218] sm:$0xf]
      %v1220 = vld [vmem:[%s1218 + $0x4] sm:$0xf]
      %v1221 = vld [vmem:[%s1218 + $0x8] sm:$0xf]
      %v1222 = vld [vmem:[%s1218 + $0xc] sm:$0xf]
      %v1223 = vld [vmem:[%s1218 + $0x10] sm:$0xf]
      %v1224 = vld [vmem:[%s1218 + $0x14] sm:$0xf]
      %v1225 = vld [vmem:[%s1218 + $0x18] sm:$0xf]
      %v1226 = vld [vmem:[%s1218 + $0x1c] sm:$0xf]
      %v1227 = vld [vmem:[%s1218 + $0x20] sm:$0xf]
      %v1228 = vld [vmem:[%s1218 + $0x24] sm:$0xf]
      %v1229 = vld [vmem:[%s1218 + $0x28] sm:$0xf]
      %v1230 = vld [vmem:[%s1218 + $0x2c] sm:$0xf]
      %v1231 = vld [vmem:[%s1218 + $0x30] sm:$0xf]
      %v1232 = vld [vmem:[%s1218 + $0x34] sm:$0xf]
      %v1233 = vld [vmem:[%s1218 + $0x38] sm:$0xf]
      %v1234 = vld [vmem:[%s1218 + $0x3c] sm:$0xf]
      %v1235 = vunpack.c.l.b16 %v1119
      %v1236 = vunpack.c.l.b16 %v1133
      %v1237 = vunpack.c.l.b16 %v1147
      %v1238 = vunpack.c.l.b16 %v1161
      %v1239 = vunpack.c.l.b16 %v1175
      %v1240 = vunpack.c.l.b16 %v1189
      %v1241 = vunpack.c.l.b16 %v1203
      %v1242 = vunpack.c.l.b16 %v1217
      %v1243 = vpack.c.b16 %v1236, %v1235
      %v1244 = vpack.c.b16 %v1238, %v1237
      %v1245 = vpack.c.b16 %v1240, %v1239
      %v1246 = vpack.c.b16 %v1242, %v1241
      %v1267 = vunpack.c.l.b16 %v1219
      %v1268 = vunpack.c.l.b16 %v1220
      %v1269 = vunpack.c.l.b16 %v1221
      %v1270 = vunpack.c.l.b16 %v1222
      %v1271 = vunpack.c.l.b16 %v1223
      %v1272 = vunpack.c.l.b16 %v1224
      %v1273 = vunpack.c.l.b16 %v1225
      %v1274 = vunpack.c.l.b16 %v1226
      %v1275 = vunpack.c.l.b16 %v1227
      %v1276 = vunpack.c.l.b16 %v1228
      %v1277 = vunpack.c.l.b16 %v1229
      %v1278 = vunpack.c.l.b16 %v1230
      %v1279 = vunpack.c.l.b16 %v1231
      %v1280 = vunpack.c.l.b16 %v1232
      %v1281 = vunpack.c.l.b16 %v1233
      %v1282 = vunpack.c.l.b16 %v1234
      %v1283 = vpack.c.b16 %v1268, %v1267
      %v1284 = vpack.c.b16 %v1270, %v1269
      %v1285 = vpack.c.b16 %v1272, %v1271
      %v1286 = vpack.c.b16 %v1274, %v1273
      %v1287 = vpack.c.b16 %v1276, %v1275
      %v1288 = vpack.c.b16 %v1278, %v1277
      %v1289 = vpack.c.b16 %v1280, %v1279
      %v1290 = vpack.c.b16 %v1282, %v1281
      %1299 = vmatpush.bf16.msra.mxu0 %v1290
      %1300 = vmatpush.bf16.msra.mxu0 %v1289
      %1301 = vmatpush.bf16.msra.mxu0 %v1288
      %1302 = vmatpush.bf16.msra.mxu0 %v1287
      %1303 = vmatpush.bf16.msra.mxu0 %v1286
      %1304 = vmatpush.bf16.msra.mxu0 %v1285
      %1305 = vmatpush.bf16.msra.mxu0 %v1284
      %1306 = vmatpush.bf16.msra.mxu0 %v1283
      %1307 = vmatmul.bf16.gmra.mxu0 %v1243
      %v1308 = vpop.f32.mrf.mxu0
      %v1309 = vadd.f32 0.0, %v1308
      %v1310 = vpop.f32.mrf.mxu0
      %v1311 = vadd.f32 0.0, %v1310
      %1312 = vmatmul.bf16.gmra.mxu0 %v1244
      %v1313 = vpop.f32.mrf.mxu0
      %v1314 = vadd.f32 0.0, %v1313
      %v1315 = vpop.f32.mrf.mxu0
      %v1316 = vadd.f32 0.0, %v1315
      %1317 = vmatmul.bf16.gmra.mxu0 %v1245
      %v1318 = vpop.f32.mrf.mxu0
      %v1319 = vadd.f32 0.0, %v1318
      %v1320 = vpop.f32.mrf.mxu0
      %v1321 = vadd.f32 0.0, %v1320
      %1322 = vmatmul.bf16.gmra.mxu0 %v1246
      %v1323 = vpop.f32.mrf.mxu0
      %v1324 = vadd.f32 0.0, %v1323
      %v1325 = vpop.f32.mrf.mxu0
      %v1326 = vadd.f32 0.0, %v1325
      %1327 = vdwg.mxu0
      %v1328 = vadd.f32 %v1082, %v1309
      %v1329 = vadd.f32 %v1083, %v1311
      %v1330 = vadd.f32 %v1084, %v1314
      %v1331 = vadd.f32 %v1085, %v1316
      %v1332 = vadd.f32 %v1086, %v1319
      %v1333 = vadd.f32 %v1087, %v1321
      %v1334 = vadd.f32 %v1088, %v1324
      %v1335 = vadd.f32 %v1089, %v1326
      %v1336 = vld [vmem:[%s366] sm:$0xe]
      %v1337 = vld [vmem:[%s366 + $0x8] sm:$0xe]
      %v1338 = vld [vmem:[%s366 + $0x10] sm:$0xe]
      %v1339 = vld [vmem:[%s366 + $0x18] sm:$0xe]
      %v1340 = vld [vmem:[%s366 + $0x20] sm:$0xe]
      %v1341 = vld [vmem:[%s366 + $0x28] sm:$0xe]
      %v1342 = vld [vmem:[%s366 + $0x30] sm:$0xe]
      %v1343 = vld [vmem:[%s366 + $0x38] sm:$0xe]
      %v1360 = vrot.slane %v1336, 5
      %v1361 = vrot.slane %v1360, 4
      %v1362 = vrot.slane %v1091, 5
      %v1363 = vsel %vm805, %v1361, %v1362
      %v1364 = vrot.slane %v1337, 5
      %v1365 = vrot.slane %v1364, 4
      %v1366 = vrot.slane %v1093, 5
      %v1367 = vsel %vm805, %v1365, %v1366
      %v1368 = vrot.slane %v1338, 5
      %v1369 = vrot.slane %v1368, 4
      %v1370 = vrot.slane %v1095, 5
      %v1371 = vsel %vm805, %v1369, %v1370
      %v1372 = vrot.slane %v1339, 5
      %v1373 = vrot.slane %v1372, 4
      %v1374 = vrot.slane %v1097, 5
      %v1375 = vsel %vm805, %v1373, %v1374
      %v1376 = vrot.slane %v1340, 5
      %v1377 = vrot.slane %v1376, 4
      %v1378 = vrot.slane %v1099, 5
      %v1379 = vsel %vm805, %v1377, %v1378
      %v1380 = vrot.slane %v1341, 5
      %v1381 = vrot.slane %v1380, 4
      %v1382 = vrot.slane %v1101, 5
      %v1383 = vsel %vm805, %v1381, %v1382
      %v1384 = vrot.slane %v1342, 5
      %v1385 = vrot.slane %v1384, 4
      %v1386 = vrot.slane %v1103, 5
      %v1387 = vsel %vm805, %v1385, %v1386
      %v1388 = vrot.slane %v1343, 5
      %v1389 = vrot.slane %v1388, 4
      %v1390 = vrot.slane %v1105, 5
      %v1391 = vsel %vm805, %v1389, %v1390
      %s1392 = scalar_lea.vmem %s2, 320
      %v1393 = vld [vmem:[%s1392] sm:$0xf]
      %v1394 = vld [vmem:[%s1392 + $0x4] sm:$0xf]
      %v1395 = vld [vmem:[%s1392 + $0x8] sm:$0xf]
      %v1396 = vld [vmem:[%s1392 + $0xc] sm:$0xf]
      %v1397 = vld [vmem:[%s1392 + $0x10] sm:$0xf]
      %v1398 = vld [vmem:[%s1392 + $0x14] sm:$0xf]
      %v1399 = vld [vmem:[%s1392 + $0x18] sm:$0xf]
      %v1400 = vld [vmem:[%s1392 + $0x1c] sm:$0xf]
      %v1401 = vld [vmem:[%s1392 + $0x20] sm:$0xf]
      %v1402 = vld [vmem:[%s1392 + $0x24] sm:$0xf]
      %v1403 = vld [vmem:[%s1392 + $0x28] sm:$0xf]
      %v1404 = vld [vmem:[%s1392 + $0x2c] sm:$0xf]
      %v1405 = vld [vmem:[%s1392 + $0x30] sm:$0xf]
      %v1406 = vld [vmem:[%s1392 + $0x34] sm:$0xf]
      %v1407 = vld [vmem:[%s1392 + $0x38] sm:$0xf]
      %v1408 = vld [vmem:[%s1392 + $0x3c] sm:$0xf]
      %v1409 = vunpack.c.l.b16 %v1363
      %v1410 = vunpack.c.l.b16 %v1367
      %v1411 = vunpack.c.l.b16 %v1371
      %v1412 = vunpack.c.l.b16 %v1375
      %v1413 = vunpack.c.l.b16 %v1379
      %v1414 = vunpack.c.l.b16 %v1383
      %v1415 = vunpack.c.l.b16 %v1387
      %v1416 = vunpack.c.l.b16 %v1391
      %v1417 = vpack.c.b16 %v1410, %v1409
      %v1418 = vpack.c.b16 %v1412, %v1411
      %v1419 = vpack.c.b16 %v1414, %v1413
      %v1420 = vpack.c.b16 %v1416, %v1415
      %v1441 = vunpack.c.l.b16 %v1393
      %v1442 = vunpack.c.l.b16 %v1394
      %v1443 = vunpack.c.l.b16 %v1395
      %v1444 = vunpack.c.l.b16 %v1396
      %v1445 = vunpack.c.l.b16 %v1397
      %v1446 = vunpack.c.l.b16 %v1398
      %v1447 = vunpack.c.l.b16 %v1399
      %v1448 = vunpack.c.l.b16 %v1400
      %v1449 = vunpack.c.l.b16 %v1401
      %v1450 = vunpack.c.l.b16 %v1402
      %v1451 = vunpack.c.l.b16 %v1403
      %v1452 = vunpack.c.l.b16 %v1404
      %v1453 = vunpack.c.l.b16 %v1405
      %v1454 = vunpack.c.l.b16 %v1406
      %v1455 = vunpack.c.l.b16 %v1407
      %v1456 = vunpack.c.l.b16 %v1408
      %v1457 = vpack.c.b16 %v1442, %v1441
      %v1458 = vpack.c.b16 %v1444, %v1443
      %v1459 = vpack.c.b16 %v1446, %v1445
      %v1460 = vpack.c.b16 %v1448, %v1447
      %v1461 = vpack.c.b16 %v1450, %v1449
      %v1462 = vpack.c.b16 %v1452, %v1451
      %v1463 = vpack.c.b16 %v1454, %v1453
      %v1464 = vpack.c.b16 %v1456, %v1455
      %1473 = vmatpush.bf16.msra.mxu0 %v1464
      %1474 = vmatpush.bf16.msra.mxu0 %v1463
      %1475 = vmatpush.bf16.msra.mxu0 %v1462
      %1476 = vmatpush.bf16.msra.mxu0 %v1461
      %1477 = vmatpush.bf16.msra.mxu0 %v1460
      %1478 = vmatpush.bf16.msra.mxu0 %v1459
      %1479 = vmatpush.bf16.msra.mxu0 %v1458
      %1480 = vmatpush.bf16.msra.mxu0 %v1457
      %1481 = vmatmul.bf16.gmra.mxu0 %v1417
      %v1482 = vpop.f32.mrf.mxu0
      %v1483 = vadd.f32 0.0, %v1482
      %v1484 = vpop.f32.mrf.mxu0
      %v1485 = vadd.f32 0.0, %v1484
      %1486 = vmatmul.bf16.gmra.mxu0 %v1418
      %v1487 = vpop.f32.mrf.mxu0
      %v1488 = vadd.f32 0.0, %v1487
      %v1489 = vpop.f32.mrf.mxu0
      %v1490 = vadd.f32 0.0, %v1489
      %1491 = vmatmul.bf16.gmra.mxu0 %v1419
      %v1492 = vpop.f32.mrf.mxu0
      %v1493 = vadd.f32 0.0, %v1492
      %v1494 = vpop.f32.mrf.mxu0
      %v1495 = vadd.f32 0.0, %v1494
      %1496 = vmatmul.bf16.gmra.mxu0 %v1420
      %v1497 = vpop.f32.mrf.mxu0
      %v1498 = vadd.f32 0.0, %v1497
      %v1499 = vpop.f32.mrf.mxu0
      %v1500 = vadd.f32 0.0, %v1499
      %1501 = vdwg.mxu0
      %v1502 = vadd.f32 %v1328, %v1483
      %v1503 = vadd.f32 %v1329, %v1485
      %v1504 = vadd.f32 %v1330, %v1488
      %v1505 = vadd.f32 %v1331, %v1490
      %v1506 = vadd.f32 %v1332, %v1493
      %v1507 = vadd.f32 %v1333, %v1495
      %v1508 = vadd.f32 %v1334, %v1498
      %v1509 = vadd.f32 %v1335, %v1500
      %s1510 = scalar_lea.vmem [#allocation2], 16
      %v1511 = vld [vmem:[%s1510] sm:$0xf]
      %v1512 = vld [vmem:[%s1510 + $0x8] sm:$0xf]
      %v1513 = vld [vmem:[%s1510 + $0x10] sm:$0xf]
      %v1514 = vld [vmem:[%s1510 + $0x18] sm:$0xf]
      %v1515 = vld [vmem:[%s1510 + $0x20] sm:$0xf]
      %v1516 = vld [vmem:[%s1510 + $0x28] sm:$0xf]
      %v1517 = vld [vmem:[%s1510 + $0x30] sm:$0xf]
      %v1518 = vld [vmem:[%s1510 + $0x38] sm:$0xf]
      %s1519 = scalar_lea.vmem %s2, 384
      %v1520 = vld [vmem:[%s1519] sm:$0xf]
      %v1521 = vld [vmem:[%s1519 + $0x4] sm:$0xf]
      %v1522 = vld [vmem:[%s1519 + $0x8] sm:$0xf]
      %v1523 = vld [vmem:[%s1519 + $0xc] sm:$0xf]
      %v1524 = vld [vmem:[%s1519 + $0x10] sm:$0xf]
      %v1525 = vld [vmem:[%s1519 + $0x14] sm:$0xf]
      %v1526 = vld [vmem:[%s1519 + $0x18] sm:$0xf]
      %v1527 = vld [vmem:[%s1519 + $0x1c] sm:$0xf]
      %v1528 = vld [vmem:[%s1519 + $0x20] sm:$0xf]
      %v1529 = vld [vmem:[%s1519 + $0x24] sm:$0xf]
      %v1530 = vld [vmem:[%s1519 + $0x28] sm:$0xf]
      %v1531 = vld [vmem:[%s1519 + $0x2c] sm:$0xf]
      %v1532 = vld [vmem:[%s1519 + $0x30] sm:$0xf]
      %v1533 = vld [vmem:[%s1519 + $0x34] sm:$0xf]
      %v1534 = vld [vmem:[%s1519 + $0x38] sm:$0xf]
      %v1535 = vld [vmem:[%s1519 + $0x3c] sm:$0xf]
      %v1544 = vunpack.c.l.b16 %v1511
      %v1545 = vunpack.c.l.b16 %v1512
      %v1546 = vunpack.c.l.b16 %v1513
      %v1547 = vunpack.c.l.b16 %v1514
      %v1548 = vunpack.c.l.b16 %v1515
      %v1549 = vunpack.c.l.b16 %v1516
      %v1550 = vunpack.c.l.b16 %v1517
      %v1551 = vunpack.c.l.b16 %v1518
      %v1552 = vpack.c.b16 %v1545, %v1544
      %v1553 = vpack.c.b16 %v1547, %v1546
      %v1554 = vpack.c.b16 %v1549, %v1548
      %v1555 = vpack.c.b16 %v1551, %v1550
      %v1576 = vunpack.c.l.b16 %v1520
      %v1577 = vunpack.c.l.b16 %v1521
      %v1578 = vunpack.c.l.b16 %v1522
      %v1579 = vunpack.c.l.b16 %v1523
      %v1580 = vunpack.c.l.b16 %v1524
      %v1581 = vunpack.c.l.b16 %v1525
      %v1582 = vunpack.c.l.b16 %v1526
      %v1583 = vunpack.c.l.b16 %v1527
      %v1584 = vunpack.c.l.b16 %v1528
      %v1585 = vunpack.c.l.b16 %v1529
      %v1586 = vunpack.c.l.b16 %v1530
      %v1587 = vunpack.c.l.b16 %v1531
      %v1588 = vunpack.c.l.b16 %v1532
      %v1589 = vunpack.c.l.b16 %v1533
      %v1590 = vunpack.c.l.b16 %v1534
      %v1591 = vunpack.c.l.b16 %v1535
      %v1592 = vpack.c.b16 %v1577, %v1576
      %v1593 = vpack.c.b16 %v1579, %v1578
      %v1594 = vpack.c.b16 %v1581, %v1580
      %v1595 = vpack.c.b16 %v1583, %v1582
      %v1596 = vpack.c.b16 %v1585, %v1584
      %v1597 = vpack.c.b16 %v1587, %v1586
      %v1598 = vpack.c.b16 %v1589, %v1588
      %v1599 = vpack.c.b16 %v1591, %v1590
      %1608 = vmatpush.bf16.msra.mxu0 %v1599
      %1609 = vmatpush.bf16.msra.mxu0 %v1598
      %1610 = vmatpush.bf16.msra.mxu0 %v1597
      %1611 = vmatpush.bf16.msra.mxu0 %v1596
      %1612 = vmatpush.bf16.msra.mxu0 %v1595
      %1613 = vmatpush.bf16.msra.mxu0 %v1594
      %1614 = vmatpush.bf16.msra.mxu0 %v1593
      %1615 = vmatpush.bf16.msra.mxu0 %v1592
      %1616 = vmatmul.bf16.gmra.mxu0 %v1552
      %v1617 = vpop.f32.mrf.mxu0
      %v1618 = vadd.f32 0.0, %v1617
      %v1619 = vpop.f32.mrf.mxu0
      %v1620 = vadd.f32 0.0, %v1619
      %1621 = vmatmul.bf16.gmra.mxu0 %v1553
      %v1622 = vpop.f32.mrf.mxu0
      %v1623 = vadd.f32 0.0, %v1622
      %v1624 = vpop.f32.mrf.mxu0
      %v1625 = vadd.f32 0.0, %v1624
      %1626 = vmatmul.bf16.gmra.mxu0 %v1554
      %v1627 = vpop.f32.mrf.mxu0
      %v1628 = vadd.f32 0.0, %v1627
      %v1629 = vpop.f32.mrf.mxu0
      %v1630 = vadd.f32 0.0, %v1629
      %1631 = vmatmul.bf16.gmra.mxu0 %v1555
      %v1632 = vpop.f32.mrf.mxu0
      %v1633 = vadd.f32 0.0, %v1632
      %v1634 = vpop.f32.mrf.mxu0
      %v1635 = vadd.f32 0.0, %v1634
      %1636 = vdwg.mxu0
      %v1637 = vadd.f32 %v1502, %v1618
      %v1638 = vadd.f32 %v1503, %v1620
      %v1639 = vadd.f32 %v1504, %v1623
      %v1640 = vadd.f32 %v1505, %v1625
      %v1641 = vadd.f32 %v1506, %v1628
      %v1642 = vadd.f32 %v1507, %v1630
      %v1643 = vadd.f32 %v1508, %v1633
      %v1644 = vadd.f32 %v1509, %v1635
      %v1645 = vld [vmem:[%s1510] sm:$0xf]
      %v1646 = vld [vmem:[%s1510 + $0x4] sm:$0x1]
      %v1647 = vld [vmem:[%s1510 + $0x8] sm:$0xf]
      %v1648 = vld [vmem:[%s1510 + $0xc] sm:$0x1]
      %v1649 = vld [vmem:[%s1510 + $0x10] sm:$0xf]
      %v1650 = vld [vmem:[%s1510 + $0x14] sm:$0x1]
      %v1651 = vld [vmem:[%s1510 + $0x18] sm:$0xf]
      %v1652 = vld [vmem:[%s1510 + $0x1c] sm:$0x1]
      %v1653 = vld [vmem:[%s1510 + $0x20] sm:$0xf]
      %v1654 = vld [vmem:[%s1510 + $0x24] sm:$0x1]
      %v1655 = vld [vmem:[%s1510 + $0x28] sm:$0xf]
      %v1656 = vld [vmem:[%s1510 + $0x2c] sm:$0x1]
      %v1657 = vld [vmem:[%s1510 + $0x30] sm:$0xf]
      %v1658 = vld [vmem:[%s1510 + $0x34] sm:$0x1]
      %v1659 = vld [vmem:[%s1510 + $0x38] sm:$0xf]
      %v1660 = vld [vmem:[%s1510 + $0x3c] sm:$0x1]
      %v1662 = vshrl.u32 %v1645, 16
      %v1664 = vrot.slane %v1662, 4
      %v1665 = vshll.u32 %v1645, 16
      %v1667 = vrot.slane %v1665, 5
      %v1668 = vor.u32 %v1664, %v1667
      %v1669 = vrot.slane %v1668, 4
      %v1671 = vshll.u32 %v1646, 16
      %v1673 = vrot.slane %v1671, 5
      %v1674 = vsel %vm455, %v1669, %v1673
      %v1676 = vshrl.u32 %v1647, 16
      %v1678 = vrot.slane %v1676, 4
      %v1679 = vshll.u32 %v1647, 16
      %v1681 = vrot.slane %v1679, 5
      %v1682 = vor.u32 %v1678, %v1681
      %v1683 = vrot.slane %v1682, 4
      %v1685 = vshll.u32 %v1648, 16
      %v1687 = vrot.slane %v1685, 5
      %v1688 = vsel %vm455, %v1683, %v1687
      %v1690 = vshrl.u32 %v1649, 16
      %v1692 = vrot.slane %v1690, 4
      %v1693 = vshll.u32 %v1649, 16
      %v1695 = vrot.slane %v1693, 5
      %v1696 = vor.u32 %v1692, %v1695
      %v1697 = vrot.slane %v1696, 4
      %v1699 = vshll.u32 %v1650, 16
      %v1701 = vrot.slane %v1699, 5
      %v1702 = vsel %vm455, %v1697, %v1701
      %v1704 = vshrl.u32 %v1651, 16
      %v1706 = vrot.slane %v1704, 4
      %v1707 = vshll.u32 %v1651, 16
      %v1709 = vrot.slane %v1707, 5
      %v1710 = vor.u32 %v1706, %v1709
      %v1711 = vrot.slane %v1710, 4
      %v1713 = vshll.u32 %v1652, 16
      %v1715 = vrot.slane %v1713, 5
      %v1716 = vsel %vm455, %v1711, %v1715
      %v1718 = vshrl.u32 %v1653, 16
      %v1720 = vrot.slane %v1718, 4
      %v1721 = vshll.u32 %v1653, 16
      %v1723 = vrot.slane %v1721, 5
      %v1724 = vor.u32 %v1720, %v1723
      %v1725 = vrot.slane %v1724, 4
      %v1727 = vshll.u32 %v1654, 16
      %v1729 = vrot.slane %v1727, 5
      %v1730 = vsel %vm455, %v1725, %v1729
      %v1732 = vshrl.u32 %v1655, 16
      %v1734 = vrot.slane %v1732, 4
      %v1735 = vshll.u32 %v1655, 16
      %v1737 = vrot.slane %v1735, 5
      %v1738 = vor.u32 %v1734, %v1737
      %v1739 = vrot.slane %v1738, 4
      %v1741 = vshll.u32 %v1656, 16
      %v1743 = vrot.slane %v1741, 5
      %v1744 = vsel %vm455, %v1739, %v1743
      %v1746 = vshrl.u32 %v1657, 16
      %v1748 = vrot.slane %v1746, 4
      %v1749 = vshll.u32 %v1657, 16
      %v1751 = vrot.slane %v1749, 5
      %v1752 = vor.u32 %v1748, %v1751
      %v1753 = vrot.slane %v1752, 4
      %v1755 = vshll.u32 %v1658, 16
      %v1757 = vrot.slane %v1755, 5
      %v1758 = vsel %vm455, %v1753, %v1757
      %v1760 = vshrl.u32 %v1659, 16
      %v1762 = vrot.slane %v1760, 4
      %v1763 = vshll.u32 %v1659, 16
      %v1765 = vrot.slane %v1763, 5
      %v1766 = vor.u32 %v1762, %v1765
      %v1767 = vrot.slane %v1766, 4
      %v1769 = vshll.u32 %v1660, 16
      %v1771 = vrot.slane %v1769, 5
      %v1772 = vsel %vm455, %v1767, %v1771
      %s1773 = scalar_lea.vmem %s2, 448
      %v1774 = vld [vmem:[%s1773] sm:$0xf]
      %v1775 = vld [vmem:[%s1773 + $0x4] sm:$0xf]
      %v1776 = vld [vmem:[%s1773 + $0x8] sm:$0xf]
      %v1777 = vld [vmem:[%s1773 + $0xc] sm:$0xf]
      %v1778 = vld [vmem:[%s1773 + $0x10] sm:$0xf]
      %v1779 = vld [vmem:[%s1773 + $0x14] sm:$0xf]
      %v1780 = vld [vmem:[%s1773 + $0x18] sm:$0xf]
      %v1781 = vld [vmem:[%s1773 + $0x1c] sm:$0xf]
      %v1782 = vld [vmem:[%s1773 + $0x20] sm:$0xf]
      %v1783 = vld [vmem:[%s1773 + $0x24] sm:$0xf]
      %v1784 = vld [vmem:[%s1773 + $0x28] sm:$0xf]
      %v1785 = vld [vmem:[%s1773 + $0x2c] sm:$0xf]
      %v1786 = vld [vmem:[%s1773 + $0x30] sm:$0xf]
      %v1787 = vld [vmem:[%s1773 + $0x34] sm:$0xf]
      %v1788 = vld [vmem:[%s1773 + $0x38] sm:$0xf]
      %v1789 = vld [vmem:[%s1773 + $0x3c] sm:$0xf]
      %v1790 = vunpack.c.l.b16 %v1674
      %v1791 = vunpack.c.l.b16 %v1688
      %v1792 = vunpack.c.l.b16 %v1702
      %v1793 = vunpack.c.l.b16 %v1716
      %v1794 = vunpack.c.l.b16 %v1730
      %v1795 = vunpack.c.l.b16 %v1744
      %v1796 = vunpack.c.l.b16 %v1758
      %v1797 = vunpack.c.l.b16 %v1772
      %v1798 = vpack.c.b16 %v1791, %v1790
      %v1799 = vpack.c.b16 %v1793, %v1792
      %v1800 = vpack.c.b16 %v1795, %v1794
      %v1801 = vpack.c.b16 %v1797, %v1796
      %v1822 = vunpack.c.l.b16 %v1774
      %v1823 = vunpack.c.l.b16 %v1775
      %v1824 = vunpack.c.l.b16 %v1776
      %v1825 = vunpack.c.l.b16 %v1777
      %v1826 = vunpack.c.l.b16 %v1778
      %v1827 = vunpack.c.l.b16 %v1779
      %v1828 = vunpack.c.l.b16 %v1780
      %v1829 = vunpack.c.l.b16 %v1781
      %v1830 = vunpack.c.l.b16 %v1782
      %v1831 = vunpack.c.l.b16 %v1783
      %v1832 = vunpack.c.l.b16 %v1784
      %v1833 = vunpack.c.l.b16 %v1785
      %v1834 = vunpack.c.l.b16 %v1786
      %v1835 = vunpack.c.l.b16 %v1787
      %v1836 = vunpack.c.l.b16 %v1788
      %v1837 = vunpack.c.l.b16 %v1789
      %v1838 = vpack.c.b16 %v1823, %v1822
      %v1839 = vpack.c.b16 %v1825, %v1824
      %v1840 = vpack.c.b16 %v1827, %v1826
      %v1841 = vpack.c.b16 %v1829, %v1828
      %v1842 = vpack.c.b16 %v1831, %v1830
      %v1843 = vpack.c.b16 %v1833, %v1832
      %v1844 = vpack.c.b16 %v1835, %v1834
      %v1845 = vpack.c.b16 %v1837, %v1836
      %1854 = vmatpush.bf16.msra.mxu0 %v1845
      %1855 = vmatpush.bf16.msra.mxu0 %v1844
      %1856 = vmatpush.bf16.msra.mxu0 %v1843
      %1857 = vmatpush.bf16.msra.mxu0 %v1842
      %1858 = vmatpush.bf16.msra.mxu0 %v1841
      %1859 = vmatpush.bf16.msra.mxu0 %v1840
      %1860 = vmatpush.bf16.msra.mxu0 %v1839
      %1861 = vmatpush.bf16.msra.mxu0 %v1838
      %1862 = vmatmul.bf16.gmra.mxu0 %v1798
      %v1863 = vpop.f32.mrf.mxu0
      %v1864 = vadd.f32 0.0, %v1863
      %v1865 = vpop.f32.mrf.mxu0
      %v1866 = vadd.f32 0.0, %v1865
      %1867 = vmatmul.bf16.gmra.mxu0 %v1799
      %v1868 = vpop.f32.mrf.mxu0
      %v1869 = vadd.f32 0.0, %v1868
      %v1870 = vpop.f32.mrf.mxu0
      %v1871 = vadd.f32 0.0, %v1870
      %1872 = vmatmul.bf16.gmra.mxu0 %v1800
      %v1873 = vpop.f32.mrf.mxu0
      %v1874 = vadd.f32 0.0, %v1873
      %v1875 = vpop.f32.mrf.mxu0
      %v1876 = vadd.f32 0.0, %v1875
      %1877 = vmatmul.bf16.gmra.mxu0 %v1801
      %v1878 = vpop.f32.mrf.mxu0
      %v1879 = vadd.f32 0.0, %v1878
      %v1880 = vpop.f32.mrf.mxu0
      %v1881 = vadd.f32 0.0, %v1880
      %1882 = vdwg.mxu0
      %v1883 = vadd.f32 %v1637, %v1864
      %v1884 = vadd.f32 %v1638, %v1866
      %v1885 = vadd.f32 %v1639, %v1869
      %v1886 = vadd.f32 %v1640, %v1871
      %v1887 = vadd.f32 %v1641, %v1874
      %v1888 = vadd.f32 %v1642, %v1876
      %v1889 = vadd.f32 %v1643, %v1879
      %v1890 = vadd.f32 %v1644, %v1881
      %v1891 = vld [vmem:[%s1510] sm:$0xe]
      %v1892 = vld [vmem:[%s1510 + $0x8] sm:$0xe]
      %v1893 = vld [vmem:[%s1510 + $0x10] sm:$0xe]
      %v1894 = vld [vmem:[%s1510 + $0x18] sm:$0xe]
      %v1895 = vld [vmem:[%s1510 + $0x20] sm:$0xe]
      %v1896 = vld [vmem:[%s1510 + $0x28] sm:$0xe]
      %v1897 = vld [vmem:[%s1510 + $0x30] sm:$0xe]
      %v1898 = vld [vmem:[%s1510 + $0x38] sm:$0xe]
      %v1915 = vrot.slane %v1891, 5
      %v1916 = vrot.slane %v1915, 4
      %v1917 = vrot.slane %v1646, 5
      %v1918 = vsel %vm805, %v1916, %v1917
      %v1919 = vrot.slane %v1892, 5
      %v1920 = vrot.slane %v1919, 4
      %v1921 = vrot.slane %v1648, 5
      %v1922 = vsel %vm805, %v1920, %v1921
      %v1923 = vrot.slane %v1893, 5
      %v1924 = vrot.slane %v1923, 4
      %v1925 = vrot.slane %v1650, 5
      %v1926 = vsel %vm805, %v1924, %v1925
      %v1927 = vrot.slane %v1894, 5
      %v1928 = vrot.slane %v1927, 4
      %v1929 = vrot.slane %v1652, 5
      %v1930 = vsel %vm805, %v1928, %v1929
      %v1931 = vrot.slane %v1895, 5
      %v1932 = vrot.slane %v1931, 4
      %v1933 = vrot.slane %v1654, 5
      %v1934 = vsel %vm805, %v1932, %v1933
      %v1935 = vrot.slane %v1896, 5
      %v1936 = vrot.slane %v1935, 4
      %v1937 = vrot.slane %v1656, 5
      %v1938 = vsel %vm805, %v1936, %v1937
      %v1939 = vrot.slane %v1897, 5
      %v1940 = vrot.slane %v1939, 4
      %v1941 = vrot.slane %v1658, 5
      %v1942 = vsel %vm805, %v1940, %v1941
      %v1943 = vrot.slane %v1898, 5
      %v1944 = vrot.slane %v1943, 4
      %v1945 = vrot.slane %v1660, 5
      %v1946 = vsel %vm805, %v1944, %v1945
      %s1947 = scalar_lea.vmem %s2, 512
      %v1948 = vld [vmem:[%s1947] sm:$0xf]
      %v1949 = vld [vmem:[%s1947 + $0x4] sm:$0xf]
      %v1950 = vld [vmem:[%s1947 + $0x8] sm:$0xf]
      %v1951 = vld [vmem:[%s1947 + $0xc] sm:$0xf]
      %v1952 = vld [vmem:[%s1947 + $0x10] sm:$0xf]
      %v1953 = vld [vmem:[%s1947 + $0x14] sm:$0xf]
      %v1954 = vld [vmem:[%s1947 + $0x18] sm:$0xf]
      %v1955 = vld [vmem:[%s1947 + $0x1c] sm:$0xf]
      %v1956 = vld [vmem:[%s1947 + $0x20] sm:$0xf]
      %v1957 = vld [vmem:[%s1947 + $0x24] sm:$0xf]
      %v1958 = vld [vmem:[%s1947 + $0x28] sm:$0xf]
      %v1959 = vld [vmem:[%s1947 + $0x2c] sm:$0xf]
      %v1960 = vld [vmem:[%s1947 + $0x30] sm:$0xf]
      %v1961 = vld [vmem:[%s1947 + $0x34] sm:$0xf]
      %v1962 = vld [vmem:[%s1947 + $0x38] sm:$0xf]
      %v1963 = vld [vmem:[%s1947 + $0x3c] sm:$0xf]
      %v1964 = vunpack.c.l.b16 %v1918
      %v1965 = vunpack.c.l.b16 %v1922
      %v1966 = vunpack.c.l.b16 %v1926
      %v1967 = vunpack.c.l.b16 %v1930
      %v1968 = vunpack.c.l.b16 %v1934
      %v1969 = vunpack.c.l.b16 %v1938
      %v1970 = vunpack.c.l.b16 %v1942
      %v1971 = vunpack.c.l.b16 %v1946
      %v1972 = vpack.c.b16 %v1965, %v1964
      %v1973 = vpack.c.b16 %v1967, %v1966
      %v1974 = vpack.c.b16 %v1969, %v1968
      %v1975 = vpack.c.b16 %v1971, %v1970
      %v1996 = vunpack.c.l.b16 %v1948
      %v1997 = vunpack.c.l.b16 %v1949
      %v1998 = vunpack.c.l.b16 %v1950
      %v1999 = vunpack.c.l.b16 %v1951
      %v2000 = vunpack.c.l.b16 %v1952
      %v2001 = vunpack.c.l.b16 %v1953
      %v2002 = vunpack.c.l.b16 %v1954
      %v2003 = vunpack.c.l.b16 %v1955
      %v2004 = vunpack.c.l.b16 %v1956
      %v2005 = vunpack.c.l.b16 %v1957
      %v2006 = vunpack.c.l.b16 %v1958
      %v2007 = vunpack.c.l.b16 %v1959
      %v2008 = vunpack.c.l.b16 %v1960
      %v2009 = vunpack.c.l.b16 %v1961
      %v2010 = vunpack.c.l.b16 %v1962
      %v2011 = vunpack.c.l.b16 %v1963
      %v2012 = vpack.c.b16 %v1997, %v1996
      %v2013 = vpack.c.b16 %v1999, %v1998
      %v2014 = vpack.c.b16 %v2001, %v2000
      %v2015 = vpack.c.b16 %v2003, %v2002
      %v2016 = vpack.c.b16 %v2005, %v2004
      %v2017 = vpack.c.b16 %v2007, %v2006
      %v2018 = vpack.c.b16 %v2009, %v2008
      %v2019 = vpack.c.b16 %v2011, %v2010
      %2028 = vmatpush.bf16.msra.mxu0 %v2019
      %2029 = vmatpush.bf16.msra.mxu0 %v2018
      %2030 = vmatpush.bf16.msra.mxu0 %v2017
      %2031 = vmatpush.bf16.msra.mxu0 %v2016
      %2032 = vmatpush.bf16.msra.mxu0 %v2015
      %2033 = vmatpush.bf16.msra.mxu0 %v2014
      %2034 = vmatpush.bf16.msra.mxu0 %v2013
      %2035 = vmatpush.bf16.msra.mxu0 %v2012
      %2036 = vmatmul.bf16.gmra.mxu0 %v1972
      %v2037 = vpop.f32.mrf.mxu0
      %v2038 = vadd.f32 0.0, %v2037
      %v2039 = vpop.f32.mrf.mxu0
      %v2040 = vadd.f32 0.0, %v2039
      %2041 = vmatmul.bf16.gmra.mxu0 %v1973
      %v2042 = vpop.f32.mrf.mxu0
      %v2043 = vadd.f32 0.0, %v2042
      %v2044 = vpop.f32.mrf.mxu0
      %v2045 = vadd.f32 0.0, %v2044
      %2046 = vmatmul.bf16.gmra.mxu0 %v1974
      %v2047 = vpop.f32.mrf.mxu0
      %v2048 = vadd.f32 0.0, %v2047
      %v2049 = vpop.f32.mrf.mxu0
      %v2050 = vadd.f32 0.0, %v2049
      %2051 = vmatmul.bf16.gmra.mxu0 %v1975
      %v2052 = vpop.f32.mrf.mxu0
      %v2053 = vadd.f32 0.0, %v2052
      %v2054 = vpop.f32.mrf.mxu0
      %v2055 = vadd.f32 0.0, %v2054
      %2056 = vdwg.mxu0
      %v2057 = vadd.f32 %v1883, %v2038
      %v2058 = vadd.f32 %v1884, %v2040
      %v2059 = vadd.f32 %v1885, %v2043
      %v2060 = vadd.f32 %v1886, %v2045
      %v2061 = vadd.f32 %v1887, %v2048
      %v2062 = vadd.f32 %v1888, %v2050
      %v2063 = vadd.f32 %v1889, %v2053
      %v2064 = vadd.f32 %v1890, %v2055
      %v2065 = vadd.f32 %v2057, %v2058
      %v2066 = vadd.f32 %v2065, %v2059
      %v2067 = vadd.f32 %v2066, %v2060
      %v2068 = vadd.f32 %v2067, %v2061
      %v2069 = vadd.f32 %v2068, %v2062
      %v2070 = vadd.f32 %v2069, %v2063
      %v2071 = vadd.f32 %v2070, %v2064
      %v2072 = vrot.slane %v2071, 4
      %v2073 = vadd.f32 %v2071, %v2072
      %v2074 = vrot.slane %v2073, 2
      %v2075 = vadd.f32 %v2073, %v2074
      %v2076 = vrot.slane %v2075, 1
      %v2077 = vadd.f32 %v2075, %v2076
      %2078 = vst [vmem:[%s208] sm:$0x1] %v2077
      %v2079 = vmul.f32 %v2057, %v2057
      %v2080 = vmul.f32 %v2058, %v2058
      %v2081 = vmul.f32 %v2059, %v2059
      %v2082 = vmul.f32 %v2060, %v2060
      %v2083 = vmul.f32 %v2061, %v2061
      %v2084 = vmul.f32 %v2062, %v2062
      %v2085 = vmul.f32 %v2063, %v2063
      %v2086 = vmul.f32 %v2064, %v2064
      %v2087 = vadd.f32 %v2079, %v2080
      %v2088 = vadd.f32 %v2087, %v2081
      %v2089 = vadd.f32 %v2088, %v2082
      %v2090 = vadd.f32 %v2089, %v2083
      %v2091 = vadd.f32 %v2090, %v2084
      %v2092 = vadd.f32 %v2091, %v2085
      %v2093 = vadd.f32 %v2092, %v2086
      %v2094 = vrot.slane %v2093, 4
      %v2095 = vadd.f32 %v2093, %v2094
      %v2096 = vrot.slane %v2095, 2
      %v2097 = vadd.f32 %v2095, %v2096
      %v2098 = vrot.slane %v2097, 1
      %v2099 = vadd.f32 %v2097, %v2098
      %2100 = vst [vmem:[%s208 + $0x1] sm:$0x1] %v2099
      %v2101 = vpack.c.bf16 %v2057, %v2057
      %v2102 = vpack.c.bf16 %v2058, %v2058
      %v2103 = vpack.c.bf16 %v2059, %v2059
      %v2104 = vpack.c.bf16 %v2060, %v2060
      %v2105 = vpack.c.bf16 %v2061, %v2061
      %v2106 = vpack.c.bf16 %v2062, %v2062
      %v2107 = vpack.c.bf16 %v2063, %v2063
      %v2108 = vpack.c.bf16 %v2064, %v2064
      %2109 = vst [vmem:[%s204] sm:$0xf] %v2101
      %2110 = vst [vmem:[%s204 + $0x4] sm:$0xf] %v2102
      %2111 = vst [vmem:[%s204 + $0x8] sm:$0xf] %v2103
      %2112 = vst [vmem:[%s204 + $0xc] sm:$0xf] %v2104
      %2113 = vst [vmem:[%s204 + $0x10] sm:$0xf] %v2105
      %2114 = vst [vmem:[%s204 + $0x14] sm:$0xf] %v2106
      %2115 = vst [vmem:[%s204 + $0x18] sm:$0xf] %v2107
      %2116 = vst [vmem:[%s204 + $0x1c] sm:$0xf] %v2108
      %p2117 = scmp.lt.s32.totalorder %s16, 1
      %s2118 = scalar_select %p2117, %s16, 1
      %s2119 = smul.addr %s2118, 8
      %s2120 = smul.addr %s2119, 4
      %s2121 = scalar_lea.vmem %s3, %s2120
      %p2122 = scmp.lt.s32.totalorder %s16, 1
      %s2123 = scalar_select %p2122, %s16, 1
      %s2124 = smul.addr %s2123, 2
      %s2125 = scalar_lea.vmem %s4, %s2124
      // Predicated region
      $region37: #{basic_block_forward.4} parent=31 // pred_check
        %p2126 = pneg %p102
      $region38: #{basic_block_forward.4} parent=31 // pred_check_branch
        %2128 = sbr.rel (%p2126) target = $region40
      $region39: #{basic_block_forward.4} parent=31 // pred_region
        _
      $region40: #{basic_block_forward.4} parent=31 // pred_fallthru
        _
      // Predicated region
      $region41: #{basic_block_forward.4} parent=31 // pred_check
        %p2129 = pneg %p128
      $region42: #{basic_block_forward.4} parent=31 // pred_check_branch
        %2131 = sbr.rel (%p2129) target = $region44
      $region43: #{basic_block_forward.4} parent=31 // pred_region
        _
      $region44: #{basic_block_forward.4} parent=31 // pred_fallthru
        _
    $region32: #{basic_block_forward.4} parent=5 // pred_fallthru
      _
    %p2132 = scmp.le.s32.totalorder 2, %s11
    // Predicated region
    $region45: #{basic_block_forward.4} parent=5 // pred_check
      %p2133 = pneg %p2132
    $region46: #{basic_block_forward.4} parent=5 // pred_check_branch
      %2135 = sbr.rel (%p2133) target = $region48
    $region47: #{basic_block_forward.4} parent=5 // pred_region
      %s2136 = ssub.s32 %s11, 2
      // Predicated region
      $region49: #{basic_block_forward.4} parent=47 // pred_check
        %p2137 = pneg %p108
      $region50: #{basic_block_forward.4} parent=47 // pred_check_branch
        %2139 = sbr.rel (%p2137) target = $region52
      $region51: #{basic_block_forward.4} parent=47 // pred_region
        %p2140 = scmp.lt.s32.totalorder %s17, 1
        %s2141 = scalar_select %p2140, %s17, 1
        %s2142 = smul.addr %s2141, 8
        %s2143 = smul.addr %s2142, 4
        %s2144 = scalar_lea.vmem %s3, %s2143
      $region52: #{basic_block_forward.4} parent=47 // pred_fallthru
        _
      // Predicated region
      $region53: #{basic_block_forward.4} parent=47 // pred_check
        %p2145 = pneg %p134
      $region54: #{basic_block_forward.4} parent=47 // pred_check_branch
        %2147 = sbr.rel (%p2145) target = $region56
      $region55: #{basic_block_forward.4} parent=47 // pred_region
        %p2148 = scmp.lt.s32.totalorder %s17, 1
        %s2149 = scalar_select %p2148, %s17, 1
        %s2150 = smul.addr %s2149, 2
        %s2151 = scalar_lea.vmem %s4, %s2150
      $region56: #{basic_block_forward.4} parent=47 // pred_fallthru
        _
    $region48: #{basic_block_forward.4} parent=5 // pred_fallthru
      _
  $region6: #{basic_block_forward.4} parent=0 // loop_footer
    %s15 = sadd.s32 1, %s11
  $region7: #{basic_block_forward.4} parent=0 // loop_footer_branch
    %10 = sbr.rel target = $region3
  $region8: #{basic_block_forward.4} parent=0 // loop_exit
    _

</llo_original>
